<compile_context>
chip_gen: v6e
topology: v6e:2x2x1
jax: 0.10.0
libtpu: 0.0.40
codegen_flags: <defaults>
</compile_context>

<pallas_src>
import math
import numpy as np
import jax
import jax.numpy as jnp
from jax import lax
from jax.experimental import pallas as pl
from jax.experimental.pallas import tpu as pltpu


# ---------------------------------------------------------------------------
# Wavelet matrix construction (faithful port of DWT_2D.get_matrix, numpy only)
# ---------------------------------------------------------------------------
def build_dwt_matrices(input_height, input_width, band_low, band_high):
    band_length = len(band_low)
    assert band_length == len(band_high) and band_length % 2 == 0
    band_length_half = math.floor(band_length / 2)

    L1 = max(input_height, input_width)
    L = math.floor(L1 / 2)
    matrix_h = np.zeros((L, L1 + band_length - 2), dtype=np.float64)
    matrix_g = np.zeros((L1 - L, L1 + band_length - 2), dtype=np.float64)
    end = None if band_length_half == 1 else -band_length_half + 1

    index = 0
    for i in range(L):
        for j in range(band_length):
            matrix_h[i, index + j] = band_low[j]
        index += 2
    matrix_h_0 = matrix_h[0:math.floor(input_height / 2),
                          0:input_height + band_length - 2]
    matrix_h_1 = matrix_h[0:math.floor(input_width / 2),
                          0:input_width + band_length - 2]

    index = 0
    for i in range(L1 - L):
        for j in range(band_length):
            matrix_g[i, index + j] = band_high[j]
        index += 2
    matrix_g_0 = matrix_g[0:input_height - math.floor(input_height / 2),
                          0:input_height + band_length - 2]
    matrix_g_1 = matrix_g[0:input_width - math.floor(input_width / 2),
                          0:input_width + band_length - 2]

    matrix_h_0 = matrix_h_0[:, band_length_half - 1:end]
    matrix_h_1 = matrix_h_1[:, band_length_half - 1:end]
    matrix_h_1 = np.transpose(matrix_h_1)
    matrix_g_0 = matrix_g_0[:, band_length_half - 1:end]
    matrix_g_1 = matrix_g_1[:, band_length_half - 1:end]
    matrix_g_1 = np.transpose(matrix_g_1)

    return (matrix_h_0.astype(np.float32),   # matrix_low_0  : (H//2, H)
            matrix_h_1.astype(np.float32),   # matrix_low_1  : (W, W//2)
            matrix_g_0.astype(np.float32),   # matrix_high_0 : (H - H//2, H)
            matrix_g_1.astype(np.float32))   # matrix_high_1 : (W, W - W//2)


# Haar wavelet reconstruction filters (pywt.Wavelet('haar').rec_lo / rec_hi)
# TODO(synk): other pywt wavelets need their filter taps inlined (no pywt dep).
HAAR_REC_LO = [1.0 / math.sqrt(2.0), 1.0 / math.sqrt(2.0)]
HAAR_REC_HI = [1.0 / math.sqrt(2.0), -1.0 / math.sqrt(2.0)]


# ---------------------------------------------------------------------------
# Pallas kernel: Bblk images per grid step, fused two-sided matmul on MXU.
#   x_ref : (Bblk, H, W)   m0_ref : (H, H)   m1_ref : (W, W)
#   y_ref : (Bblk, H, W)   quadrant layout [LL LH ; HL HH]
# Stage 2 writes straight into y_ref; stage 1 is done in place (no scratch).
# ---------------------------------------------------------------------------
def dwt2d_kernel(x_ref, m0_ref, m1_ref, y_ref):
    bblk, h, w = x_ref.shape
    unroll = int(min(bblk, 8))            # cap unroll to keep vregs from spilling

    m0 = m0_ref[...]                      # (H, H) = [lo0 ; hi0]
    m1 = m1_ref[...]                      # (W, W) = [lo1 | hi1]
    # Explicit precision: full-f32 MXU path for f32 operands (matches torch).
    prec = (lax.Precision.HIGHEST if m1_ref.dtype == jnp.float32
            else lax.Precision.DEFAULT)

    # ---- Stage 2 (right multiply): T = X @ M1 -> write directly into y_ref.
    if h % 8 == 0:
        # (bblk, h) -> bblk*h merge is layout-free when h is a multiple of the
        # 8-sublane tile; big-M matmul fills the MXU.
        t = jnp.dot(x_ref[...].reshape(bblk * h, w), m1,
                    preferred_element_type=jnp.float32, precision=prec)
        y_ref[...] = t.reshape(bblk, h, w).astype(y_ref.dtype)
    else:
        def stage2(i, carry):
            y_ref[i] = jnp.dot(x_ref[i], m1,
                               preferred_element_type=jnp.float32,
                               precision=prec).astype(y_ref.dtype)
            return carry
        lax.fori_loop(0, bblk, stage2, 0, unroll=unroll)

    # ---- Stage 1 (left multiply), in place: Y[i] = M0 @ Y[i].
    def stage1(i, carry):
        rhs = y_ref[i]                     # (H, W) intermediate, f32
        if rhs.dtype != m0.dtype:          # only hit on the bf16-operand path
            rhs = rhs.astype(m0.dtype)
        y_ref[i] = jnp.dot(m0, rhs, preferred_element_type=jnp.float32,
                           precision=prec).astype(y_ref.dtype)
        return carry

    lax.fori_loop(0, bblk, stage1, 0, unroll=unroll)


# ---------------------------------------------------------------------------
# Generation-aware blocking / VMEM budgeting.
# ---------------------------------------------------------------------------
def _vmem_capacity_bytes():
    try:
        return int(pltpu.get_tpu_info().vmem_capacity_bytes)
    except Exception:
        return 128 << 20   # conservative fallback (v5e/v6e-class)


def _choose_blocking(B, H, W, itemsize):
    """Returns (bblk, grid_steps, vmem_limit_cap_bytes)."""
    vmem_cap = _vmem_capacity_bytes()
    per_img = max(1, H * W * itemsize)
    if vmem_cap >= (96 << 20):       # 128 MiB physical VMEM (v5e / v6e)
        cap_bytes = 10 << 20         # ~10 MiB input block target
        limit_cap = 100 << 20
        min_steps = 2
    else:                            # 64 MiB physical VMEM (v7x-class)
        cap_bytes = 5 << 20          # ~5 MiB input block target
        limit_cap = 44 << 20
        min_steps = 4                # keep both TCs' double buffers full

    bblk = max(1, min(B, cap_bytes // per_img))
    if B >= min_steps:
        bblk = min(bblk, pl.cdiv(B, min_steps))
    elif B >= 2:
        bblk = min(bblk, pl.cdiv(B, 2))

    grid = pl.cdiv(B, bblk)
    if grid > 1 and grid % 2 == 1:   # even step count so 2 TCs split evenly
        grid += 1
        bblk = pl.cdiv(B, grid)
    return int(bblk), int(grid), int(limit_cap)


def dwt_2d(x, wavename="haar", use_bf16_operands=False):
    """x: (N, C, H, W) float32.  Returns (LL, LH, HL, HH), each (N, C, ., .)."""
    assert x.ndim == 4
    N, C, H, W = x.shape
    Hh, Wh = H // 2, W // 2

    assert wavename == "haar"  # TODO(synk): inline other pywt wavelet taps if needed
    lo0, lo1, hi0, hi1 = build_dwt_matrices(H, W, HAAR_REC_LO, HAAR_REC_HI)

    # Fuse the four filter matrices into two full-size matmul operands.
    m0_np = np.concatenate([lo0, hi0], axis=0)   # (H, H) = [lo0 ; hi0]
    m1_np = np.concatenate([lo1, hi1], axis=1)   # (W, W) = [lo1 | hi1]

    op_dtype = jnp.bfloat16 if use_bf16_operands else x.dtype
    m0 = jnp.asarray(m0_np, dtype=op_dtype)
    m1 = jnp.asarray(m1_np, dtype=op_dtype)

    B = N * C
    xb = x.reshape(B, H, W).astype(op_dtype)
    itemsize = jnp.dtype(op_dtype).itemsize

    bblk, grid, limit_cap = _choose_blocking(B, H, W, itemsize)

    # Pad B up to a whole number of blocks (zeros in -> zeros out, sliced off).
    B_pad = grid * bblk
    if B_pad != B:
        xb = jnp.pad(xb, ((0, B_pad - B), (0, 0), (0, 0)))

    # VMEM budget: double-buffered input + output blocks + (constant-index,
    # hence not re-DMA'd but still double-allocated) filter operands.
    blk_in = bblk * H * W * itemsize
    blk_out = bblk * H * W * 4                      # output is f32
    filt = (H * H + W * W) * itemsize
    vmem_est = 2 * blk_in + 2 * blk_out + 2 * filt
    vmem_limit = int(min(limit_cap, max(32 << 20, int(1.5 * vmem_est))))

    y = pl.pallas_call(
        dwt2d_kernel,
        out_shape=jax.ShapeDtypeStruct((B_pad, H, W), jnp.float32),
        grid_spec=pltpu.PrefetchScalarGridSpec(
            num_scalar_prefetch=0,
            grid=(grid,),
            in_specs=[
                pl.BlockSpec((bblk, H, W), lambda b: (b, 0, 0)),
                # Constant index maps: filters are DMA'd once, not per step.
                pl.BlockSpec((H, H), lambda b: (0, 0)),
                pl.BlockSpec((W, W), lambda b: (0, 0)),
            ],
            out_specs=pl.BlockSpec((bblk, H, W), lambda b: (b, 0, 0)),
        ),
        compiler_params=pltpu.CompilerParams(
            dimension_semantics=("parallel",),
            vmem_limit_bytes=vmem_limit,
        ),
        cost_estimate=pl.CostEstimate(
            flops=2 * B_pad * H * W * (H + W),
            transcendentals=0,
            bytes_accessed=(B_pad * H * W * (itemsize + 4)
                            + (H * H + W * W) * itemsize),
        ),
    )(xb, m0, m1)

    # Quadrant split (cheap XLA slices; keeps the kernel output lane-dense).
    y = y[:B].reshape(N, C, H, W)
    return (y[:, :, :Hh, :Wh],   # LL
            y[:, :, :Hh, Wh:],   # LH
            y[:, :, Hh:, :Wh],   # HL
            y[:, :, Hh:, Wh:])   # HH


def dwt_2d_reference(x, wavename="haar"):
    """Pure-JAX reference mirroring DWTFunction_2D.forward."""
    N, C, H, W = x.shape
    lo0, lo1, hi0, hi1 = build_dwt_matrices(H, W, HAAR_REC_LO, HAAR_REC_HI)
    lo0, lo1 = jnp.asarray(lo0), jnp.asarray(lo1)
    hi0, hi1 = jnp.asarray(hi0), jnp.asarray(hi1)
    L = jnp.einsum("ph,nchw->ncpw", lo0, x)
    Hf = jnp.einsum("ph,nchw->ncpw", hi0, x)
    LL = jnp.einsum("ncpw,wq->ncpq", L, lo1)
    LH = jnp.einsum("ncpw,wq->ncpq", L, hi1)
    HL = jnp.einsum("ncpw,wq->ncpq", Hf, lo1)
    HH = jnp.einsum("ncpw,wq->ncpq", Hf, hi1)
    return LL, LH, HL, HH


if __name__ == "__main__":
    key = jax.random.PRNGKey(0)
    x = jax.random.normal(key, (2, 4, 16, 16), dtype=jnp.float32)

    outs = dwt_2d(x, "haar")
    outs = jax.block_until_ready(outs)

    refs = dwt_2d_reference(x, "haar")
    for o, r in zip(outs, refs):
        np.testing.assert_allclose(np.asarray(o), np.asarray(r),
                                   rtol=1e-5, atol=1e-5)

    print("KERNEL_OK")
</pallas_src>

<mosaic_0001>
module attributes {stable_mosaic.version = 11 : i64} {
  func.func @dwt2d_kernel(%arg0: i32, %arg1: memref<4x16x16xf32, #tpu.memory_space<vmem>>, %arg2: memref<16x16xf32, #tpu.memory_space<vmem>>, %arg3: memref<16x16xf32, #tpu.memory_space<vmem>>, %arg4: memref<4x16x16xf32, #tpu.memory_space<vmem>>) attributes {dimension_semantics = [#tpu.dimension_semantics<parallel>], iteration_bounds = array<i64: 2>, scalar_prefetch = 0 : i64, scratch_operands = 0 : i64, tpu.core_type = #tpu.core_type<tc>, window_params = [{transform_indices = @transform_0, window_bounds = array<i64: 4, 16, 16>}, {pipeline_mode = #tpu.pipeline_mode<synchronous>, transform_indices = @transform_1, window_bounds = array<i64: 16, 16>}, {pipeline_mode = #tpu.pipeline_mode<synchronous>, transform_indices = @transform_2, window_bounds = array<i64: 16, 16>}, {transform_indices = @transform_3, window_bounds = array<i64: 4, 16, 16>}]} {
    %c0 = arith.constant 0 : index
    %c0_0 = arith.constant 0 : index
    %0 = vector.load %arg2[%c0, %c0_0] : memref<16x16xf32, #tpu.memory_space<vmem>>, vector<16x16xf32>
    %c0_1 = arith.constant 0 : index
    %c0_2 = arith.constant 0 : index
    %1 = vector.load %arg3[%c0_1, %c0_2] : memref<16x16xf32, #tpu.memory_space<vmem>>, vector<16x16xf32>
    %c0_3 = arith.constant 0 : index
    %c0_4 = arith.constant 0 : index
    %c0_5 = arith.constant 0 : index
    %2 = vector.load %arg1[%c0_3, %c0_4, %c0_5] : memref<4x16x16xf32, #tpu.memory_space<vmem>>, vector<4x16x16xf32>
    %3 = vector.shape_cast %2 : vector<4x16x16xf32> to vector<64x16xf32>
    %cst = arith.constant dense<0.000000e+00> : vector<64x16xf32>
    %4 = tpu.matmul %3, %1, %cst {dimension_numbers = #tpu.dot_dimension_numbers<[1], [0], [0], [1], [0, 0, 1, 1], [], []>, precision = #tpu.contract_precision<fp32>} : vector<64x16xf32>, vector<16x16xf32>, vector<64x16xf32> -> vector<64x16xf32>
    %5 = vector.shape_cast %4 : vector<64x16xf32> to vector<4x16x16xf32>
    %c0_6 = arith.constant 0 : index
    %c0_7 = arith.constant 0 : index
    %c0_8 = arith.constant 0 : index
    %6 = vector.load %arg4[%c0_6, %c0_7, %c0_8] : memref<4x16x16xf32, #tpu.memory_space<vmem>>, vector<4x16x16xf32>
    tpu.vector_store %arg4[%c0_6, %c0_7, %c0_8], %5 {strides = array<i32>} : memref<4x16x16xf32, #tpu.memory_space<vmem>>, vector<4x16x16xf32>,
    %c0_i32 = arith.constant 0 : i32
    %7 = arith.index_cast %c0_i32 : i32 to index
    %c0_9 = arith.constant 0 : index
    %c0_10 = arith.constant 0 : index
    %8 = vector.load %arg4[%7, %c0_9, %c0_10] : memref<4x16x16xf32, #tpu.memory_space<vmem>>, vector<1x16x16xf32>
    %9 = vector.shape_cast %8 : vector<1x16x16xf32> to vector<16x16xf32>
    %cst_11 = arith.constant dense<0.000000e+00> : vector<16x16xf32>
    %10 = tpu.matmul %0, %9, %cst_11 {dimension_numbers = #tpu.dot_dimension_numbers<[1], [0], [0], [1], [0, 0, 1, 1], [], []>, precision = #tpu.contract_precision<fp32>} : vector<16x16xf32>, vector<16x16xf32>, vector<16x16xf32> -> vector<16x16xf32>
    %11 = arith.index_cast %c0_i32 : i32 to index
    %c0_12 = arith.constant 0 : index
    %c0_13 = arith.constant 0 : index
    %12 = vector.load %arg4[%11, %c0_12, %c0_13] : memref<4x16x16xf32, #tpu.memory_space<vmem>>, vector<1x16x16xf32>
    %13 = vector.shape_cast %12 : vector<1x16x16xf32> to vector<16x16xf32>
    %14 = vector.shape_cast %10 : vector<16x16xf32> to vector<1x16x16xf32>
    tpu.vector_store %arg4[%11, %c0_12, %c0_13], %14 {strides = array<i32>} : memref<4x16x16xf32, #tpu.memory_space<vmem>>, vector<1x16x16xf32>,
    %c1_i32 = arith.constant 1 : i32
    %15 = arith.index_cast %c1_i32 : i32 to index
    %c0_14 = arith.constant 0 : index
    %c0_15 = arith.constant 0 : index
    %16 = vector.load %arg4[%15, %c0_14, %c0_15] : memref<4x16x16xf32, #tpu.memory_space<vmem>>, vector<1x16x16xf32>
    %17 = vector.shape_cast %16 : vector<1x16x16xf32> to vector<16x16xf32>
    %cst_16 = arith.constant dense<0.000000e+00> : vector<16x16xf32>
    %18 = tpu.matmul %0, %17, %cst_16 {dimension_numbers = #tpu.dot_dimension_numbers<[1], [0], [0], [1], [0, 0, 1, 1], [], []>, precision = #tpu.contract_precision<fp32>} : vector<16x16xf32>, vector<16x16xf32>, vector<16x16xf32> -> vector<16x16xf32>
    %19 = arith.index_cast %c1_i32 : i32 to index
    %c0_17 = arith.constant 0 : index
    %c0_18 = arith.constant 0 : index
    %20 = vector.load %arg4[%19, %c0_17, %c0_18] : memref<4x16x16xf32, #tpu.memory_space<vmem>>, vector<1x16x16xf32>
    %21 = vector.shape_cast %20 : vector<1x16x16xf32> to vector<16x16xf32>
    %22 = vector.shape_cast %18 : vector<16x16xf32> to vector<1x16x16xf32>
    tpu.vector_store %arg4[%19, %c0_17, %c0_18], %22 {strides = array<i32>} : memref<4x16x16xf32, #tpu.memory_space<vmem>>, vector<1x16x16xf32>,
    %c2_i32 = arith.constant 2 : i32
    %23 = arith.index_cast %c2_i32 : i32 to index
    %c0_19 = arith.constant 0 : index
    %c0_20 = arith.constant 0 : index
    %24 = vector.load %arg4[%23, %c0_19, %c0_20] : memref<4x16x16xf32, #tpu.memory_space<vmem>>, vector<1x16x16xf32>
    %25 = vector.shape_cast %24 : vector<1x16x16xf32> to vector<16x16xf32>
    %cst_21 = arith.constant dense<0.000000e+00> : vector<16x16xf32>
    %26 = tpu.matmul %0, %25, %cst_21 {dimension_numbers = #tpu.dot_dimension_numbers<[1], [0], [0], [1], [0, 0, 1, 1], [], []>, precision = #tpu.contract_precision<fp32>} : vector<16x16xf32>, vector<16x16xf32>, vector<16x16xf32> -> vector<16x16xf32>
    %27 = arith.index_cast %c2_i32 : i32 to index
    %c0_22 = arith.constant 0 : index
    %c0_23 = arith.constant 0 : index
    %28 = vector.load %arg4[%27, %c0_22, %c0_23] : memref<4x16x16xf32, #tpu.memory_space<vmem>>, vector<1x16x16xf32>
    %29 = vector.shape_cast %28 : vector<1x16x16xf32> to vector<16x16xf32>
    %30 = vector.shape_cast %26 : vector<16x16xf32> to vector<1x16x16xf32>
    tpu.vector_store %arg4[%27, %c0_22, %c0_23], %30 {strides = array<i32>} : memref<4x16x16xf32, #tpu.memory_space<vmem>>, vector<1x16x16xf32>,
    %c3_i32 = arith.constant 3 : i32
    %31 = arith.index_cast %c3_i32 : i32 to index
    %c0_24 = arith.constant 0 : index
    %c0_25 = arith.constant 0 : index
    %32 = vector.load %arg4[%31, %c0_24, %c0_25] : memref<4x16x16xf32, #tpu.memory_space<vmem>>, vector<1x16x16xf32>
    %33 = vector.shape_cast %32 : vector<1x16x16xf32> to vector<16x16xf32>
    %cst_26 = arith.constant dense<0.000000e+00> : vector<16x16xf32>
    %34 = tpu.matmul %0, %33, %cst_26 {dimension_numbers = #tpu.dot_dimension_numbers<[1], [0], [0], [1], [0, 0, 1, 1], [], []>, precision = #tpu.contract_precision<fp32>} : vector<16x16xf32>, vector<16x16xf32>, vector<16x16xf32> -> vector<16x16xf32>
    %35 = arith.index_cast %c3_i32 : i32 to index
    %c0_27 = arith.constant 0 : index
    %c0_28 = arith.constant 0 : index
    %36 = vector.load %arg4[%35, %c0_27, %c0_28] : memref<4x16x16xf32, #tpu.memory_space<vmem>>, vector<1x16x16xf32>
    %37 = vector.shape_cast %36 : vector<1x16x16xf32> to vector<16x16xf32>
    %38 = vector.shape_cast %34 : vector<16x16xf32> to vector<1x16x16xf32>
    tpu.vector_store %arg4[%35, %c0_27, %c0_28], %38 {strides = array<i32>} : memref<4x16x16xf32, #tpu.memory_space<vmem>>, vector<1x16x16xf32>,
    %c4_i32 = arith.constant 4 : i32
    return
  }
  func.func @transform_0(%arg0: i32) -> (i32, i32, i32) {
    %c0_i32 = arith.constant 0 : i32
    %c0_i32_0 = arith.constant 0 : i32
    %c0_i32_1 = arith.constant 0 : i32
    return %arg0, %c0_i32, %c0_i32_0 : i32, i32, i32
  }
  func.func @transform_1(%arg0: i32) -> (i32, i32) {
    %c0_i32 = arith.constant 0 : i32
    %c0_i32_0 = arith.constant 0 : i32
    %c0_i32_1 = arith.constant 0 : i32
    return %c0_i32, %c0_i32_0 : i32, i32
  }
  func.func @transform_2(%arg0: i32) -> (i32, i32) {
    %c0_i32 = arith.constant 0 : i32
    %c0_i32_0 = arith.constant 0 : i32
    %c0_i32_1 = arith.constant 0 : i32
    return %c0_i32, %c0_i32_0 : i32, i32
  }
  func.func @transform_3(%arg0: i32) -> (i32, i32, i32) {
    %c0_i32 = arith.constant 0 : i32
    %c0_i32_0 = arith.constant 0 : i32
    %c0_i32_1 = arith.constant 0 : i32
    return %arg0, %c0_i32, %c0_i32_0 : i32, i32, i32
  }
}

</mosaic_0001>

<llo_original>
// kernel: tpu_custom_call.1
$region0: #{tpu_custom_call.1}
  #allocation0 [shape = 'u32[]', space=smem, size = 0x4, offset = 0x4, fixed_abs, tag = 'smem constant byte address 0x4 - core index']
  #allocation1 [shape = 'u32[144,128]{1,0:T(1,128)}', space=vmem, size = 0x12000, scoped, tag = 'internal scratch']
  %s0 = inlined_call_operand.hbm [shape: f32[8,16,16], index: 0, kind: input, shape index: {}]
  %s1 = inlined_call_operand.hbm [shape: f32[16,16], index: 1, kind: input, shape index: {}]
  %s2 = inlined_call_operand.hbm [shape: f32[16,16], index: 2, kind: input, shape index: {}]
  %s3 = inlined_call_operand.hbm [shape: f32[8,16,16], index: 3, kind: output, shape index: {}]
  %s4 = sld [smem:[#allocation0]]
  $region57: #{tpu_custom_call.1} parent=0
    _
  %s6 = ssub.s32 1, %s4
  %s7 = scalar_select 0, %s6, %s4
  $region1: #{tpu_custom_call.1} parent=0
    #allocation2 [shape = 'u8[65536]{0}', space=vmem, size = 0x10000, scoped, tag = 'input window, operand 0']
    #allocation3 [shape = 's32[2]{0}', space=sflag, size = 0x8, scoped, tag = 'scoped memory for tpu_custom_call.1']
    #allocation4 [shape = 's32[2]{0}', space=sflag, size = 0x8, scoped, tag = 'scoped memory for tpu_custom_call.1']
    #allocation5 [shape = 'u8[8192]{0}', space=vmem, size = 0x2000, scoped, tag = 'input window, operand 1, single buffered']
    #allocation6 [shape = 's32[1]{0}', space=sflag, size = 0x4, scoped, tag = 'scoped memory for tpu_custom_call.1']
    #allocation7 [shape = 'u8[8192]{0}', space=vmem, size = 0x2000, scoped, tag = 'input window, operand 2, single buffered']
    #allocation8 [shape = 'u8[65536]{0}', space=vmem, size = 0x10000, scoped, tag = 'output window, operand 0']
    %8 = vsyncpa [#allocation3], 0
    %s9 = scalar_lea.sflag [#allocation3], 1
    %10 = vsyncpa %s9, 0
    %11 = vsyncpa [#allocation6], 0
    %12 = vsyncpa [#allocation4], 0
    %s13 = scalar_lea.sflag [#allocation4], 1
    %14 = vsyncpa %s13, 0
    loop: start=0, step=1, limit=4
    $region2: #{tpu_custom_call.1} parent=1 // loop_pre_header
      _
    $region3: #{tpu_custom_call.1} parent=1 // loop_header
      %s16 = sphi 0, %s20
      %p17 = scmp.ge.s32.totalorder %s16, 4
      %s26 = sphi 0, %s28
      %s29 = sphi 0, %s26
      %s30 = sphi 0, %s29
      %s46 = sphi 0, %s30
      %s50 = sphi 0, %s50
      %s52 = sphi 0, %s50
      %s53 = sphi 0, %s52
      %s67 = sphi 0, %s53
      %s71 = sphi 0, %s71
      %s73 = sphi 0, %s71
      %s74 = sphi 0, %s73
      %s88 = sphi 0, %s74
      %s94 = sphi 0, %s96
      %s97 = sphi 0, %s94
      %s98 = sphi 0, %s97
      %s114 = sphi 0, %s98
    $region4: #{tpu_custom_call.1} parent=1 // loop_header_branch
      %19 = sbr.rel (%p17) target = $region8
    $region5: #{tpu_custom_call.1} parent=1 // loop_body
      %s21 = ssub.s32 %s16, 1
      %s22 = ssub.s32 %s16, 2
      %s23 = sadd.s32 %s16, 1
      %s24 = ssub.s32 %s16, %s23
      %p25 = scmp.eq.s32.totalorder %s24, 0
      %s27 = sadd.s32 %s26, 1
      %s28 = scalar_select %p25, %s26, %s27
      %p31 = pneg %p25
      %p32 = scmp.eq.s32.totalorder %s16, 1
      %p33 = por %p31, %p32
      %p34 = scmp.ne.s32.totalorder %s26, %s29
      %p35 = scmp.eq.s32.totalorder %s16, 0
      %p36 = por %p34, %p35
      %p37 = scmp.ne.s32.totalorder %s26, %s29
      %p38 = scmp.eq.s32.totalorder %s21, 1
      %p39 = por %p37, %p38
      %p40 = scmp.ne.s32.totalorder %s29, %s30
      %p41 = scmp.eq.s32.totalorder %s21, 0
      %p42 = por %p40, %p41
      %p43 = scmp.ne.s32.totalorder %s29, %s30
      %p44 = scmp.eq.s32.totalorder %s22, 1
      %p45 = por %p43, %p44
      %p47 = scmp.ne.s32.totalorder %s30, %s46
      %p48 = scmp.eq.s32.totalorder %s22, 0
      %p49 = por %p47, %p48
      %s51 = sadd.s32 %s50, 1
      %p54 = scmp.eq.s32.totalorder %s16, 1
      %p55 = scmp.ne.s32.totalorder %s50, %s52
      %p56 = scmp.eq.s32.totalorder %s16, 0
      %p57 = por %p55, %p56
      %p58 = scmp.ne.s32.totalorder %s50, %s52
      %p59 = scmp.eq.s32.totalorder %s21, 1
      %p60 = por %p58, %p59
      %p61 = scmp.ne.s32.totalorder %s52, %s53
      %p62 = scmp.eq.s32.totalorder %s21, 0
      %p63 = por %p61, %p62
      %p64 = scmp.ne.s32.totalorder %s52, %s53
      %p65 = scmp.eq.s32.totalorder %s22, 1
      %p66 = por %p64, %p65
      %p68 = scmp.ne.s32.totalorder %s53, %s67
      %p69 = scmp.eq.s32.totalorder %s22, 0
      %p70 = por %p68, %p69
      %s72 = sadd.s32 %s71, 1
      %p75 = scmp.eq.s32.totalorder %s16, 1
      %p76 = scmp.ne.s32.totalorder %s71, %s73
      %p77 = scmp.eq.s32.totalorder %s16, 0
      %p78 = por %p76, %p77
      %p79 = scmp.ne.s32.totalorder %s71, %s73
      %p80 = scmp.eq.s32.totalorder %s21, 1
      %p81 = por %p79, %p80
      %p82 = scmp.ne.s32.totalorder %s73, %s74
      %p83 = scmp.eq.s32.totalorder %s21, 0
      %p84 = por %p82, %p83
      %p85 = scmp.ne.s32.totalorder %s73, %s74
      %p86 = scmp.eq.s32.totalorder %s22, 1
      %p87 = por %p85, %p86
      %p89 = scmp.ne.s32.totalorder %s74, %s88
      %p90 = scmp.eq.s32.totalorder %s22, 0
      %p91 = por %p89, %p90
      %s92 = ssub.s32 %s16, %s23
      %p93 = scmp.eq.s32.totalorder %s92, 0
      %s95 = sadd.s32 %s94, 1
      %s96 = scalar_select %p93, %s94, %s95
      %p99 = pneg %p93
      %p100 = scmp.eq.s32.totalorder %s16, 1
      %p101 = por %p99, %p100
      %p102 = scmp.ne.s32.totalorder %s94, %s97
      %p103 = scmp.eq.s32.totalorder %s16, 0
      %p104 = por %p102, %p103
      %p105 = scmp.ne.s32.totalorder %s94, %s97
      %p106 = scmp.eq.s32.totalorder %s21, 1
      %p107 = por %p105, %p106
      %p108 = scmp.ne.s32.totalorder %s97, %s98
      %p109 = scmp.eq.s32.totalorder %s21, 0
      %p110 = por %p108, %p109
      %p111 = scmp.ne.s32.totalorder %s97, %s98
      %p112 = scmp.eq.s32.totalorder %s22, 1
      %p113 = por %p111, %p112
      %p115 = scmp.ne.s32.totalorder %s98, %s114
      %p116 = scmp.eq.s32.totalorder %s22, 0
      %p117 = por %p115, %p116
      %p118 = scmp.le.s32.totalorder 1, %s16
      %p119 = scmp.lt.s32.totalorder %s16, 3
      %p120 = pnand %p118, %p119
      %p121 = pneg %p120
      // Predicated region
      $region9: #{tpu_custom_call.1} parent=5 // pred_check
        _
      $region10: #{tpu_custom_call.1} parent=5 // pred_check_branch
        %123 = sbr.rel (%p120) target = $region12
      $region11: #{tpu_custom_call.1} parent=5 // pred_region
        %s124 = ssub.s32 %s16, 1
        // Predicated region
        $region13: #{tpu_custom_call.1} parent=11 // pred_check
          %p125 = pneg %p63
        $region14: #{tpu_custom_call.1} parent=11 // pred_check_branch
          %127 = sbr.rel (%p125) target = $region16
        $region15: #{tpu_custom_call.1} parent=11 // pred_region
          %s129 = ssub.s32 256, 256
          %130 = vsyncadd [#allocation6], %s129
          %s131 = sshll.u32 [#allocation5], 4
          %s132 = int_to_ptr.vmem [resolvable:$true] %s131
          %137 = dma.hbm_to_vmem [thread:$0]  %s1, 256, %s132, [#allocation6], 128, 128, 8
        $region16: #{tpu_custom_call.1} parent=11 // pred_fallthru
          _
        // Predicated region
        $region17: #{tpu_custom_call.1} parent=11 // pred_check
          %p138 = pneg %p84
        $region18: #{tpu_custom_call.1} parent=11 // pred_check_branch
          %140 = sbr.rel (%p138) target = $region20
        $region19: #{tpu_custom_call.1} parent=11 // pred_region
          %s142 = ssub.s32 256, 256
          %143 = vsyncadd [#allocation6], %s142
          %s144 = sshll.u32 [#allocation7], 4
          %s145 = int_to_ptr.vmem [resolvable:$true] %s144
          %150 = dma.hbm_to_vmem [thread:$0]  %s2, 256, %s145, [#allocation6], 128, 128, 8
        $region20: #{tpu_custom_call.1} parent=11 // pred_fallthru
          _
      $region12: #{tpu_custom_call.1} parent=5 // pred_fallthru
        _
      %p151 = scmp.lt.s32.totalorder %s16, 2
      // Predicated region
      $region21: #{tpu_custom_call.1} parent=5 // pred_check
        %p152 = pneg %p151
      $region22: #{tpu_custom_call.1} parent=5 // pred_check_branch
        %154 = sbr.rel (%p152) target = $region24
      $region23: #{tpu_custom_call.1} parent=5 // pred_region
        // Predicated region
        $region25: #{tpu_custom_call.1} parent=23 // pred_check
          %p155 = pneg %p36
        $region26: #{tpu_custom_call.1} parent=23 // pred_check_branch
          %157 = sbr.rel (%p155) target = $region28
        $region27: #{tpu_custom_call.1} parent=23 // pred_region
          %s158 = sand.u32 %s26, 1
          %s159 = scalar_lea.sflag [#allocation3], %s158
          %s160 = sand.u32 %s26, 1
          %s161 = smul.addr %s160, 64
          %s162 = scalar_lea.vmem [#allocation2], %s161
          %s163 = smul.u32 4, %s16
          %s165 = ssub.s32 1024, 1024
          %166 = vsyncadd %s159, %s165
          %s167 = smul.addr %s163, 2
          %s168 = smul.addr %s167, 128
          %s169 = scalar_lea.hbm %s0, %s168
          %s170 = sshll.u32 %s162, 4
          %s171 = int_to_ptr.vmem [resolvable:$true] %s170
          %176 = dma.hbm_to_vmem [thread:$0]  %s169, 1024, %s171, %s159, 128, 128, 8
        $region28: #{tpu_custom_call.1} parent=23 // pred_fallthru
          _
      $region24: #{tpu_custom_call.1} parent=5 // pred_fallthru
        _
      %p177 = scmp.le.s32.totalorder 1, %s16
      %p178 = scmp.lt.s32.totalorder %s16, 3
      %p179 = pnand %p177, %p178
      %p180 = pneg %p179
      // Predicated region
      $region29: #{tpu_custom_call.1} parent=5 // pred_check
        _
      $region30: #{tpu_custom_call.1} parent=5 // pred_check_branch
        %182 = sbr.rel (%p179) target = $region32
      $region31: #{tpu_custom_call.1} parent=5 // pred_region
        %s183 = ssub.s32 %s16, 1
        %s184 = sand.u32 %s29, 1
        %s185 = scalar_lea.sflag [#allocation3], %s184
        %s186 = sand.u32 %s29, 1
        %s187 = smul.addr %s186, 64
        %s188 = scalar_lea.vmem [#allocation2], %s187
        // Predicated region
        $region33: #{tpu_custom_call.1} parent=31 // pred_check
          %p189 = pneg %p42
        $region34: #{tpu_custom_call.1} parent=31 // pred_check_branch
          %191 = sbr.rel (%p189) target = $region36
        $region35: #{tpu_custom_call.1} parent=31 // pred_region
          %192 = dma.done %s185, 1024
        $region36: #{tpu_custom_call.1} parent=31 // pred_fallthru
          _
        // Predicated region
        $region37: #{tpu_custom_call.1} parent=31 // pred_check
          %p193 = pneg %p63
        $region38: #{tpu_custom_call.1} parent=31 // pred_check_branch
          %195 = sbr.rel (%p193) target = $region40
        $region39: #{tpu_custom_call.1} parent=31 // pred_region
          %196 = dma.done [#allocation6], 256
        $region40: #{tpu_custom_call.1} parent=31 // pred_fallthru
          _
        // Predicated region
        $region41: #{tpu_custom_call.1} parent=31 // pred_check
          %p197 = pneg %p84
        $region42: #{tpu_custom_call.1} parent=31 // pred_check_branch
          %199 = sbr.rel (%p197) target = $region44
        $region43: #{tpu_custom_call.1} parent=31 // pred_region
          %200 = dma.done [#allocation6], 256
        $region44: #{tpu_custom_call.1} parent=31 // pred_fallthru
          _
        %s201 = sand.u32 %s29, 1
        %s202 = scalar_lea.sflag [#allocation3], %s201
        %s203 = sand.u32 %s29, 1
        %s204 = smul.addr %s203, 64
        %s205 = scalar_lea.vmem [#allocation2], %s204
        %p206 = pneg %p42
        %p207 = pneg %p39
        %p208 = pneg %p63
        %p209 = pneg %p60
        %p210 = pneg %p84
        %p211 = pneg %p81
        %p212 = pneg %p110
        %p213 = pneg %p107
        %s214 = sand.u32 %s97, 1
        %s215 = scalar_lea.sflag [#allocation4], %s214
        %s216 = sand.u32 %s97, 1
        %s217 = smul.addr %s216, 64
        %s218 = scalar_lea.vmem [#allocation8], %s217
        %s219 = smul.u32 4, %s21
        %s220 = smul.u32 4, %s21
        %v221 = vld [vmem:[#allocation5] sm:$0xff]
        %v222 = vld [vmem:[#allocation5 + $0x8] sm:$0xff]
        %v223 = vld [vmem:[#allocation7] sm:$0xff]
        %v224 = vld [vmem:[#allocation7 + $0x8] sm:$0xff]
        %v225 = vld [vmem:[%s188] sm:$0xff]
        %v226 = vld [vmem:[%s188 + $0x8] sm:$0xff]
        %v227 = vld [vmem:[%s188 + $0x10] sm:$0xff]
        %v228 = vld [vmem:[%s188 + $0x18] sm:$0xff]
        %v229 = vld [vmem:[%s188 + $0x20] sm:$0xff]
        %v230 = vld [vmem:[%s188 + $0x28] sm:$0xff]
        %v231 = vld [vmem:[%s188 + $0x30] sm:$0xff]
        %v232 = vld [vmem:[%s188 + $0x38] sm:$0xff]
        %vm233 = vcmask 130048
        %v235 = vsel %vm233, %v225, 0
        %v238 = vsel %vm233, %v226, 0
        %v241 = vsel %vm233, %v227, 0
        %v244 = vsel %vm233, %v228, 0
        %v247 = vsel %vm233, %v229, 0
        %v250 = vsel %vm233, %v230, 0
        %v253 = vsel %vm233, %v231, 0
        %v256 = vsel %vm233, %v232, 0
        %258 = vmatprep.subr.mxu0 0.0
        %259 = vmatpush1.msra.mxu0 0.0
        %260 = vmatprep.subr.mxu0 0.0
        %261 = vmatpush1.msra.mxu0 0.0
        %262 = vmatprep.subr.mxu0 0.0
        %263 = vmatpush1.msra.mxu0 0.0
        %264 = vmatprep.subr.mxu0 0.0
        %265 = vmatpush1.msra.mxu0 0.0
        %266 = vmatprep.subr.mxu0 0.0
        %267 = vmatpush1.msra.mxu0 0.0
        %268 = vmatprep.subr.mxu0 0.0
        %269 = vmatpush1.msra.mxu0 0.0
        %270 = vmatprep.subr.mxu0 0.0
        %271 = vmatpush1.msra.mxu0 0.0
        %272 = vmatprep.subr.mxu0 0.0
        %273 = vmatpush1.msra.mxu0 0.0
        %274 = vmatprep.subr.mxu0 0.0
        %275 = vmatpush1.msra.mxu0 0.0
        %276 = vmatprep.subr.mxu0 0.0
        %277 = vmatpush1.msra.mxu0 0.0
        %278 = vmatprep.subr.mxu0 0.0
        %279 = vmatpush1.msra.mxu0 0.0
        %280 = vmatprep.subr.mxu0 0.0
        %281 = vmatpush1.msra.mxu0 0.0
        %282 = vmatprep.subr.mxu0 0.0
        %283 = vmatpush1.msra.mxu0 0.0
        %284 = vmatprep.subr.mxu0 0.0
        %285 = vmatpush1.msra.mxu0 0.0
        %286 = vmatprep.subr.mxu0 0.0
        %v287 = vand.u32 %v224, 4294901760
        %288 = vmatpush1.msra.mxu0 %v287
        %289 = vmatprep.subr.mxu0 0.0
        %v290 = vand.u32 %v223, 4294901760
        %291 = vmatpush1.msra.mxu0 %v290
        %292 = vmatprep.subr.mxu0 0.0
        %293 = vmatpush2.msra.mxu0 0.0
        %294 = vmatprep.subr.mxu0 0.0
        %295 = vmatpush2.msra.mxu0 0.0
        %296 = vmatprep.subr.mxu0 0.0
        %297 = vmatpush2.msra.mxu0 0.0
        %298 = vmatprep.subr.mxu0 0.0
        %299 = vmatpush2.msra.mxu0 0.0
        %300 = vmatprep.subr.mxu0 0.0
        %301 = vmatpush2.msra.mxu0 0.0
        %302 = vmatprep.subr.mxu0 0.0
        %303 = vmatpush2.msra.mxu0 0.0
        %304 = vmatprep.subr.mxu0 0.0
        %305 = vmatpush2.msra.mxu0 0.0
        %306 = vmatprep.subr.mxu0 0.0
        %307 = vmatpush2.msra.mxu0 0.0
        %308 = vmatprep.subr.mxu0 0.0
        %309 = vmatpush2.msra.mxu0 0.0
        %310 = vmatprep.subr.mxu0 0.0
        %311 = vmatpush2.msra.mxu0 0.0
        %312 = vmatprep.subr.mxu0 0.0
        %313 = vmatpush2.msra.mxu0 0.0
        %314 = vmatprep.subr.mxu0 0.0
        %315 = vmatpush2.msra.mxu0 0.0
        %316 = vmatprep.subr.mxu0 0.0
        %317 = vmatpush2.msra.mxu0 0.0
        %318 = vmatprep.subr.mxu0 0.0
        %319 = vmatpush2.msra.mxu0 0.0
        %320 = vmatprep.subr.mxu0 0.0
        %321 = vmatpush2.msra.mxu0 0.0
        %322 = vmatprep.subr.mxu0 0.0
        %323 = vmatpush2.msra.mxu0 0.0
        %324 = vmatprep.mubr.f32.mxu0 0.0
        %v325 = vand.u32 %v235, 4294901760
        %v326 = vsub.f32 %v235, %v325
        %v327 = vand.u32 %v326, 4294901760
        %v328 = vsub.f32 %v326, %v327
        %v329 = vand.u32 %v328, 4294901760
        %330 = vmatmul.mubr.f32.gmra.mxu0 %v329
        %v331 = vpop.f32.mrf.mxu0
        %v332 = vadd.f32 0.0, %v331
        %v333 = vpop.f32.mrf.mxu0
        %334 = vmatprep.mubr.f32.mxu0 0.0
        %v335 = vand.u32 %v238, 4294901760
        %v336 = vsub.f32 %v238, %v335
        %v337 = vand.u32 %v336, 4294901760
        %v338 = vsub.f32 %v336, %v337
        %v339 = vand.u32 %v338, 4294901760
        %340 = vmatmul.mubr.f32.gmra.mxu0 %v339
        %v341 = vpop.f32.mrf.mxu0
        %v342 = vadd.f32 0.0, %v341
        %v343 = vpop.f32.mrf.mxu0
        %344 = vmatprep.mubr.f32.mxu0 0.0
        %v345 = vand.u32 %v241, 4294901760
        %v346 = vsub.f32 %v241, %v345
        %v347 = vand.u32 %v346, 4294901760
        %v348 = vsub.f32 %v346, %v347
        %v349 = vand.u32 %v348, 4294901760
        %350 = vmatmul.mubr.f32.gmra.mxu0 %v349
        %v351 = vpop.f32.mrf.mxu0
        %v352 = vadd.f32 0.0, %v351
        %v353 = vpop.f32.mrf.mxu0
        %354 = vmatprep.mubr.f32.mxu0 0.0
        %v355 = vand.u32 %v244, 4294901760
        %v356 = vsub.f32 %v244, %v355
        %v357 = vand.u32 %v356, 4294901760
        %v358 = vsub.f32 %v356, %v357
        %v359 = vand.u32 %v358, 4294901760
        %360 = vmatmul.mubr.f32.gmra.mxu0 %v359
        %v361 = vpop.f32.mrf.mxu0
        %v362 = vadd.f32 0.0, %v361
        %v363 = vpop.f32.mrf.mxu0
        %364 = vmatprep.mubr.f32.mxu0 0.0
        %v365 = vand.u32 %v247, 4294901760
        %v366 = vsub.f32 %v247, %v365
        %v367 = vand.u32 %v366, 4294901760
        %v368 = vsub.f32 %v366, %v367
        %v369 = vand.u32 %v368, 4294901760
        %370 = vmatmul.mubr.f32.gmra.mxu0 %v369
        %v371 = vpop.f32.mrf.mxu0
        %v372 = vadd.f32 0.0, %v371
        %v373 = vpop.f32.mrf.mxu0
        %374 = vmatprep.mubr.f32.mxu0 0.0
        %v375 = vand.u32 %v250, 4294901760
        %v376 = vsub.f32 %v250, %v375
        %v377 = vand.u32 %v376, 4294901760
        %v378 = vsub.f32 %v376, %v377
        %v379 = vand.u32 %v378, 4294901760
        %380 = vmatmul.mubr.f32.gmra.mxu0 %v379
        %v381 = vpop.f32.mrf.mxu0
        %v382 = vadd.f32 0.0, %v381
        %v383 = vpop.f32.mrf.mxu0
        %384 = vmatprep.mubr.f32.mxu0 0.0
        %v385 = vand.u32 %v253, 4294901760
        %v386 = vsub.f32 %v253, %v385
        %v387 = vand.u32 %v386, 4294901760
        %v388 = vsub.f32 %v386, %v387
        %v389 = vand.u32 %v388, 4294901760
        %390 = vmatmul.mubr.f32.gmra.mxu0 %v389
        %v391 = vpop.f32.mrf.mxu0
        %v392 = vadd.f32 0.0, %v391
        %v393 = vpop.f32.mrf.mxu0
        %394 = vmatprep.mubr.f32.mxu0 0.0
        %v395 = vand.u32 %v256, 4294901760
        %v396 = vsub.f32 %v256, %v395
        %v397 = vand.u32 %v396, 4294901760
        %v398 = vsub.f32 %v396, %v397
        %v399 = vand.u32 %v398, 4294901760
        %400 = vmatmul.mubr.f32.gmra.mxu0 %v399
        %v401 = vpop.f32.mrf.mxu0
        %v402 = vadd.f32 0.0, %v401
        %v403 = vpop.f32.mrf.mxu0
        %404 = vdwg.mxu0
        %405 = vmatprep.subr.mxu0 0.0
        %406 = vmatpush1.msra.mxu0 0.0
        %407 = vmatprep.subr.mxu0 0.0
        %408 = vmatpush1.msra.mxu0 0.0
        %409 = vmatprep.subr.mxu0 0.0
        %410 = vmatpush1.msra.mxu0 0.0
        %411 = vmatprep.subr.mxu0 0.0
        %412 = vmatpush1.msra.mxu0 0.0
        %413 = vmatprep.subr.mxu0 0.0
        %414 = vmatpush1.msra.mxu0 0.0
        %415 = vmatprep.subr.mxu0 0.0
        %416 = vmatpush1.msra.mxu0 0.0
        %417 = vmatprep.subr.mxu0 0.0
        %418 = vmatpush1.msra.mxu0 0.0
        %419 = vmatprep.subr.mxu0 0.0
        %420 = vmatpush1.msra.mxu0 0.0
        %421 = vmatprep.subr.mxu0 0.0
        %422 = vmatpush1.msra.mxu0 0.0
        %423 = vmatprep.subr.mxu0 0.0
        %424 = vmatpush1.msra.mxu0 0.0
        %425 = vmatprep.subr.mxu0 0.0
        %426 = vmatpush1.msra.mxu0 0.0
        %427 = vmatprep.subr.mxu0 0.0
        %428 = vmatpush1.msra.mxu0 0.0
        %429 = vmatprep.subr.mxu0 0.0
        %430 = vmatpush1.msra.mxu0 0.0
        %431 = vmatprep.subr.mxu0 0.0
        %432 = vmatpush1.msra.mxu0 0.0
        %433 = vmatprep.subr.mxu0 0.0
        %v434 = vand.u32 %v224, 4294901760
        %v435 = vsub.f32 %v224, %v434
        %v436 = vand.u32 %v435, 4294901760
        %v437 = vsub.f32 %v435, %v436
        %v438 = vand.u32 %v437, 4294901760
        %439 = vmatpush1.msra.mxu0 %v438
        %440 = vmatprep.subr.mxu0 0.0
        %v441 = vand.u32 %v223, 4294901760
        %v442 = vsub.f32 %v223, %v441
        %v443 = vand.u32 %v442, 4294901760
        %v444 = vsub.f32 %v442, %v443
        %v445 = vand.u32 %v444, 4294901760
        %446 = vmatpush1.msra.mxu0 %v445
        %447 = vmatprep.subr.mxu0 0.0
        %448 = vmatpush2.msra.mxu0 0.0
        %449 = vmatprep.subr.mxu0 0.0
        %450 = vmatpush2.msra.mxu0 0.0
        %451 = vmatprep.subr.mxu0 0.0
        %452 = vmatpush2.msra.mxu0 0.0
        %453 = vmatprep.subr.mxu0 0.0
        %454 = vmatpush2.msra.mxu0 0.0
        %455 = vmatprep.subr.mxu0 0.0
        %456 = vmatpush2.msra.mxu0 0.0
        %457 = vmatprep.subr.mxu0 0.0
        %458 = vmatpush2.msra.mxu0 0.0
        %459 = vmatprep.subr.mxu0 0.0
        %460 = vmatpush2.msra.mxu0 0.0
        %461 = vmatprep.subr.mxu0 0.0
        %462 = vmatpush2.msra.mxu0 0.0
        %463 = vmatprep.subr.mxu0 0.0
        %464 = vmatpush2.msra.mxu0 0.0
        %465 = vmatprep.subr.mxu0 0.0
        %466 = vmatpush2.msra.mxu0 0.0
        %467 = vmatprep.subr.mxu0 0.0
        %468 = vmatpush2.msra.mxu0 0.0
        %469 = vmatprep.subr.mxu0 0.0
        %470 = vmatpush2.msra.mxu0 0.0
        %471 = vmatprep.subr.mxu0 0.0
        %472 = vmatpush2.msra.mxu0 0.0
        %473 = vmatprep.subr.mxu0 0.0
        %474 = vmatpush2.msra.mxu0 0.0
        %475 = vmatprep.subr.mxu0 0.0
        %476 = vmatpush2.msra.mxu0 0.0
        %477 = vmatprep.subr.mxu0 0.0
        %478 = vmatpush2.msra.mxu0 0.0
        %479 = vmatprep.mubr.f32.mxu0 0.0
        %v480 = vand.u32 %v235, 4294901760
        %481 = vmatmul.mubr.f32.gmra.mxu0 %v480
        %v482 = vpop.f32.mrf.mxu0
        %v483 = vadd.f32 %v332, %v482
        %v484 = vpop.f32.mrf.mxu0
        %485 = vmatprep.mubr.f32.mxu0 0.0
        %v486 = vand.u32 %v238, 4294901760
        %487 = vmatmul.mubr.f32.gmra.mxu0 %v486
        %v488 = vpop.f32.mrf.mxu0
        %v489 = vadd.f32 %v342, %v488
        %v490 = vpop.f32.mrf.mxu0
        %491 = vmatprep.mubr.f32.mxu0 0.0
        %v492 = vand.u32 %v241, 4294901760
        %493 = vmatmul.mubr.f32.gmra.mxu0 %v492
        %v494 = vpop.f32.mrf.mxu0
        %v495 = vadd.f32 %v352, %v494
        %v496 = vpop.f32.mrf.mxu0
        %497 = vmatprep.mubr.f32.mxu0 0.0
        %v498 = vand.u32 %v244, 4294901760
        %499 = vmatmul.mubr.f32.gmra.mxu0 %v498
        %v500 = vpop.f32.mrf.mxu0
        %v501 = vadd.f32 %v362, %v500
        %v502 = vpop.f32.mrf.mxu0
        %503 = vmatprep.mubr.f32.mxu0 0.0
        %v504 = vand.u32 %v247, 4294901760
        %505 = vmatmul.mubr.f32.gmra.mxu0 %v504
        %v506 = vpop.f32.mrf.mxu0
        %v507 = vadd.f32 %v372, %v506
        %v508 = vpop.f32.mrf.mxu0
        %509 = vmatprep.mubr.f32.mxu0 0.0
        %v510 = vand.u32 %v250, 4294901760
        %511 = vmatmul.mubr.f32.gmra.mxu0 %v510
        %v512 = vpop.f32.mrf.mxu0
        %v513 = vadd.f32 %v382, %v512
        %v514 = vpop.f32.mrf.mxu0
        %515 = vmatprep.mubr.f32.mxu0 0.0
        %v516 = vand.u32 %v253, 4294901760
        %517 = vmatmul.mubr.f32.gmra.mxu0 %v516
        %v518 = vpop.f32.mrf.mxu0
        %v519 = vadd.f32 %v392, %v518
        %v520 = vpop.f32.mrf.mxu0
        %521 = vmatprep.mubr.f32.mxu0 0.0
        %v522 = vand.u32 %v256, 4294901760
        %523 = vmatmul.mubr.f32.gmra.mxu0 %v522
        %v524 = vpop.f32.mrf.mxu0
        %v525 = vadd.f32 %v402, %v524
        %v526 = vpop.f32.mrf.mxu0
        %527 = vdwg.mxu0
        %528 = vmatprep.subr.mxu0 0.0
        %529 = vmatpush1.msra.mxu0 0.0
        %530 = vmatprep.subr.mxu0 0.0
        %531 = vmatpush1.msra.mxu0 0.0
        %532 = vmatprep.subr.mxu0 0.0
        %533 = vmatpush1.msra.mxu0 0.0
        %534 = vmatprep.subr.mxu0 0.0
        %535 = vmatpush1.msra.mxu0 0.0
        %536 = vmatprep.subr.mxu0 0.0
        %537 = vmatpush1.msra.mxu0 0.0
        %538 = vmatprep.subr.mxu0 0.0
        %539 = vmatpush1.msra.mxu0 0.0
        %540 = vmatprep.subr.mxu0 0.0
        %541 = vmatpush1.msra.mxu0 0.0
        %542 = vmatprep.subr.mxu0 0.0
        %543 = vmatpush1.msra.mxu0 0.0
        %544 = vmatprep.subr.mxu0 0.0
        %545 = vmatpush1.msra.mxu0 0.0
        %546 = vmatprep.subr.mxu0 0.0
        %547 = vmatpush1.msra.mxu0 0.0
        %548 = vmatprep.subr.mxu0 0.0
        %549 = vmatpush1.msra.mxu0 0.0
        %550 = vmatprep.subr.mxu0 0.0
        %551 = vmatpush1.msra.mxu0 0.0
        %552 = vmatprep.subr.mxu0 0.0
        %553 = vmatpush1.msra.mxu0 0.0
        %554 = vmatprep.subr.mxu0 0.0
        %555 = vmatpush1.msra.mxu0 0.0
        %556 = vmatprep.subr.mxu0 0.0
        %v557 = vand.u32 %v224, 4294901760
        %v558 = vsub.f32 %v224, %v557
        %559 = vmatpush1.msra.mxu0 %v558
        %560 = vmatprep.subr.mxu0 0.0
        %v561 = vand.u32 %v223, 4294901760
        %v562 = vsub.f32 %v223, %v561
        %563 = vmatpush1.msra.mxu0 %v562
        %564 = vmatprep.subr.mxu0 0.0
        %565 = vmatpush2.msra.mxu0 0.0
        %566 = vmatprep.subr.mxu0 0.0
        %567 = vmatpush2.msra.mxu0 0.0
        %568 = vmatprep.subr.mxu0 0.0
        %569 = vmatpush2.msra.mxu0 0.0
        %570 = vmatprep.subr.mxu0 0.0
        %571 = vmatpush2.msra.mxu0 0.0
        %572 = vmatprep.subr.mxu0 0.0
        %573 = vmatpush2.msra.mxu0 0.0
        %574 = vmatprep.subr.mxu0 0.0
        %575 = vmatpush2.msra.mxu0 0.0
        %576 = vmatprep.subr.mxu0 0.0
        %577 = vmatpush2.msra.mxu0 0.0
        %578 = vmatprep.subr.mxu0 0.0
        %579 = vmatpush2.msra.mxu0 0.0
        %580 = vmatprep.subr.mxu0 0.0
        %581 = vmatpush2.msra.mxu0 0.0
        %582 = vmatprep.subr.mxu0 0.0
        %583 = vmatpush2.msra.mxu0 0.0
        %584 = vmatprep.subr.mxu0 0.0
        %585 = vmatpush2.msra.mxu0 0.0
        %586 = vmatprep.subr.mxu0 0.0
        %587 = vmatpush2.msra.mxu0 0.0
        %588 = vmatprep.subr.mxu0 0.0
        %589 = vmatpush2.msra.mxu0 0.0
        %590 = vmatprep.subr.mxu0 0.0
        %591 = vmatpush2.msra.mxu0 0.0
        %592 = vmatprep.subr.mxu0 0.0
        %593 = vmatpush2.msra.mxu0 0.0
        %594 = vmatprep.subr.mxu0 0.0
        %595 = vmatpush2.msra.mxu0 0.0
        %596 = vmatprep.mubr.f32.mxu0 0.0
        %v597 = vand.u32 %v235, 4294901760
        %v598 = vsub.f32 %v235, %v597
        %599 = vmatmul.mubr.f32.gmra.mxu0 %v598
        %v600 = vpop.f32.mrf.mxu0
        %v601 = vadd.f32 %v483, %v600
        %v602 = vpop.f32.mrf.mxu0
        %603 = vmatprep.mubr.f32.mxu0 0.0
        %v604 = vand.u32 %v238, 4294901760
        %v605 = vsub.f32 %v238, %v604
        %606 = vmatmul.mubr.f32.gmra.mxu0 %v605
        %v607 = vpop.f32.mrf.mxu0
        %v608 = vadd.f32 %v489, %v607
        %v609 = vpop.f32.mrf.mxu0
        %610 = vmatprep.mubr.f32.mxu0 0.0
        %v611 = vand.u32 %v241, 4294901760
        %v612 = vsub.f32 %v241, %v611
        %613 = vmatmul.mubr.f32.gmra.mxu0 %v612
        %v614 = vpop.f32.mrf.mxu0
        %v615 = vadd.f32 %v495, %v614
        %v616 = vpop.f32.mrf.mxu0
        %617 = vmatprep.mubr.f32.mxu0 0.0
        %v618 = vand.u32 %v244, 4294901760
        %v619 = vsub.f32 %v244, %v618
        %620 = vmatmul.mubr.f32.gmra.mxu0 %v619
        %v621 = vpop.f32.mrf.mxu0
        %v622 = vadd.f32 %v501, %v621
        %v623 = vpop.f32.mrf.mxu0
        %624 = vmatprep.mubr.f32.mxu0 0.0
        %v625 = vand.u32 %v247, 4294901760
        %v626 = vsub.f32 %v247, %v625
        %627 = vmatmul.mubr.f32.gmra.mxu0 %v626
        %v628 = vpop.f32.mrf.mxu0
        %v629 = vadd.f32 %v507, %v628
        %v630 = vpop.f32.mrf.mxu0
        %631 = vmatprep.mubr.f32.mxu0 0.0
        %v632 = vand.u32 %v250, 4294901760
        %v633 = vsub.f32 %v250, %v632
        %634 = vmatmul.mubr.f32.gmra.mxu0 %v633
        %v635 = vpop.f32.mrf.mxu0
        %v636 = vadd.f32 %v513, %v635
        %v637 = vpop.f32.mrf.mxu0
        %638 = vmatprep.mubr.f32.mxu0 0.0
        %v639 = vand.u32 %v253, 4294901760
        %v640 = vsub.f32 %v253, %v639
        %641 = vmatmul.mubr.f32.gmra.mxu0 %v640
        %v642 = vpop.f32.mrf.mxu0
        %v643 = vadd.f32 %v519, %v642
        %v644 = vpop.f32.mrf.mxu0
        %645 = vmatprep.mubr.f32.mxu0 0.0
        %v646 = vand.u32 %v256, 4294901760
        %v647 = vsub.f32 %v256, %v646
        %648 = vmatmul.mubr.f32.gmra.mxu0 %v647
        %v649 = vpop.f32.mrf.mxu0
        %v650 = vadd.f32 %v525, %v649
        %v651 = vpop.f32.mrf.mxu0
        %652 = vdwg.mxu0
        %653 = vmatprep.subr.mxu0 0.0
        %654 = vmatpush1.msra.mxu0 0.0
        %655 = vmatprep.subr.mxu0 0.0
        %656 = vmatpush1.msra.mxu0 0.0
        %657 = vmatprep.subr.mxu0 0.0
        %658 = vmatpush1.msra.mxu0 0.0
        %659 = vmatprep.subr.mxu0 0.0
        %660 = vmatpush1.msra.mxu0 0.0
        %661 = vmatprep.subr.mxu0 0.0
        %662 = vmatpush1.msra.mxu0 0.0
        %663 = vmatprep.subr.mxu0 0.0
        %664 = vmatpush1.msra.mxu0 0.0
        %665 = vmatprep.subr.mxu0 0.0
        %666 = vmatpush1.msra.mxu0 0.0
        %667 = vmatprep.subr.mxu0 0.0
        %668 = vmatpush1.msra.mxu0 0.0
        %669 = vmatprep.subr.mxu0 0.0
        %670 = vmatpush1.msra.mxu0 0.0
        %671 = vmatprep.subr.mxu0 0.0
        %672 = vmatpush1.msra.mxu0 0.0
        %673 = vmatprep.subr.mxu0 0.0
        %674 = vmatpush1.msra.mxu0 0.0
        %675 = vmatprep.subr.mxu0 0.0
        %676 = vmatpush1.msra.mxu0 0.0
        %677 = vmatprep.subr.mxu0 0.0
        %678 = vmatpush1.msra.mxu0 0.0
        %679 = vmatprep.subr.mxu0 0.0
        %680 = vmatpush1.msra.mxu0 0.0
        %681 = vmatprep.subr.mxu0 0.0
        %v682 = vand.u32 %v224, 4294901760
        %683 = vmatpush1.msra.mxu0 %v682
        %684 = vmatprep.subr.mxu0 0.0
        %v685 = vand.u32 %v223, 4294901760
        %686 = vmatpush1.msra.mxu0 %v685
        %687 = vmatprep.subr.mxu0 0.0
        %688 = vmatpush2.msra.mxu0 0.0
        %689 = vmatprep.subr.mxu0 0.0
        %690 = vmatpush2.msra.mxu0 0.0
        %691 = vmatprep.subr.mxu0 0.0
        %692 = vmatpush2.msra.mxu0 0.0
        %693 = vmatprep.subr.mxu0 0.0
        %694 = vmatpush2.msra.mxu0 0.0
        %695 = vmatprep.subr.mxu0 0.0
        %696 = vmatpush2.msra.mxu0 0.0
        %697 = vmatprep.subr.mxu0 0.0
        %698 = vmatpush2.msra.mxu0 0.0
        %699 = vmatprep.subr.mxu0 0.0
        %700 = vmatpush2.msra.mxu0 0.0
        %701 = vmatprep.subr.mxu0 0.0
        %702 = vmatpush2.msra.mxu0 0.0
        %703 = vmatprep.subr.mxu0 0.0
        %704 = vmatpush2.msra.mxu0 0.0
        %705 = vmatprep.subr.mxu0 0.0
        %706 = vmatpush2.msra.mxu0 0.0
        %707 = vmatprep.subr.mxu0 0.0
        %708 = vmatpush2.msra.mxu0 0.0
        %709 = vmatprep.subr.mxu0 0.0
        %710 = vmatpush2.msra.mxu0 0.0
        %711 = vmatprep.subr.mxu0 0.0
        %712 = vmatpush2.msra.mxu0 0.0
        %713 = vmatprep.subr.mxu0 0.0
        %714 = vmatpush2.msra.mxu0 0.0
        %715 = vmatprep.subr.mxu0 0.0
        %716 = vmatpush2.msra.mxu0 0.0
        %717 = vmatprep.subr.mxu0 0.0
        %718 = vmatpush2.msra.mxu0 0.0
        %719 = vmatprep.mubr.f32.mxu0 0.0
        %v720 = vand.u32 %v235, 4294901760
        %v721 = vsub.f32 %v235, %v720
        %v722 = vand.u32 %v721, 4294901760
        %723 = vmatmul.mubr.f32.gmra.mxu0 %v722
        %v724 = vpop.f32.mrf.mxu0
        %v725 = vadd.f32 %v601, %v724
        %v726 = vpop.f32.mrf.mxu0
        %727 = vmatprep.mubr.f32.mxu0 0.0
        %v728 = vand.u32 %v238, 4294901760
        %v729 = vsub.f32 %v238, %v728
        %v730 = vand.u32 %v729, 4294901760
        %731 = vmatmul.mubr.f32.gmra.mxu0 %v730
        %v732 = vpop.f32.mrf.mxu0
        %v733 = vadd.f32 %v608, %v732
        %v734 = vpop.f32.mrf.mxu0
        %735 = vmatprep.mubr.f32.mxu0 0.0
        %v736 = vand.u32 %v241, 4294901760
        %v737 = vsub.f32 %v241, %v736
        %v738 = vand.u32 %v737, 4294901760
        %739 = vmatmul.mubr.f32.gmra.mxu0 %v738
        %v740 = vpop.f32.mrf.mxu0
        %v741 = vadd.f32 %v615, %v740
        %v742 = vpop.f32.mrf.mxu0
        %743 = vmatprep.mubr.f32.mxu0 0.0
        %v744 = vand.u32 %v244, 4294901760
        %v745 = vsub.f32 %v244, %v744
        %v746 = vand.u32 %v745, 4294901760
        %747 = vmatmul.mubr.f32.gmra.mxu0 %v746
        %v748 = vpop.f32.mrf.mxu0
        %v749 = vadd.f32 %v622, %v748
        %v750 = vpop.f32.mrf.mxu0
        %751 = vmatprep.mubr.f32.mxu0 0.0
        %v752 = vand.u32 %v247, 4294901760
        %v753 = vsub.f32 %v247, %v752
        %v754 = vand.u32 %v753, 4294901760
        %755 = vmatmul.mubr.f32.gmra.mxu0 %v754
        %v756 = vpop.f32.mrf.mxu0
        %v757 = vadd.f32 %v629, %v756
        %v758 = vpop.f32.mrf.mxu0
        %759 = vmatprep.mubr.f32.mxu0 0.0
        %v760 = vand.u32 %v250, 4294901760
        %v761 = vsub.f32 %v250, %v760
        %v762 = vand.u32 %v761, 4294901760
        %763 = vmatmul.mubr.f32.gmra.mxu0 %v762
        %v764 = vpop.f32.mrf.mxu0
        %v765 = vadd.f32 %v636, %v764
        %v766 = vpop.f32.mrf.mxu0
        %767 = vmatprep.mubr.f32.mxu0 0.0
        %v768 = vand.u32 %v253, 4294901760
        %v769 = vsub.f32 %v253, %v768
        %v770 = vand.u32 %v769, 4294901760
        %771 = vmatmul.mubr.f32.gmra.mxu0 %v770
        %v772 = vpop.f32.mrf.mxu0
        %v773 = vadd.f32 %v643, %v772
        %v774 = vpop.f32.mrf.mxu0
        %775 = vmatprep.mubr.f32.mxu0 0.0
        %v776 = vand.u32 %v256, 4294901760
        %v777 = vsub.f32 %v256, %v776
        %v778 = vand.u32 %v777, 4294901760
        %779 = vmatmul.mubr.f32.gmra.mxu0 %v778
        %v780 = vpop.f32.mrf.mxu0
        %v781 = vadd.f32 %v650, %v780
        %v782 = vpop.f32.mrf.mxu0
        %783 = vdwg.mxu0
        %784 = vmatprep.subr.mxu0 0.0
        %785 = vmatpush1.msra.mxu0 0.0
        %786 = vmatprep.subr.mxu0 0.0
        %787 = vmatpush1.msra.mxu0 0.0
        %788 = vmatprep.subr.mxu0 0.0
        %789 = vmatpush1.msra.mxu0 0.0
        %790 = vmatprep.subr.mxu0 0.0
        %791 = vmatpush1.msra.mxu0 0.0
        %792 = vmatprep.subr.mxu0 0.0
        %793 = vmatpush1.msra.mxu0 0.0
        %794 = vmatprep.subr.mxu0 0.0
        %795 = vmatpush1.msra.mxu0 0.0
        %796 = vmatprep.subr.mxu0 0.0
        %797 = vmatpush1.msra.mxu0 0.0
        %798 = vmatprep.subr.mxu0 0.0
        %799 = vmatpush1.msra.mxu0 0.0
        %800 = vmatprep.subr.mxu0 0.0
        %801 = vmatpush1.msra.mxu0 0.0
        %802 = vmatprep.subr.mxu0 0.0
        %803 = vmatpush1.msra.mxu0 0.0
        %804 = vmatprep.subr.mxu0 0.0
        %805 = vmatpush1.msra.mxu0 0.0
        %806 = vmatprep.subr.mxu0 0.0
        %807 = vmatpush1.msra.mxu0 0.0
        %808 = vmatprep.subr.mxu0 0.0
        %809 = vmatpush1.msra.mxu0 0.0
        %810 = vmatprep.subr.mxu0 0.0
        %811 = vmatpush1.msra.mxu0 0.0
        %812 = vmatprep.subr.mxu0 0.0
        %v813 = vand.u32 %v224, 4294901760
        %v814 = vsub.f32 %v224, %v813
        %v815 = vand.u32 %v814, 4294901760
        %816 = vmatpush1.msra.mxu0 %v815
        %817 = vmatprep.subr.mxu0 0.0
        %v818 = vand.u32 %v223, 4294901760
        %v819 = vsub.f32 %v223, %v818
        %v820 = vand.u32 %v819, 4294901760
        %821 = vmatpush1.msra.mxu0 %v820
        %822 = vmatprep.subr.mxu0 0.0
        %823 = vmatpush2.msra.mxu0 0.0
        %824 = vmatprep.subr.mxu0 0.0
        %825 = vmatpush2.msra.mxu0 0.0
        %826 = vmatprep.subr.mxu0 0.0
        %827 = vmatpush2.msra.mxu0 0.0
        %828 = vmatprep.subr.mxu0 0.0
        %829 = vmatpush2.msra.mxu0 0.0
        %830 = vmatprep.subr.mxu0 0.0
        %831 = vmatpush2.msra.mxu0 0.0
        %832 = vmatprep.subr.mxu0 0.0
        %833 = vmatpush2.msra.mxu0 0.0
        %834 = vmatprep.subr.mxu0 0.0
        %835 = vmatpush2.msra.mxu0 0.0
        %836 = vmatprep.subr.mxu0 0.0
        %837 = vmatpush2.msra.mxu0 0.0
        %838 = vmatprep.subr.mxu0 0.0
        %839 = vmatpush2.msra.mxu0 0.0
        %840 = vmatprep.subr.mxu0 0.0
        %841 = vmatpush2.msra.mxu0 0.0
        %842 = vmatprep.subr.mxu0 0.0
        %843 = vmatpush2.msra.mxu0 0.0
        %844 = vmatprep.subr.mxu0 0.0
        %845 = vmatpush2.msra.mxu0 0.0
        %846 = vmatprep.subr.mxu0 0.0
        %847 = vmatpush2.msra.mxu0 0.0
        %848 = vmatprep.subr.mxu0 0.0
        %849 = vmatpush2.msra.mxu0 0.0
        %850 = vmatprep.subr.mxu0 0.0
        %851 = vmatpush2.msra.mxu0 0.0
        %852 = vmatprep.subr.mxu0 0.0
        %853 = vmatpush2.msra.mxu0 0.0
        %854 = vmatprep.mubr.f32.mxu0 0.0
        %v855 = vand.u32 %v235, 4294901760
        %856 = vmatmul.mubr.f32.gmra.mxu0 %v855
        %v857 = vpop.f32.mrf.mxu0
        %v858 = vadd.f32 %v725, %v857
        %v859 = vpop.f32.mrf.mxu0
        %860 = vmatprep.mubr.f32.mxu0 0.0
        %v861 = vand.u32 %v238, 4294901760
        %862 = vmatmul.mubr.f32.gmra.mxu0 %v861
        %v863 = vpop.f32.mrf.mxu0
        %v864 = vadd.f32 %v733, %v863
        %v865 = vpop.f32.mrf.mxu0
        %866 = vmatprep.mubr.f32.mxu0 0.0
        %v867 = vand.u32 %v241, 4294901760
        %868 = vmatmul.mubr.f32.gmra.mxu0 %v867
        %v869 = vpop.f32.mrf.mxu0
        %v870 = vadd.f32 %v741, %v869
        %v871 = vpop.f32.mrf.mxu0
        %872 = vmatprep.mubr.f32.mxu0 0.0
        %v873 = vand.u32 %v244, 4294901760
        %874 = vmatmul.mubr.f32.gmra.mxu0 %v873
        %v875 = vpop.f32.mrf.mxu0
        %v876 = vadd.f32 %v749, %v875
        %v877 = vpop.f32.mrf.mxu0
        %878 = vmatprep.mubr.f32.mxu0 0.0
        %v879 = vand.u32 %v247, 4294901760
        %880 = vmatmul.mubr.f32.gmra.mxu0 %v879
        %v881 = vpop.f32.mrf.mxu0
        %v882 = vadd.f32 %v757, %v881
        %v883 = vpop.f32.mrf.mxu0
        %884 = vmatprep.mubr.f32.mxu0 0.0
        %v885 = vand.u32 %v250, 4294901760
        %886 = vmatmul.mubr.f32.gmra.mxu0 %v885
        %v887 = vpop.f32.mrf.mxu0
        %v888 = vadd.f32 %v765, %v887
        %v889 = vpop.f32.mrf.mxu0
        %890 = vmatprep.mubr.f32.mxu0 0.0
        %v891 = vand.u32 %v253, 4294901760
        %892 = vmatmul.mubr.f32.gmra.mxu0 %v891
        %v893 = vpop.f32.mrf.mxu0
        %v894 = vadd.f32 %v773, %v893
        %v895 = vpop.f32.mrf.mxu0
        %896 = vmatprep.mubr.f32.mxu0 0.0
        %v897 = vand.u32 %v256, 4294901760
        %898 = vmatmul.mubr.f32.gmra.mxu0 %v897
        %v899 = vpop.f32.mrf.mxu0
        %v900 = vadd.f32 %v781, %v899
        %v901 = vpop.f32.mrf.mxu0
        %902 = vdwg.mxu0
        %903 = vmatprep.subr.mxu0 0.0
        %904 = vmatpush1.msra.mxu0 0.0
        %905 = vmatprep.subr.mxu0 0.0
        %906 = vmatpush1.msra.mxu0 0.0
        %907 = vmatprep.subr.mxu0 0.0
        %908 = vmatpush1.msra.mxu0 0.0
        %909 = vmatprep.subr.mxu0 0.0
        %910 = vmatpush1.msra.mxu0 0.0
        %911 = vmatprep.subr.mxu0 0.0
        %912 = vmatpush1.msra.mxu0 0.0
        %913 = vmatprep.subr.mxu0 0.0
        %914 = vmatpush1.msra.mxu0 0.0
        %915 = vmatprep.subr.mxu0 0.0
        %916 = vmatpush1.msra.mxu0 0.0
        %917 = vmatprep.subr.mxu0 0.0
        %918 = vmatpush1.msra.mxu0 0.0
        %919 = vmatprep.subr.mxu0 0.0
        %920 = vmatpush1.msra.mxu0 0.0
        %921 = vmatprep.subr.mxu0 0.0
        %922 = vmatpush1.msra.mxu0 0.0
        %923 = vmatprep.subr.mxu0 0.0
        %924 = vmatpush1.msra.mxu0 0.0
        %925 = vmatprep.subr.mxu0 0.0
        %926 = vmatpush1.msra.mxu0 0.0
        %927 = vmatprep.subr.mxu0 0.0
        %928 = vmatpush1.msra.mxu0 0.0
        %929 = vmatprep.subr.mxu0 0.0
        %930 = vmatpush1.msra.mxu0 0.0
        %931 = vmatprep.subr.mxu0 0.0
        %v932 = vand.u32 %v224, 4294901760
        %933 = vmatpush1.msra.mxu0 %v932
        %934 = vmatprep.subr.mxu0 0.0
        %v935 = vand.u32 %v223, 4294901760
        %936 = vmatpush1.msra.mxu0 %v935
        %937 = vmatprep.subr.mxu0 0.0
        %938 = vmatpush2.msra.mxu0 0.0
        %939 = vmatprep.subr.mxu0 0.0
        %940 = vmatpush2.msra.mxu0 0.0
        %941 = vmatprep.subr.mxu0 0.0
        %942 = vmatpush2.msra.mxu0 0.0
        %943 = vmatprep.subr.mxu0 0.0
        %944 = vmatpush2.msra.mxu0 0.0
        %945 = vmatprep.subr.mxu0 0.0
        %946 = vmatpush2.msra.mxu0 0.0
        %947 = vmatprep.subr.mxu0 0.0
        %948 = vmatpush2.msra.mxu0 0.0
        %949 = vmatprep.subr.mxu0 0.0
        %950 = vmatpush2.msra.mxu0 0.0
        %951 = vmatprep.subr.mxu0 0.0
        %952 = vmatpush2.msra.mxu0 0.0
        %953 = vmatprep.subr.mxu0 0.0
        %954 = vmatpush2.msra.mxu0 0.0
        %955 = vmatprep.subr.mxu0 0.0
        %956 = vmatpush2.msra.mxu0 0.0
        %957 = vmatprep.subr.mxu0 0.0
        %958 = vmatpush2.msra.mxu0 0.0
        %959 = vmatprep.subr.mxu0 0.0
        %960 = vmatpush2.msra.mxu0 0.0
        %961 = vmatprep.subr.mxu0 0.0
        %962 = vmatpush2.msra.mxu0 0.0
        %963 = vmatprep.subr.mxu0 0.0
        %964 = vmatpush2.msra.mxu0 0.0
        %965 = vmatprep.subr.mxu0 0.0
        %966 = vmatpush2.msra.mxu0 0.0
        %967 = vmatprep.subr.mxu0 0.0
        %968 = vmatpush2.msra.mxu0 0.0
        %969 = vmatprep.mubr.f32.mxu0 0.0
        %v970 = vand.u32 %v235, 4294901760
        %971 = vmatmul.mubr.f32.gmra.mxu0 %v970
        %v972 = vpop.f32.mrf.mxu0
        %v973 = vadd.f32 %v858, %v972
        %v974 = vpop.f32.mrf.mxu0
        %975 = vmatprep.mubr.f32.mxu0 0.0
        %v976 = vand.u32 %v238, 4294901760
        %977 = vmatmul.mubr.f32.gmra.mxu0 %v976
        %v978 = vpop.f32.mrf.mxu0
        %v979 = vadd.f32 %v864, %v978
        %v980 = vpop.f32.mrf.mxu0
        %981 = vmatprep.mubr.f32.mxu0 0.0
        %v982 = vand.u32 %v241, 4294901760
        %983 = vmatmul.mubr.f32.gmra.mxu0 %v982
        %v984 = vpop.f32.mrf.mxu0
        %v985 = vadd.f32 %v870, %v984
        %v986 = vpop.f32.mrf.mxu0
        %987 = vmatprep.mubr.f32.mxu0 0.0
        %v988 = vand.u32 %v244, 4294901760
        %989 = vmatmul.mubr.f32.gmra.mxu0 %v988
        %v990 = vpop.f32.mrf.mxu0
        %v991 = vadd.f32 %v876, %v990
        %v992 = vpop.f32.mrf.mxu0
        %993 = vmatprep.mubr.f32.mxu0 0.0
        %v994 = vand.u32 %v247, 4294901760
        %995 = vmatmul.mubr.f32.gmra.mxu0 %v994
        %v996 = vpop.f32.mrf.mxu0
        %v997 = vadd.f32 %v882, %v996
        %v998 = vpop.f32.mrf.mxu0
        %999 = vmatprep.mubr.f32.mxu0 0.0
        %v1000 = vand.u32 %v250, 4294901760
        %1001 = vmatmul.mubr.f32.gmra.mxu0 %v1000
        %v1002 = vpop.f32.mrf.mxu0
        %v1003 = vadd.f32 %v888, %v1002
        %v1004 = vpop.f32.mrf.mxu0
        %1005 = vmatprep.mubr.f32.mxu0 0.0
        %v1006 = vand.u32 %v253, 4294901760
        %1007 = vmatmul.mubr.f32.gmra.mxu0 %v1006
        %v1008 = vpop.f32.mrf.mxu0
        %v1009 = vadd.f32 %v894, %v1008
        %v1010 = vpop.f32.mrf.mxu0
        %1011 = vmatprep.mubr.f32.mxu0 0.0
        %v1012 = vand.u32 %v256, 4294901760
        %1013 = vmatmul.mubr.f32.gmra.mxu0 %v1012
        %v1014 = vpop.f32.mrf.mxu0
        %v1015 = vadd.f32 %v900, %v1014
        %v1016 = vpop.f32.mrf.mxu0
        %1017 = vdwg.mxu0
        %1018 = vst.msk [vmem:[%s218] sm:$0xff] %vm233, %v973
        %1019 = vst.msk [vmem:[%s218 + $0x8] sm:$0xff] %vm233, %v979
        %1020 = vst.msk [vmem:[%s218 + $0x10] sm:$0xff] %vm233, %v985
        %1021 = vst.msk [vmem:[%s218 + $0x18] sm:$0xff] %vm233, %v991
        %1022 = vst.msk [vmem:[%s218 + $0x20] sm:$0xff] %vm233, %v997
        %1023 = vst.msk [vmem:[%s218 + $0x28] sm:$0xff] %vm233, %v1003
        %1024 = vst.msk [vmem:[%s218 + $0x30] sm:$0xff] %vm233, %v1009
        %1025 = vst.msk [vmem:[%s218 + $0x38] sm:$0xff] %vm233, %v1015
        %v1026 = vld [vmem:[%s218] sm:$0xff]
        %v1027 = vld [vmem:[%s218 + $0x8] sm:$0xff]
        %v1029 = vsel %vm233, %v221, 0
        %v1032 = vsel %vm233, %v222, 0
        %1034 = vmatprep.subr.mxu0 0.0
        %1035 = vmatpush1.msra.mxu0 0.0
        %1036 = vmatprep.subr.mxu0 0.0
        %1037 = vmatpush1.msra.mxu0 0.0
        %1038 = vmatprep.subr.mxu0 0.0
        %1039 = vmatpush1.msra.mxu0 0.0
        %1040 = vmatprep.subr.mxu0 0.0
        %1041 = vmatpush1.msra.mxu0 0.0
        %1042 = vmatprep.subr.mxu0 0.0
        %1043 = vmatpush1.msra.mxu0 0.0
        %1044 = vmatprep.subr.mxu0 0.0
        %1045 = vmatpush1.msra.mxu0 0.0
        %1046 = vmatprep.subr.mxu0 0.0
        %1047 = vmatpush1.msra.mxu0 0.0
        %1048 = vmatprep.subr.mxu0 0.0
        %1049 = vmatpush1.msra.mxu0 0.0
        %1050 = vmatprep.subr.mxu0 0.0
        %1051 = vmatpush1.msra.mxu0 0.0
        %1052 = vmatprep.subr.mxu0 0.0
        %1053 = vmatpush1.msra.mxu0 0.0
        %1054 = vmatprep.subr.mxu0 0.0
        %1055 = vmatpush1.msra.mxu0 0.0
        %1056 = vmatprep.subr.mxu0 0.0
        %1057 = vmatpush1.msra.mxu0 0.0
        %1058 = vmatprep.subr.mxu0 0.0
        %1059 = vmatpush1.msra.mxu0 0.0
        %1060 = vmatprep.subr.mxu0 0.0
        %1061 = vmatpush1.msra.mxu0 0.0
        %1062 = vmatprep.subr.mxu0 0.0
        %v1063 = vand.u32 %v1027, 4294901760
        %1064 = vmatpush1.msra.mxu0 %v1063
        %1065 = vmatprep.subr.mxu0 0.0
        %v1066 = vand.u32 %v1026, 4294901760
        %1067 = vmatpush1.msra.mxu0 %v1066
        %1068 = vmatprep.subr.mxu0 0.0
        %1069 = vmatpush2.msra.mxu0 0.0
        %1070 = vmatprep.subr.mxu0 0.0
        %1071 = vmatpush2.msra.mxu0 0.0
        %1072 = vmatprep.subr.mxu0 0.0
        %1073 = vmatpush2.msra.mxu0 0.0
        %1074 = vmatprep.subr.mxu0 0.0
        %1075 = vmatpush2.msra.mxu0 0.0
        %1076 = vmatprep.subr.mxu0 0.0
        %1077 = vmatpush2.msra.mxu0 0.0
        %1078 = vmatprep.subr.mxu0 0.0
        %1079 = vmatpush2.msra.mxu0 0.0
        %1080 = vmatprep.subr.mxu0 0.0
        %1081 = vmatpush2.msra.mxu0 0.0
        %1082 = vmatprep.subr.mxu0 0.0
        %1083 = vmatpush2.msra.mxu0 0.0
        %1084 = vmatprep.subr.mxu0 0.0
        %1085 = vmatpush2.msra.mxu0 0.0
        %1086 = vmatprep.subr.mxu0 0.0
        %1087 = vmatpush2.msra.mxu0 0.0
        %1088 = vmatprep.subr.mxu0 0.0
        %1089 = vmatpush2.msra.mxu0 0.0
        %1090 = vmatprep.subr.mxu0 0.0
        %1091 = vmatpush2.msra.mxu0 0.0
        %1092 = vmatprep.subr.mxu0 0.0
        %1093 = vmatpush2.msra.mxu0 0.0
        %1094 = vmatprep.subr.mxu0 0.0
        %1095 = vmatpush2.msra.mxu0 0.0
        %1096 = vmatprep.subr.mxu0 0.0
        %1097 = vmatpush2.msra.mxu0 0.0
        %1098 = vmatprep.subr.mxu0 0.0
        %1099 = vmatpush2.msra.mxu0 0.0
        %1100 = vmatprep.mubr.f32.mxu0 0.0
        %v1101 = vand.u32 %v1029, 4294901760
        %v1102 = vsub.f32 %v1029, %v1101
        %v1103 = vand.u32 %v1102, 4294901760
        %v1104 = vsub.f32 %v1102, %v1103
        %v1105 = vand.u32 %v1104, 4294901760
        %1106 = vmatmul.mubr.f32.gmra.mxu0 %v1105
        %v1107 = vpop.f32.mrf.mxu0
        %v1108 = vadd.f32 0.0, %v1107
        %v1109 = vpop.f32.mrf.mxu0
        %1110 = vmatprep.mubr.f32.mxu0 0.0
        %v1111 = vand.u32 %v1032, 4294901760
        %v1112 = vsub.f32 %v1032, %v1111
        %v1113 = vand.u32 %v1112, 4294901760
        %v1114 = vsub.f32 %v1112, %v1113
        %v1115 = vand.u32 %v1114, 4294901760
        %1116 = vmatmul.mubr.f32.gmra.mxu0 %v1115
        %v1117 = vpop.f32.mrf.mxu0
        %v1118 = vadd.f32 0.0, %v1117
        %v1119 = vpop.f32.mrf.mxu0
        %1120 = vdwg.mxu0
        %1121 = vmatprep.subr.mxu0 0.0
        %1122 = vmatpush1.msra.mxu0 0.0
        %1123 = vmatprep.subr.mxu0 0.0
        %1124 = vmatpush1.msra.mxu0 0.0
        %1125 = vmatprep.subr.mxu0 0.0
        %1126 = vmatpush1.msra.mxu0 0.0
        %1127 = vmatprep.subr.mxu0 0.0
        %1128 = vmatpush1.msra.mxu0 0.0
        %1129 = vmatprep.subr.mxu0 0.0
        %1130 = vmatpush1.msra.mxu0 0.0
        %1131 = vmatprep.subr.mxu0 0.0
        %1132 = vmatpush1.msra.mxu0 0.0
        %1133 = vmatprep.subr.mxu0 0.0
        %1134 = vmatpush1.msra.mxu0 0.0
        %1135 = vmatprep.subr.mxu0 0.0
        %1136 = vmatpush1.msra.mxu0 0.0
        %1137 = vmatprep.subr.mxu0 0.0
        %1138 = vmatpush1.msra.mxu0 0.0
        %1139 = vmatprep.subr.mxu0 0.0
        %1140 = vmatpush1.msra.mxu0 0.0
        %1141 = vmatprep.subr.mxu0 0.0
        %1142 = vmatpush1.msra.mxu0 0.0
        %1143 = vmatprep.subr.mxu0 0.0
        %1144 = vmatpush1.msra.mxu0 0.0
        %1145 = vmatprep.subr.mxu0 0.0
        %1146 = vmatpush1.msra.mxu0 0.0
        %1147 = vmatprep.subr.mxu0 0.0
        %1148 = vmatpush1.msra.mxu0 0.0
        %1149 = vmatprep.subr.mxu0 0.0
        %v1150 = vand.u32 %v1027, 4294901760
        %v1151 = vsub.f32 %v1027, %v1150
        %v1152 = vand.u32 %v1151, 4294901760
        %v1153 = vsub.f32 %v1151, %v1152
        %v1154 = vand.u32 %v1153, 4294901760
        %1155 = vmatpush1.msra.mxu0 %v1154
        %1156 = vmatprep.subr.mxu0 0.0
        %v1157 = vand.u32 %v1026, 4294901760
        %v1158 = vsub.f32 %v1026, %v1157
        %v1159 = vand.u32 %v1158, 4294901760
        %v1160 = vsub.f32 %v1158, %v1159
        %v1161 = vand.u32 %v1160, 4294901760
        %1162 = vmatpush1.msra.mxu0 %v1161
        %1163 = vmatprep.subr.mxu0 0.0
        %1164 = vmatpush2.msra.mxu0 0.0
        %1165 = vmatprep.subr.mxu0 0.0
        %1166 = vmatpush2.msra.mxu0 0.0
        %1167 = vmatprep.subr.mxu0 0.0
        %1168 = vmatpush2.msra.mxu0 0.0
        %1169 = vmatprep.subr.mxu0 0.0
        %1170 = vmatpush2.msra.mxu0 0.0
        %1171 = vmatprep.subr.mxu0 0.0
        %1172 = vmatpush2.msra.mxu0 0.0
        %1173 = vmatprep.subr.mxu0 0.0
        %1174 = vmatpush2.msra.mxu0 0.0
        %1175 = vmatprep.subr.mxu0 0.0
        %1176 = vmatpush2.msra.mxu0 0.0
        %1177 = vmatprep.subr.mxu0 0.0
        %1178 = vmatpush2.msra.mxu0 0.0
        %1179 = vmatprep.subr.mxu0 0.0
        %1180 = vmatpush2.msra.mxu0 0.0
        %1181 = vmatprep.subr.mxu0 0.0
        %1182 = vmatpush2.msra.mxu0 0.0
        %1183 = vmatprep.subr.mxu0 0.0
        %1184 = vmatpush2.msra.mxu0 0.0
        %1185 = vmatprep.subr.mxu0 0.0
        %1186 = vmatpush2.msra.mxu0 0.0
        %1187 = vmatprep.subr.mxu0 0.0
        %1188 = vmatpush2.msra.mxu0 0.0
        %1189 = vmatprep.subr.mxu0 0.0
        %1190 = vmatpush2.msra.mxu0 0.0
        %1191 = vmatprep.subr.mxu0 0.0
        %1192 = vmatpush2.msra.mxu0 0.0
        %1193 = vmatprep.subr.mxu0 0.0
        %1194 = vmatpush2.msra.mxu0 0.0
        %1195 = vmatprep.mubr.f32.mxu0 0.0
        %v1196 = vand.u32 %v1029, 4294901760
        %1197 = vmatmul.mubr.f32.gmra.mxu0 %v1196
        %v1198 = vpop.f32.mrf.mxu0
        %v1199 = vadd.f32 %v1108, %v1198
        %v1200 = vpop.f32.mrf.mxu0
        %1201 = vmatprep.mubr.f32.mxu0 0.0
        %v1202 = vand.u32 %v1032, 4294901760
        %1203 = vmatmul.mubr.f32.gmra.mxu0 %v1202
        %v1204 = vpop.f32.mrf.mxu0
        %v1205 = vadd.f32 %v1118, %v1204
        %v1206 = vpop.f32.mrf.mxu0
        %1207 = vdwg.mxu0
        %1208 = vmatprep.subr.mxu0 0.0
        %1209 = vmatpush1.msra.mxu0 0.0
        %1210 = vmatprep.subr.mxu0 0.0
        %1211 = vmatpush1.msra.mxu0 0.0
        %1212 = vmatprep.subr.mxu0 0.0
        %1213 = vmatpush1.msra.mxu0 0.0
        %1214 = vmatprep.subr.mxu0 0.0
        %1215 = vmatpush1.msra.mxu0 0.0
        %1216 = vmatprep.subr.mxu0 0.0
        %1217 = vmatpush1.msra.mxu0 0.0
        %1218 = vmatprep.subr.mxu0 0.0
        %1219 = vmatpush1.msra.mxu0 0.0
        %1220 = vmatprep.subr.mxu0 0.0
        %1221 = vmatpush1.msra.mxu0 0.0
        %1222 = vmatprep.subr.mxu0 0.0
        %1223 = vmatpush1.msra.mxu0 0.0
        %1224 = vmatprep.subr.mxu0 0.0
        %1225 = vmatpush1.msra.mxu0 0.0
        %1226 = vmatprep.subr.mxu0 0.0
        %1227 = vmatpush1.msra.mxu0 0.0
        %1228 = vmatprep.subr.mxu0 0.0
        %1229 = vmatpush1.msra.mxu0 0.0
        %1230 = vmatprep.subr.mxu0 0.0
        %1231 = vmatpush1.msra.mxu0 0.0
        %1232 = vmatprep.subr.mxu0 0.0
        %1233 = vmatpush1.msra.mxu0 0.0
        %1234 = vmatprep.subr.mxu0 0.0
        %1235 = vmatpush1.msra.mxu0 0.0
        %1236 = vmatprep.subr.mxu0 0.0
        %v1237 = vand.u32 %v1027, 4294901760
        %v1238 = vsub.f32 %v1027, %v1237
        %1239 = vmatpush1.msra.mxu0 %v1238
        %1240 = vmatprep.subr.mxu0 0.0
        %v1241 = vand.u32 %v1026, 4294901760
        %v1242 = vsub.f32 %v1026, %v1241
        %1243 = vmatpush1.msra.mxu0 %v1242
        %1244 = vmatprep.subr.mxu0 0.0
        %1245 = vmatpush2.msra.mxu0 0.0
        %1246 = vmatprep.subr.mxu0 0.0
        %1247 = vmatpush2.msra.mxu0 0.0
        %1248 = vmatprep.subr.mxu0 0.0
        %1249 = vmatpush2.msra.mxu0 0.0
        %1250 = vmatprep.subr.mxu0 0.0
        %1251 = vmatpush2.msra.mxu0 0.0
        %1252 = vmatprep.subr.mxu0 0.0
        %1253 = vmatpush2.msra.mxu0 0.0
        %1254 = vmatprep.subr.mxu0 0.0
        %1255 = vmatpush2.msra.mxu0 0.0
        %1256 = vmatprep.subr.mxu0 0.0
        %1257 = vmatpush2.msra.mxu0 0.0
        %1258 = vmatprep.subr.mxu0 0.0
        %1259 = vmatpush2.msra.mxu0 0.0
        %1260 = vmatprep.subr.mxu0 0.0
        %1261 = vmatpush2.msra.mxu0 0.0
        %1262 = vmatprep.subr.mxu0 0.0
        %1263 = vmatpush2.msra.mxu0 0.0
        %1264 = vmatprep.subr.mxu0 0.0
        %1265 = vmatpush2.msra.mxu0 0.0
        %1266 = vmatprep.subr.mxu0 0.0
        %1267 = vmatpush2.msra.mxu0 0.0
        %1268 = vmatprep.subr.mxu0 0.0
        %1269 = vmatpush2.msra.mxu0 0.0
        %1270 = vmatprep.subr.mxu0 0.0
        %1271 = vmatpush2.msra.mxu0 0.0
        %1272 = vmatprep.subr.mxu0 0.0
        %1273 = vmatpush2.msra.mxu0 0.0
        %1274 = vmatprep.subr.mxu0 0.0
        %1275 = vmatpush2.msra.mxu0 0.0
        %1276 = vmatprep.mubr.f32.mxu0 0.0
        %v1277 = vand.u32 %v1029, 4294901760
        %v1278 = vsub.f32 %v1029, %v1277
        %1279 = vmatmul.mubr.f32.gmra.mxu0 %v1278
        %v1280 = vpop.f32.mrf.mxu0
        %v1281 = vadd.f32 %v1199, %v1280
        %v1282 = vpop.f32.mrf.mxu0
        %1283 = vmatprep.mubr.f32.mxu0 0.0
        %v1284 = vand.u32 %v1032, 4294901760
        %v1285 = vsub.f32 %v1032, %v1284
        %1286 = vmatmul.mubr.f32.gmra.mxu0 %v1285
        %v1287 = vpop.f32.mrf.mxu0
        %v1288 = vadd.f32 %v1205, %v1287
        %v1289 = vpop.f32.mrf.mxu0
        %1290 = vdwg.mxu0
        %1291 = vmatprep.subr.mxu0 0.0
        %1292 = vmatpush1.msra.mxu0 0.0
        %1293 = vmatprep.subr.mxu0 0.0
        %1294 = vmatpush1.msra.mxu0 0.0
        %1295 = vmatprep.subr.mxu0 0.0
        %1296 = vmatpush1.msra.mxu0 0.0
        %1297 = vmatprep.subr.mxu0 0.0
        %1298 = vmatpush1.msra.mxu0 0.0
        %1299 = vmatprep.subr.mxu0 0.0
        %1300 = vmatpush1.msra.mxu0 0.0
        %1301 = vmatprep.subr.mxu0 0.0
        %1302 = vmatpush1.msra.mxu0 0.0
        %1303 = vmatprep.subr.mxu0 0.0
        %1304 = vmatpush1.msra.mxu0 0.0
        %1305 = vmatprep.subr.mxu0 0.0
        %1306 = vmatpush1.msra.mxu0 0.0
        %1307 = vmatprep.subr.mxu0 0.0
        %1308 = vmatpush1.msra.mxu0 0.0
        %1309 = vmatprep.subr.mxu0 0.0
        %1310 = vmatpush1.msra.mxu0 0.0
        %1311 = vmatprep.subr.mxu0 0.0
        %1312 = vmatpush1.msra.mxu0 0.0
        %1313 = vmatprep.subr.mxu0 0.0
        %1314 = vmatpush1.msra.mxu0 0.0
        %1315 = vmatprep.subr.mxu0 0.0
        %1316 = vmatpush1.msra.mxu0 0.0
        %1317 = vmatprep.subr.mxu0 0.0
        %1318 = vmatpush1.msra.mxu0 0.0
        %1319 = vmatprep.subr.mxu0 0.0
        %v1320 = vand.u32 %v1027, 4294901760
        %1321 = vmatpush1.msra.mxu0 %v1320
        %1322 = vmatprep.subr.mxu0 0.0
        %v1323 = vand.u32 %v1026, 4294901760
        %1324 = vmatpush1.msra.mxu0 %v1323
        %1325 = vmatprep.subr.mxu0 0.0
        %1326 = vmatpush2.msra.mxu0 0.0
        %1327 = vmatprep.subr.mxu0 0.0
        %1328 = vmatpush2.msra.mxu0 0.0
        %1329 = vmatprep.subr.mxu0 0.0
        %1330 = vmatpush2.msra.mxu0 0.0
        %1331 = vmatprep.subr.mxu0 0.0
        %1332 = vmatpush2.msra.mxu0 0.0
        %1333 = vmatprep.subr.mxu0 0.0
        %1334 = vmatpush2.msra.mxu0 0.0
        %1335 = vmatprep.subr.mxu0 0.0
        %1336 = vmatpush2.msra.mxu0 0.0
        %1337 = vmatprep.subr.mxu0 0.0
        %1338 = vmatpush2.msra.mxu0 0.0
        %1339 = vmatprep.subr.mxu0 0.0
        %1340 = vmatpush2.msra.mxu0 0.0
        %1341 = vmatprep.subr.mxu0 0.0
        %1342 = vmatpush2.msra.mxu0 0.0
        %1343 = vmatprep.subr.mxu0 0.0
        %1344 = vmatpush2.msra.mxu0 0.0
        %1345 = vmatprep.subr.mxu0 0.0
        %1346 = vmatpush2.msra.mxu0 0.0
        %1347 = vmatprep.subr.mxu0 0.0
        %1348 = vmatpush2.msra.mxu0 0.0
        %1349 = vmatprep.subr.mxu0 0.0
        %1350 = vmatpush2.msra.mxu0 0.0
        %1351 = vmatprep.subr.mxu0 0.0
        %1352 = vmatpush2.msra.mxu0 0.0
        %1353 = vmatprep.subr.mxu0 0.0
        %1354 = vmatpush2.msra.mxu0 0.0
        %1355 = vmatprep.subr.mxu0 0.0
        %1356 = vmatpush2.msra.mxu0 0.0
        %1357 = vmatprep.mubr.f32.mxu0 0.0
        %v1358 = vand.u32 %v1029, 4294901760
        %v1359 = vsub.f32 %v1029, %v1358
        %v1360 = vand.u32 %v1359, 4294901760
        %1361 = vmatmul.mubr.f32.gmra.mxu0 %v1360
        %v1362 = vpop.f32.mrf.mxu0
        %v1363 = vadd.f32 %v1281, %v1362
        %v1364 = vpop.f32.mrf.mxu0
        %1365 = vmatprep.mubr.f32.mxu0 0.0
        %v1366 = vand.u32 %v1032, 4294901760
        %v1367 = vsub.f32 %v1032, %v1366
        %v1368 = vand.u32 %v1367, 4294901760
        %1369 = vmatmul.mubr.f32.gmra.mxu0 %v1368
        %v1370 = vpop.f32.mrf.mxu0
        %v1371 = vadd.f32 %v1288, %v1370
        %v1372 = vpop.f32.mrf.mxu0
        %1373 = vdwg.mxu0
        %1374 = vmatprep.subr.mxu0 0.0
        %1375 = vmatpush1.msra.mxu0 0.0
        %1376 = vmatprep.subr.mxu0 0.0
        %1377 = vmatpush1.msra.mxu0 0.0
        %1378 = vmatprep.subr.mxu0 0.0
        %1379 = vmatpush1.msra.mxu0 0.0
        %1380 = vmatprep.subr.mxu0 0.0
        %1381 = vmatpush1.msra.mxu0 0.0
        %1382 = vmatprep.subr.mxu0 0.0
        %1383 = vmatpush1.msra.mxu0 0.0
        %1384 = vmatprep.subr.mxu0 0.0
        %1385 = vmatpush1.msra.mxu0 0.0
        %1386 = vmatprep.subr.mxu0 0.0
        %1387 = vmatpush1.msra.mxu0 0.0
        %1388 = vmatprep.subr.mxu0 0.0
        %1389 = vmatpush1.msra.mxu0 0.0
        %1390 = vmatprep.subr.mxu0 0.0
        %1391 = vmatpush1.msra.mxu0 0.0
        %1392 = vmatprep.subr.mxu0 0.0
        %1393 = vmatpush1.msra.mxu0 0.0
        %1394 = vmatprep.subr.mxu0 0.0
        %1395 = vmatpush1.msra.mxu0 0.0
        %1396 = vmatprep.subr.mxu0 0.0
        %1397 = vmatpush1.msra.mxu0 0.0
        %1398 = vmatprep.subr.mxu0 0.0
        %1399 = vmatpush1.msra.mxu0 0.0
        %1400 = vmatprep.subr.mxu0 0.0
        %1401 = vmatpush1.msra.mxu0 0.0
        %1402 = vmatprep.subr.mxu0 0.0
        %v1403 = vand.u32 %v1027, 4294901760
        %v1404 = vsub.f32 %v1027, %v1403
        %v1405 = vand.u32 %v1404, 4294901760
        %1406 = vmatpush1.msra.mxu0 %v1405
        %1407 = vmatprep.subr.mxu0 0.0
        %v1408 = vand.u32 %v1026, 4294901760
        %v1409 = vsub.f32 %v1026, %v1408
        %v1410 = vand.u32 %v1409, 4294901760
        %1411 = vmatpush1.msra.mxu0 %v1410
        %1412 = vmatprep.subr.mxu0 0.0
        %1413 = vmatpush2.msra.mxu0 0.0
        %1414 = vmatprep.subr.mxu0 0.0
        %1415 = vmatpush2.msra.mxu0 0.0
        %1416 = vmatprep.subr.mxu0 0.0
        %1417 = vmatpush2.msra.mxu0 0.0
        %1418 = vmatprep.subr.mxu0 0.0
        %1419 = vmatpush2.msra.mxu0 0.0
        %1420 = vmatprep.subr.mxu0 0.0
        %1421 = vmatpush2.msra.mxu0 0.0
        %1422 = vmatprep.subr.mxu0 0.0
        %1423 = vmatpush2.msra.mxu0 0.0
        %1424 = vmatprep.subr.mxu0 0.0
        %1425 = vmatpush2.msra.mxu0 0.0
        %1426 = vmatprep.subr.mxu0 0.0
        %1427 = vmatpush2.msra.mxu0 0.0
        %1428 = vmatprep.subr.mxu0 0.0
        %1429 = vmatpush2.msra.mxu0 0.0
        %1430 = vmatprep.subr.mxu0 0.0
        %1431 = vmatpush2.msra.mxu0 0.0
        %1432 = vmatprep.subr.mxu0 0.0
        %1433 = vmatpush2.msra.mxu0 0.0
        %1434 = vmatprep.subr.mxu0 0.0
        %1435 = vmatpush2.msra.mxu0 0.0
        %1436 = vmatprep.subr.mxu0 0.0
        %1437 = vmatpush2.msra.mxu0 0.0
        %1438 = vmatprep.subr.mxu0 0.0
        %1439 = vmatpush2.msra.mxu0 0.0
        %1440 = vmatprep.subr.mxu0 0.0
        %1441 = vmatpush2.msra.mxu0 0.0
        %1442 = vmatprep.subr.mxu0 0.0
        %1443 = vmatpush2.msra.mxu0 0.0
        %1444 = vmatprep.mubr.f32.mxu0 0.0
        %v1445 = vand.u32 %v1029, 4294901760
        %1446 = vmatmul.mubr.f32.gmra.mxu0 %v1445
        %v1447 = vpop.f32.mrf.mxu0
        %v1448 = vadd.f32 %v1363, %v1447
        %v1449 = vpop.f32.mrf.mxu0
        %1450 = vmatprep.mubr.f32.mxu0 0.0
        %v1451 = vand.u32 %v1032, 4294901760
        %1452 = vmatmul.mubr.f32.gmra.mxu0 %v1451
        %v1453 = vpop.f32.mrf.mxu0
        %v1454 = vadd.f32 %v1371, %v1453
        %v1455 = vpop.f32.mrf.mxu0
        %1456 = vdwg.mxu0
        %1457 = vmatprep.subr.mxu0 0.0
        %1458 = vmatpush1.msra.mxu0 0.0
        %1459 = vmatprep.subr.mxu0 0.0
        %1460 = vmatpush1.msra.mxu0 0.0
        %1461 = vmatprep.subr.mxu0 0.0
        %1462 = vmatpush1.msra.mxu0 0.0
        %1463 = vmatprep.subr.mxu0 0.0
        %1464 = vmatpush1.msra.mxu0 0.0
        %1465 = vmatprep.subr.mxu0 0.0
        %1466 = vmatpush1.msra.mxu0 0.0
        %1467 = vmatprep.subr.mxu0 0.0
        %1468 = vmatpush1.msra.mxu0 0.0
        %1469 = vmatprep.subr.mxu0 0.0
        %1470 = vmatpush1.msra.mxu0 0.0
        %1471 = vmatprep.subr.mxu0 0.0
        %1472 = vmatpush1.msra.mxu0 0.0
        %1473 = vmatprep.subr.mxu0 0.0
        %1474 = vmatpush1.msra.mxu0 0.0
        %1475 = vmatprep.subr.mxu0 0.0
        %1476 = vmatpush1.msra.mxu0 0.0
        %1477 = vmatprep.subr.mxu0 0.0
        %1478 = vmatpush1.msra.mxu0 0.0
        %1479 = vmatprep.subr.mxu0 0.0
        %1480 = vmatpush1.msra.mxu0 0.0
        %1481 = vmatprep.subr.mxu0 0.0
        %1482 = vmatpush1.msra.mxu0 0.0
        %1483 = vmatprep.subr.mxu0 0.0
        %1484 = vmatpush1.msra.mxu0 0.0
        %1485 = vmatprep.subr.mxu0 0.0
        %v1486 = vand.u32 %v1027, 4294901760
        %1487 = vmatpush1.msra.mxu0 %v1486
        %1488 = vmatprep.subr.mxu0 0.0
        %v1489 = vand.u32 %v1026, 4294901760
        %1490 = vmatpush1.msra.mxu0 %v1489
        %1491 = vmatprep.subr.mxu0 0.0
        %1492 = vmatpush2.msra.mxu0 0.0
        %1493 = vmatprep.subr.mxu0 0.0
        %1494 = vmatpush2.msra.mxu0 0.0
        %1495 = vmatprep.subr.mxu0 0.0
        %1496 = vmatpush2.msra.mxu0 0.0
        %1497 = vmatprep.subr.mxu0 0.0
        %1498 = vmatpush2.msra.mxu0 0.0
        %1499 = vmatprep.subr.mxu0 0.0
        %1500 = vmatpush2.msra.mxu0 0.0
        %1501 = vmatprep.subr.mxu0 0.0
        %1502 = vmatpush2.msra.mxu0 0.0
        %1503 = vmatprep.subr.mxu0 0.0
        %1504 = vmatpush2.msra.mxu0 0.0
        %1505 = vmatprep.subr.mxu0 0.0
        %1506 = vmatpush2.msra.mxu0 0.0
        %1507 = vmatprep.subr.mxu0 0.0
        %1508 = vmatpush2.msra.mxu0 0.0
        %1509 = vmatprep.subr.mxu0 0.0
        %1510 = vmatpush2.msra.mxu0 0.0
        %1511 = vmatprep.subr.mxu0 0.0
        %1512 = vmatpush2.msra.mxu0 0.0
        %1513 = vmatprep.subr.mxu0 0.0
        %1514 = vmatpush2.msra.mxu0 0.0
        %1515 = vmatprep.subr.mxu0 0.0
        %1516 = vmatpush2.msra.mxu0 0.0
        %1517 = vmatprep.subr.mxu0 0.0
        %1518 = vmatpush2.msra.mxu0 0.0
        %1519 = vmatprep.subr.mxu0 0.0
        %1520 = vmatpush2.msra.mxu0 0.0
        %1521 = vmatprep.subr.mxu0 0.0
        %1522 = vmatpush2.msra.mxu0 0.0
        %1523 = vmatprep.mubr.f32.mxu0 0.0
        %v1524 = vand.u32 %v1029, 4294901760
        %1525 = vmatmul.mubr.f32.gmra.mxu0 %v1524
        %v1526 = vpop.f32.mrf.mxu0
        %v1527 = vadd.f32 %v1448, %v1526
        %v1528 = vpop.f32.mrf.mxu0
        %1529 = vmatprep.mubr.f32.mxu0 0.0
        %v1530 = vand.u32 %v1032, 4294901760
        %1531 = vmatmul.mubr.f32.gmra.mxu0 %v1530
        %v1532 = vpop.f32.mrf.mxu0
        %v1533 = vadd.f32 %v1454, %v1532
        %v1534 = vpop.f32.mrf.mxu0
        %1535 = vdwg.mxu0
        %1536 = vst.msk [vmem:[%s218] sm:$0xff] %vm233, %v1527
        %1537 = vst.msk [vmem:[%s218 + $0x8] sm:$0xff] %vm233, %v1533
        %s1538 = scalar_lea.vmem %s218, 16 [#allocation8]
        %v1539 = vld [vmem:[%s1538] sm:$0xff]
        %v1540 = vld [vmem:[%s1538 + $0x8] sm:$0xff]
        %1541 = vmatprep.subr.mxu0 0.0
        %1542 = vmatpush1.msra.mxu0 0.0
        %1543 = vmatprep.subr.mxu0 0.0
        %1544 = vmatpush1.msra.mxu0 0.0
        %1545 = vmatprep.subr.mxu0 0.0
        %1546 = vmatpush1.msra.mxu0 0.0
        %1547 = vmatprep.subr.mxu0 0.0
        %1548 = vmatpush1.msra.mxu0 0.0
        %1549 = vmatprep.subr.mxu0 0.0
        %1550 = vmatpush1.msra.mxu0 0.0
        %1551 = vmatprep.subr.mxu0 0.0
        %1552 = vmatpush1.msra.mxu0 0.0
        %1553 = vmatprep.subr.mxu0 0.0
        %1554 = vmatpush1.msra.mxu0 0.0
        %1555 = vmatprep.subr.mxu0 0.0
        %1556 = vmatpush1.msra.mxu0 0.0
        %1557 = vmatprep.subr.mxu0 0.0
        %1558 = vmatpush1.msra.mxu0 0.0
        %1559 = vmatprep.subr.mxu0 0.0
        %1560 = vmatpush1.msra.mxu0 0.0
        %1561 = vmatprep.subr.mxu0 0.0
        %1562 = vmatpush1.msra.mxu0 0.0
        %1563 = vmatprep.subr.mxu0 0.0
        %1564 = vmatpush1.msra.mxu0 0.0
        %1565 = vmatprep.subr.mxu0 0.0
        %1566 = vmatpush1.msra.mxu0 0.0
        %1567 = vmatprep.subr.mxu0 0.0
        %1568 = vmatpush1.msra.mxu0 0.0
        %1569 = vmatprep.subr.mxu0 0.0
        %v1570 = vand.u32 %v1540, 4294901760
        %1571 = vmatpush1.msra.mxu0 %v1570
        %1572 = vmatprep.subr.mxu0 0.0
        %v1573 = vand.u32 %v1539, 4294901760
        %1574 = vmatpush1.msra.mxu0 %v1573
        %1575 = vmatprep.subr.mxu0 0.0
        %1576 = vmatpush2.msra.mxu0 0.0
        %1577 = vmatprep.subr.mxu0 0.0
        %1578 = vmatpush2.msra.mxu0 0.0
        %1579 = vmatprep.subr.mxu0 0.0
        %1580 = vmatpush2.msra.mxu0 0.0
        %1581 = vmatprep.subr.mxu0 0.0
        %1582 = vmatpush2.msra.mxu0 0.0
        %1583 = vmatprep.subr.mxu0 0.0
        %1584 = vmatpush2.msra.mxu0 0.0
        %1585 = vmatprep.subr.mxu0 0.0
        %1586 = vmatpush2.msra.mxu0 0.0
        %1587 = vmatprep.subr.mxu0 0.0
        %1588 = vmatpush2.msra.mxu0 0.0
        %1589 = vmatprep.subr.mxu0 0.0
        %1590 = vmatpush2.msra.mxu0 0.0
        %1591 = vmatprep.subr.mxu0 0.0
        %1592 = vmatpush2.msra.mxu0 0.0
        %1593 = vmatprep.subr.mxu0 0.0
        %1594 = vmatpush2.msra.mxu0 0.0
        %1595 = vmatprep.subr.mxu0 0.0
        %1596 = vmatpush2.msra.mxu0 0.0
        %1597 = vmatprep.subr.mxu0 0.0
        %1598 = vmatpush2.msra.mxu0 0.0
        %1599 = vmatprep.subr.mxu0 0.0
        %1600 = vmatpush2.msra.mxu0 0.0
        %1601 = vmatprep.subr.mxu0 0.0
        %1602 = vmatpush2.msra.mxu0 0.0
        %1603 = vmatprep.subr.mxu0 0.0
        %1604 = vmatpush2.msra.mxu0 0.0
        %1605 = vmatprep.subr.mxu0 0.0
        %1606 = vmatpush2.msra.mxu0 0.0
        %1607 = vmatprep.mubr.f32.mxu0 0.0
        %v1608 = vand.u32 %v1029, 4294901760
        %v1609 = vsub.f32 %v1029, %v1608
        %v1610 = vand.u32 %v1609, 4294901760
        %v1611 = vsub.f32 %v1609, %v1610
        %v1612 = vand.u32 %v1611, 4294901760
        %1613 = vmatmul.mubr.f32.gmra.mxu0 %v1612
        %v1614 = vpop.f32.mrf.mxu0
        %v1615 = vadd.f32 0.0, %v1614
        %v1616 = vpop.f32.mrf.mxu0
        %1617 = vmatprep.mubr.f32.mxu0 0.0
        %v1618 = vand.u32 %v1032, 4294901760
        %v1619 = vsub.f32 %v1032, %v1618
        %v1620 = vand.u32 %v1619, 4294901760
        %v1621 = vsub.f32 %v1619, %v1620
        %v1622 = vand.u32 %v1621, 4294901760
        %1623 = vmatmul.mubr.f32.gmra.mxu0 %v1622
        %v1624 = vpop.f32.mrf.mxu0
        %v1625 = vadd.f32 0.0, %v1624
        %v1626 = vpop.f32.mrf.mxu0
        %1627 = vdwg.mxu0
        %1628 = vmatprep.subr.mxu0 0.0
        %1629 = vmatpush1.msra.mxu0 0.0
        %1630 = vmatprep.subr.mxu0 0.0
        %1631 = vmatpush1.msra.mxu0 0.0
        %1632 = vmatprep.subr.mxu0 0.0
        %1633 = vmatpush1.msra.mxu0 0.0
        %1634 = vmatprep.subr.mxu0 0.0
        %1635 = vmatpush1.msra.mxu0 0.0
        %1636 = vmatprep.subr.mxu0 0.0
        %1637 = vmatpush1.msra.mxu0 0.0
        %1638 = vmatprep.subr.mxu0 0.0
        %1639 = vmatpush1.msra.mxu0 0.0
        %1640 = vmatprep.subr.mxu0 0.0
        %1641 = vmatpush1.msra.mxu0 0.0
        %1642 = vmatprep.subr.mxu0 0.0
        %1643 = vmatpush1.msra.mxu0 0.0
        %1644 = vmatprep.subr.mxu0 0.0
        %1645 = vmatpush1.msra.mxu0 0.0
        %1646 = vmatprep.subr.mxu0 0.0
        %1647 = vmatpush1.msra.mxu0 0.0
        %1648 = vmatprep.subr.mxu0 0.0
        %1649 = vmatpush1.msra.mxu0 0.0
        %1650 = vmatprep.subr.mxu0 0.0
        %1651 = vmatpush1.msra.mxu0 0.0
        %1652 = vmatprep.subr.mxu0 0.0
        %1653 = vmatpush1.msra.mxu0 0.0
        %1654 = vmatprep.subr.mxu0 0.0
        %1655 = vmatpush1.msra.mxu0 0.0
        %1656 = vmatprep.subr.mxu0 0.0
        %v1657 = vand.u32 %v1540, 4294901760
        %v1658 = vsub.f32 %v1540, %v1657
        %v1659 = vand.u32 %v1658, 4294901760
        %v1660 = vsub.f32 %v1658, %v1659
        %v1661 = vand.u32 %v1660, 4294901760
        %1662 = vmatpush1.msra.mxu0 %v1661
        %1663 = vmatprep.subr.mxu0 0.0
        %v1664 = vand.u32 %v1539, 4294901760
        %v1665 = vsub.f32 %v1539, %v1664
        %v1666 = vand.u32 %v1665, 4294901760
        %v1667 = vsub.f32 %v1665, %v1666
        %v1668 = vand.u32 %v1667, 4294901760
        %1669 = vmatpush1.msra.mxu0 %v1668
        %1670 = vmatprep.subr.mxu0 0.0
        %1671 = vmatpush2.msra.mxu0 0.0
        %1672 = vmatprep.subr.mxu0 0.0
        %1673 = vmatpush2.msra.mxu0 0.0
        %1674 = vmatprep.subr.mxu0 0.0
        %1675 = vmatpush2.msra.mxu0 0.0
        %1676 = vmatprep.subr.mxu0 0.0
        %1677 = vmatpush2.msra.mxu0 0.0
        %1678 = vmatprep.subr.mxu0 0.0
        %1679 = vmatpush2.msra.mxu0 0.0
        %1680 = vmatprep.subr.mxu0 0.0
        %1681 = vmatpush2.msra.mxu0 0.0
        %1682 = vmatprep.subr.mxu0 0.0
        %1683 = vmatpush2.msra.mxu0 0.0
        %1684 = vmatprep.subr.mxu0 0.0
        %1685 = vmatpush2.msra.mxu0 0.0
        %1686 = vmatprep.subr.mxu0 0.0
        %1687 = vmatpush2.msra.mxu0 0.0
        %1688 = vmatprep.subr.mxu0 0.0
        %1689 = vmatpush2.msra.mxu0 0.0
        %1690 = vmatprep.subr.mxu0 0.0
        %1691 = vmatpush2.msra.mxu0 0.0
        %1692 = vmatprep.subr.mxu0 0.0
        %1693 = vmatpush2.msra.mxu0 0.0
        %1694 = vmatprep.subr.mxu0 0.0
        %1695 = vmatpush2.msra.mxu0 0.0
        %1696 = vmatprep.subr.mxu0 0.0
        %1697 = vmatpush2.msra.mxu0 0.0
        %1698 = vmatprep.subr.mxu0 0.0
        %1699 = vmatpush2.msra.mxu0 0.0
        %1700 = vmatprep.subr.mxu0 0.0
        %1701 = vmatpush2.msra.mxu0 0.0
        %1702 = vmatprep.mubr.f32.mxu0 0.0
        %v1703 = vand.u32 %v1029, 4294901760
        %1704 = vmatmul.mubr.f32.gmra.mxu0 %v1703
        %v1705 = vpop.f32.mrf.mxu0
        %v1706 = vadd.f32 %v1615, %v1705
        %v1707 = vpop.f32.mrf.mxu0
        %1708 = vmatprep.mubr.f32.mxu0 0.0
        %v1709 = vand.u32 %v1032, 4294901760
        %1710 = vmatmul.mubr.f32.gmra.mxu0 %v1709
        %v1711 = vpop.f32.mrf.mxu0
        %v1712 = vadd.f32 %v1625, %v1711
        %v1713 = vpop.f32.mrf.mxu0
        %1714 = vdwg.mxu0
        %1715 = vmatprep.subr.mxu0 0.0
        %1716 = vmatpush1.msra.mxu0 0.0
        %1717 = vmatprep.subr.mxu0 0.0
        %1718 = vmatpush1.msra.mxu0 0.0
        %1719 = vmatprep.subr.mxu0 0.0
        %1720 = vmatpush1.msra.mxu0 0.0
        %1721 = vmatprep.subr.mxu0 0.0
        %1722 = vmatpush1.msra.mxu0 0.0
        %1723 = vmatprep.subr.mxu0 0.0
        %1724 = vmatpush1.msra.mxu0 0.0
        %1725 = vmatprep.subr.mxu0 0.0
        %1726 = vmatpush1.msra.mxu0 0.0
        %1727 = vmatprep.subr.mxu0 0.0
        %1728 = vmatpush1.msra.mxu0 0.0
        %1729 = vmatprep.subr.mxu0 0.0
        %1730 = vmatpush1.msra.mxu0 0.0
        %1731 = vmatprep.subr.mxu0 0.0
        %1732 = vmatpush1.msra.mxu0 0.0
        %1733 = vmatprep.subr.mxu0 0.0
        %1734 = vmatpush1.msra.mxu0 0.0
        %1735 = vmatprep.subr.mxu0 0.0
        %1736 = vmatpush1.msra.mxu0 0.0
        %1737 = vmatprep.subr.mxu0 0.0
        %1738 = vmatpush1.msra.mxu0 0.0
        %1739 = vmatprep.subr.mxu0 0.0
        %1740 = vmatpush1.msra.mxu0 0.0
        %1741 = vmatprep.subr.mxu0 0.0
        %1742 = vmatpush1.msra.mxu0 0.0
        %1743 = vmatprep.subr.mxu0 0.0
        %v1744 = vand.u32 %v1540, 4294901760
        %v1745 = vsub.f32 %v1540, %v1744
        %1746 = vmatpush1.msra.mxu0 %v1745
        %1747 = vmatprep.subr.mxu0 0.0
        %v1748 = vand.u32 %v1539, 4294901760
        %v1749 = vsub.f32 %v1539, %v1748
        %1750 = vmatpush1.msra.mxu0 %v1749
        %1751 = vmatprep.subr.mxu0 0.0
        %1752 = vmatpush2.msra.mxu0 0.0
        %1753 = vmatprep.subr.mxu0 0.0
        %1754 = vmatpush2.msra.mxu0 0.0
        %1755 = vmatprep.subr.mxu0 0.0
        %1756 = vmatpush2.msra.mxu0 0.0
        %1757 = vmatprep.subr.mxu0 0.0
        %1758 = vmatpush2.msra.mxu0 0.0
        %1759 = vmatprep.subr.mxu0 0.0
        %1760 = vmatpush2.msra.mxu0 0.0
        %1761 = vmatprep.subr.mxu0 0.0
        %1762 = vmatpush2.msra.mxu0 0.0
        %1763 = vmatprep.subr.mxu0 0.0
        %1764 = vmatpush2.msra.mxu0 0.0
        %1765 = vmatprep.subr.mxu0 0.0
        %1766 = vmatpush2.msra.mxu0 0.0
        %1767 = vmatprep.subr.mxu0 0.0
        %1768 = vmatpush2.msra.mxu0 0.0
        %1769 = vmatprep.subr.mxu0 0.0
        %1770 = vmatpush2.msra.mxu0 0.0
        %1771 = vmatprep.subr.mxu0 0.0
        %1772 = vmatpush2.msra.mxu0 0.0
        %1773 = vmatprep.subr.mxu0 0.0
        %1774 = vmatpush2.msra.mxu0 0.0
        %1775 = vmatprep.subr.mxu0 0.0
        %1776 = vmatpush2.msra.mxu0 0.0
        %1777 = vmatprep.subr.mxu0 0.0
        %1778 = vmatpush2.msra.mxu0 0.0
        %1779 = vmatprep.subr.mxu0 0.0
        %1780 = vmatpush2.msra.mxu0 0.0
        %1781 = vmatprep.subr.mxu0 0.0
        %1782 = vmatpush2.msra.mxu0 0.0
        %1783 = vmatprep.mubr.f32.mxu0 0.0
        %v1784 = vand.u32 %v1029, 4294901760
        %v1785 = vsub.f32 %v1029, %v1784
        %1786 = vmatmul.mubr.f32.gmra.mxu0 %v1785
        %v1787 = vpop.f32.mrf.mxu0
        %v1788 = vadd.f32 %v1706, %v1787
        %v1789 = vpop.f32.mrf.mxu0
        %1790 = vmatprep.mubr.f32.mxu0 0.0
        %v1791 = vand.u32 %v1032, 4294901760
        %v1792 = vsub.f32 %v1032, %v1791
        %1793 = vmatmul.mubr.f32.gmra.mxu0 %v1792
        %v1794 = vpop.f32.mrf.mxu0
        %v1795 = vadd.f32 %v1712, %v1794
        %v1796 = vpop.f32.mrf.mxu0
        %1797 = vdwg.mxu0
        %1798 = vmatprep.subr.mxu0 0.0
        %1799 = vmatpush1.msra.mxu0 0.0
        %1800 = vmatprep.subr.mxu0 0.0
        %1801 = vmatpush1.msra.mxu0 0.0
        %1802 = vmatprep.subr.mxu0 0.0
        %1803 = vmatpush1.msra.mxu0 0.0
        %1804 = vmatprep.subr.mxu0 0.0
        %1805 = vmatpush1.msra.mxu0 0.0
        %1806 = vmatprep.subr.mxu0 0.0
        %1807 = vmatpush1.msra.mxu0 0.0
        %1808 = vmatprep.subr.mxu0 0.0
        %1809 = vmatpush1.msra.mxu0 0.0
        %1810 = vmatprep.subr.mxu0 0.0
        %1811 = vmatpush1.msra.mxu0 0.0
        %1812 = vmatprep.subr.mxu0 0.0
        %1813 = vmatpush1.msra.mxu0 0.0
        %1814 = vmatprep.subr.mxu0 0.0
        %1815 = vmatpush1.msra.mxu0 0.0
        %1816 = vmatprep.subr.mxu0 0.0
        %1817 = vmatpush1.msra.mxu0 0.0
        %1818 = vmatprep.subr.mxu0 0.0
        %1819 = vmatpush1.msra.mxu0 0.0
        %1820 = vmatprep.subr.mxu0 0.0
        %1821 = vmatpush1.msra.mxu0 0.0
        %1822 = vmatprep.subr.mxu0 0.0
        %1823 = vmatpush1.msra.mxu0 0.0
        %1824 = vmatprep.subr.mxu0 0.0
        %1825 = vmatpush1.msra.mxu0 0.0
        %1826 = vmatprep.subr.mxu0 0.0
        %v1827 = vand.u32 %v1540, 4294901760
        %1828 = vmatpush1.msra.mxu0 %v1827
        %1829 = vmatprep.subr.mxu0 0.0
        %v1830 = vand.u32 %v1539, 4294901760
        %1831 = vmatpush1.msra.mxu0 %v1830
        %1832 = vmatprep.subr.mxu0 0.0
        %1833 = vmatpush2.msra.mxu0 0.0
        %1834 = vmatprep.subr.mxu0 0.0
        %1835 = vmatpush2.msra.mxu0 0.0
        %1836 = vmatprep.subr.mxu0 0.0
        %1837 = vmatpush2.msra.mxu0 0.0
        %1838 = vmatprep.subr.mxu0 0.0
        %1839 = vmatpush2.msra.mxu0 0.0
        %1840 = vmatprep.subr.mxu0 0.0
        %1841 = vmatpush2.msra.mxu0 0.0
        %1842 = vmatprep.subr.mxu0 0.0
        %1843 = vmatpush2.msra.mxu0 0.0
        %1844 = vmatprep.subr.mxu0 0.0
        %1845 = vmatpush2.msra.mxu0 0.0
        %1846 = vmatprep.subr.mxu0 0.0
        %1847 = vmatpush2.msra.mxu0 0.0
        %1848 = vmatprep.subr.mxu0 0.0
        %1849 = vmatpush2.msra.mxu0 0.0
        %1850 = vmatprep.subr.mxu0 0.0
        %1851 = vmatpush2.msra.mxu0 0.0
        %1852 = vmatprep.subr.mxu0 0.0
        %1853 = vmatpush2.msra.mxu0 0.0
        %1854 = vmatprep.subr.mxu0 0.0
        %1855 = vmatpush2.msra.mxu0 0.0
        %1856 = vmatprep.subr.mxu0 0.0
        %1857 = vmatpush2.msra.mxu0 0.0
        %1858 = vmatprep.subr.mxu0 0.0
        %1859 = vmatpush2.msra.mxu0 0.0
        %1860 = vmatprep.subr.mxu0 0.0
        %1861 = vmatpush2.msra.mxu0 0.0
        %1862 = vmatprep.subr.mxu0 0.0
        %1863 = vmatpush2.msra.mxu0 0.0
        %1864 = vmatprep.mubr.f32.mxu0 0.0
        %v1865 = vand.u32 %v1029, 4294901760
        %v1866 = vsub.f32 %v1029, %v1865
        %v1867 = vand.u32 %v1866, 4294901760
        %1868 = vmatmul.mubr.f32.gmra.mxu0 %v1867
        %v1869 = vpop.f32.mrf.mxu0
        %v1870 = vadd.f32 %v1788, %v1869
        %v1871 = vpop.f32.mrf.mxu0
        %1872 = vmatprep.mubr.f32.mxu0 0.0
        %v1873 = vand.u32 %v1032, 4294901760
        %v1874 = vsub.f32 %v1032, %v1873
        %v1875 = vand.u32 %v1874, 4294901760
        %1876 = vmatmul.mubr.f32.gmra.mxu0 %v1875
        %v1877 = vpop.f32.mrf.mxu0
        %v1878 = vadd.f32 %v1795, %v1877
        %v1879 = vpop.f32.mrf.mxu0
        %1880 = vdwg.mxu0
        %1881 = vmatprep.subr.mxu0 0.0
        %1882 = vmatpush1.msra.mxu0 0.0
        %1883 = vmatprep.subr.mxu0 0.0
        %1884 = vmatpush1.msra.mxu0 0.0
        %1885 = vmatprep.subr.mxu0 0.0
        %1886 = vmatpush1.msra.mxu0 0.0
        %1887 = vmatprep.subr.mxu0 0.0
        %1888 = vmatpush1.msra.mxu0 0.0
        %1889 = vmatprep.subr.mxu0 0.0
        %1890 = vmatpush1.msra.mxu0 0.0
        %1891 = vmatprep.subr.mxu0 0.0
        %1892 = vmatpush1.msra.mxu0 0.0
        %1893 = vmatprep.subr.mxu0 0.0
        %1894 = vmatpush1.msra.mxu0 0.0
        %1895 = vmatprep.subr.mxu0 0.0
        %1896 = vmatpush1.msra.mxu0 0.0
        %1897 = vmatprep.subr.mxu0 0.0
        %1898 = vmatpush1.msra.mxu0 0.0
        %1899 = vmatprep.subr.mxu0 0.0
        %1900 = vmatpush1.msra.mxu0 0.0
        %1901 = vmatprep.subr.mxu0 0.0
        %1902 = vmatpush1.msra.mxu0 0.0
        %1903 = vmatprep.subr.mxu0 0.0
        %1904 = vmatpush1.msra.mxu0 0.0
        %1905 = vmatprep.subr.mxu0 0.0
        %1906 = vmatpush1.msra.mxu0 0.0
        %1907 = vmatprep.subr.mxu0 0.0
        %1908 = vmatpush1.msra.mxu0 0.0
        %1909 = vmatprep.subr.mxu0 0.0
        %v1910 = vand.u32 %v1540, 4294901760
        %v1911 = vsub.f32 %v1540, %v1910
        %v1912 = vand.u32 %v1911, 4294901760
        %1913 = vmatpush1.msra.mxu0 %v1912
        %1914 = vmatprep.subr.mxu0 0.0
        %v1915 = vand.u32 %v1539, 4294901760
        %v1916 = vsub.f32 %v1539, %v1915
        %v1917 = vand.u32 %v1916, 4294901760
        %1918 = vmatpush1.msra.mxu0 %v1917
        %1919 = vmatprep.subr.mxu0 0.0
        %1920 = vmatpush2.msra.mxu0 0.0
        %1921 = vmatprep.subr.mxu0 0.0
        %1922 = vmatpush2.msra.mxu0 0.0
        %1923 = vmatprep.subr.mxu0 0.0
        %1924 = vmatpush2.msra.mxu0 0.0
        %1925 = vmatprep.subr.mxu0 0.0
        %1926 = vmatpush2.msra.mxu0 0.0
        %1927 = vmatprep.subr.mxu0 0.0
        %1928 = vmatpush2.msra.mxu0 0.0
        %1929 = vmatprep.subr.mxu0 0.0
        %1930 = vmatpush2.msra.mxu0 0.0
        %1931 = vmatprep.subr.mxu0 0.0
        %1932 = vmatpush2.msra.mxu0 0.0
        %1933 = vmatprep.subr.mxu0 0.0
        %1934 = vmatpush2.msra.mxu0 0.0
        %1935 = vmatprep.subr.mxu0 0.0
        %1936 = vmatpush2.msra.mxu0 0.0
        %1937 = vmatprep.subr.mxu0 0.0
        %1938 = vmatpush2.msra.mxu0 0.0
        %1939 = vmatprep.subr.mxu0 0.0
        %1940 = vmatpush2.msra.mxu0 0.0
        %1941 = vmatprep.subr.mxu0 0.0
        %1942 = vmatpush2.msra.mxu0 0.0
        %1943 = vmatprep.subr.mxu0 0.0
        %1944 = vmatpush2.msra.mxu0 0.0
        %1945 = vmatprep.subr.mxu0 0.0
        %1946 = vmatpush2.msra.mxu0 0.0
        %1947 = vmatprep.subr.mxu0 0.0
        %1948 = vmatpush2.msra.mxu0 0.0
        %1949 = vmatprep.subr.mxu0 0.0
        %1950 = vmatpush2.msra.mxu0 0.0
        %1951 = vmatprep.mubr.f32.mxu0 0.0
        %v1952 = vand.u32 %v1029, 4294901760
        %1953 = vmatmul.mubr.f32.gmra.mxu0 %v1952
        %v1954 = vpop.f32.mrf.mxu0
        %v1955 = vadd.f32 %v1870, %v1954
        %v1956 = vpop.f32.mrf.mxu0
        %1957 = vmatprep.mubr.f32.mxu0 0.0
        %v1958 = vand.u32 %v1032, 4294901760
        %1959 = vmatmul.mubr.f32.gmra.mxu0 %v1958
        %v1960 = vpop.f32.mrf.mxu0
        %v1961 = vadd.f32 %v1878, %v1960
        %v1962 = vpop.f32.mrf.mxu0
        %1963 = vdwg.mxu0
        %1964 = vmatprep.subr.mxu0 0.0
        %1965 = vmatpush1.msra.mxu0 0.0
        %1966 = vmatprep.subr.mxu0 0.0
        %1967 = vmatpush1.msra.mxu0 0.0
        %1968 = vmatprep.subr.mxu0 0.0
        %1969 = vmatpush1.msra.mxu0 0.0
        %1970 = vmatprep.subr.mxu0 0.0
        %1971 = vmatpush1.msra.mxu0 0.0
        %1972 = vmatprep.subr.mxu0 0.0
        %1973 = vmatpush1.msra.mxu0 0.0
        %1974 = vmatprep.subr.mxu0 0.0
        %1975 = vmatpush1.msra.mxu0 0.0
        %1976 = vmatprep.subr.mxu0 0.0
        %1977 = vmatpush1.msra.mxu0 0.0
        %1978 = vmatprep.subr.mxu0 0.0
        %1979 = vmatpush1.msra.mxu0 0.0
        %1980 = vmatprep.subr.mxu0 0.0
        %1981 = vmatpush1.msra.mxu0 0.0
        %1982 = vmatprep.subr.mxu0 0.0
        %1983 = vmatpush1.msra.mxu0 0.0
        %1984 = vmatprep.subr.mxu0 0.0
        %1985 = vmatpush1.msra.mxu0 0.0
        %1986 = vmatprep.subr.mxu0 0.0
        %1987 = vmatpush1.msra.mxu0 0.0
        %1988 = vmatprep.subr.mxu0 0.0
        %1989 = vmatpush1.msra.mxu0 0.0
        %1990 = vmatprep.subr.mxu0 0.0
        %1991 = vmatpush1.msra.mxu0 0.0
        %1992 = vmatprep.subr.mxu0 0.0
        %v1993 = vand.u32 %v1540, 4294901760
        %1994 = vmatpush1.msra.mxu0 %v1993
        %1995 = vmatprep.subr.mxu0 0.0
        %v1996 = vand.u32 %v1539, 4294901760
        %1997 = vmatpush1.msra.mxu0 %v1996
        %1998 = vmatprep.subr.mxu0 0.0
        %1999 = vmatpush2.msra.mxu0 0.0
        %2000 = vmatprep.subr.mxu0 0.0
        %2001 = vmatpush2.msra.mxu0 0.0
        %2002 = vmatprep.subr.mxu0 0.0
        %2003 = vmatpush2.msra.mxu0 0.0
        %2004 = vmatprep.subr.mxu0 0.0
        %2005 = vmatpush2.msra.mxu0 0.0
        %2006 = vmatprep.subr.mxu0 0.0
        %2007 = vmatpush2.msra.mxu0 0.0
        %2008 = vmatprep.subr.mxu0 0.0
        %2009 = vmatpush2.msra.mxu0 0.0
        %2010 = vmatprep.subr.mxu0 0.0
        %2011 = vmatpush2.msra.mxu0 0.0
        %2012 = vmatprep.subr.mxu0 0.0
        %2013 = vmatpush2.msra.mxu0 0.0
        %2014 = vmatprep.subr.mxu0 0.0
        %2015 = vmatpush2.msra.mxu0 0.0
        %2016 = vmatprep.subr.mxu0 0.0
        %2017 = vmatpush2.msra.mxu0 0.0
        %2018 = vmatprep.subr.mxu0 0.0
        %2019 = vmatpush2.msra.mxu0 0.0
        %2020 = vmatprep.subr.mxu0 0.0
        %2021 = vmatpush2.msra.mxu0 0.0
        %2022 = vmatprep.subr.mxu0 0.0
        %2023 = vmatpush2.msra.mxu0 0.0
        %2024 = vmatprep.subr.mxu0 0.0
        %2025 = vmatpush2.msra.mxu0 0.0
        %2026 = vmatprep.subr.mxu0 0.0
        %2027 = vmatpush2.msra.mxu0 0.0
        %2028 = vmatprep.subr.mxu0 0.0
        %2029 = vmatpush2.msra.mxu0 0.0
        %2030 = vmatprep.mubr.f32.mxu0 0.0
        %v2031 = vand.u32 %v1029, 4294901760
        %2032 = vmatmul.mubr.f32.gmra.mxu0 %v2031
        %v2033 = vpop.f32.mrf.mxu0
        %v2034 = vadd.f32 %v1955, %v2033
        %v2035 = vpop.f32.mrf.mxu0
        %2036 = vmatprep.mubr.f32.mxu0 0.0
        %v2037 = vand.u32 %v1032, 4294901760
        %2038 = vmatmul.mubr.f32.gmra.mxu0 %v2037
        %v2039 = vpop.f32.mrf.mxu0
        %v2040 = vadd.f32 %v1961, %v2039
        %v2041 = vpop.f32.mrf.mxu0
        %2042 = vdwg.mxu0
        %2043 = vst.msk [vmem:[%s1538] sm:$0xff] %vm233, %v2034
        %2044 = vst.msk [vmem:[%s1538 + $0x8] sm:$0xff] %vm233, %v2040
        %s2045 = scalar_lea.vmem %s218, 32 [#allocation8]
        %v2046 = vld [vmem:[%s2045] sm:$0xff]
        %v2047 = vld [vmem:[%s2045 + $0x8] sm:$0xff]
        %2048 = vmatprep.subr.mxu0 0.0
        %2049 = vmatpush1.msra.mxu0 0.0
        %2050 = vmatprep.subr.mxu0 0.0
        %2051 = vmatpush1.msra.mxu0 0.0
        %2052 = vmatprep.subr.mxu0 0.0
        %2053 = vmatpush1.msra.mxu0 0.0
        %2054 = vmatprep.subr.mxu0 0.0
        %2055 = vmatpush1.msra.mxu0 0.0
        %2056 = vmatprep.subr.mxu0 0.0
        %2057 = vmatpush1.msra.mxu0 0.0
        %2058 = vmatprep.subr.mxu0 0.0
        %2059 = vmatpush1.msra.mxu0 0.0
        %2060 = vmatprep.subr.mxu0 0.0
        %2061 = vmatpush1.msra.mxu0 0.0
        %2062 = vmatprep.subr.mxu0 0.0
        %2063 = vmatpush1.msra.mxu0 0.0
        %2064 = vmatprep.subr.mxu0 0.0
        %2065 = vmatpush1.msra.mxu0 0.0
        %2066 = vmatprep.subr.mxu0 0.0
        %2067 = vmatpush1.msra.mxu0 0.0
        %2068 = vmatprep.subr.mxu0 0.0
        %2069 = vmatpush1.msra.mxu0 0.0
        %2070 = vmatprep.subr.mxu0 0.0
        %2071 = vmatpush1.msra.mxu0 0.0
        %2072 = vmatprep.subr.mxu0 0.0
        %2073 = vmatpush1.msra.mxu0 0.0
        %2074 = vmatprep.subr.mxu0 0.0
        %2075 = vmatpush1.msra.mxu0 0.0
        %2076 = vmatprep.subr.mxu0 0.0
        %v2077 = vand.u32 %v2047, 4294901760
        %2078 = vmatpush1.msra.mxu0 %v2077
        %2079 = vmatprep.subr.mxu0 0.0
        %v2080 = vand.u32 %v2046, 4294901760
        %2081 = vmatpush1.msra.mxu0 %v2080
        %2082 = vmatprep.subr.mxu0 0.0
        %2083 = vmatpush2.msra.mxu0 0.0
        %2084 = vmatprep.subr.mxu0 0.0
        %2085 = vmatpush2.msra.mxu0 0.0
        %2086 = vmatprep.subr.mxu0 0.0
        %2087 = vmatpush2.msra.mxu0 0.0
        %2088 = vmatprep.subr.mxu0 0.0
        %2089 = vmatpush2.msra.mxu0 0.0
        %2090 = vmatprep.subr.mxu0 0.0
        %2091 = vmatpush2.msra.mxu0 0.0
        %2092 = vmatprep.subr.mxu0 0.0
        %2093 = vmatpush2.msra.mxu0 0.0
        %2094 = vmatprep.subr.mxu0 0.0
        %2095 = vmatpush2.msra.mxu0 0.0
        %2096 = vmatprep.subr.mxu0 0.0
        %2097 = vmatpush2.msra.mxu0 0.0
        %2098 = vmatprep.subr.mxu0 0.0
        %2099 = vmatpush2.msra.mxu0 0.0
        %2100 = vmatprep.subr.mxu0 0.0
        %2101 = vmatpush2.msra.mxu0 0.0
        %2102 = vmatprep.subr.mxu0 0.0
        %2103 = vmatpush2.msra.mxu0 0.0
        %2104 = vmatprep.subr.mxu0 0.0
        %2105 = vmatpush2.msra.mxu0 0.0
        %2106 = vmatprep.subr.mxu0 0.0
        %2107 = vmatpush2.msra.mxu0 0.0
        %2108 = vmatprep.subr.mxu0 0.0
        %2109 = vmatpush2.msra.mxu0 0.0
        %2110 = vmatprep.subr.mxu0 0.0
        %2111 = vmatpush2.msra.mxu0 0.0
        %2112 = vmatprep.subr.mxu0 0.0
        %2113 = vmatpush2.msra.mxu0 0.0
        %2114 = vmatprep.mubr.f32.mxu0 0.0
        %v2115 = vand.u32 %v1029, 4294901760
        %v2116 = vsub.f32 %v1029, %v2115
        %v2117 = vand.u32 %v2116, 4294901760
        %v2118 = vsub.f32 %v2116, %v2117
        %v2119 = vand.u32 %v2118, 4294901760
        %2120 = vmatmul.mubr.f32.gmra.mxu0 %v2119
        %v2121 = vpop.f32.mrf.mxu0
        %v2122 = vadd.f32 0.0, %v2121
        %v2123 = vpop.f32.mrf.mxu0
        %2124 = vmatprep.mubr.f32.mxu0 0.0
        %v2125 = vand.u32 %v1032, 4294901760
        %v2126 = vsub.f32 %v1032, %v2125
        %v2127 = vand.u32 %v2126, 4294901760
        %v2128 = vsub.f32 %v2126, %v2127
        %v2129 = vand.u32 %v2128, 4294901760
        %2130 = vmatmul.mubr.f32.gmra.mxu0 %v2129
        %v2131 = vpop.f32.mrf.mxu0
        %v2132 = vadd.f32 0.0, %v2131
        %v2133 = vpop.f32.mrf.mxu0
        %2134 = vdwg.mxu0
        %2135 = vmatprep.subr.mxu0 0.0
        %2136 = vmatpush1.msra.mxu0 0.0
        %2137 = vmatprep.subr.mxu0 0.0
        %2138 = vmatpush1.msra.mxu0 0.0
        %2139 = vmatprep.subr.mxu0 0.0
        %2140 = vmatpush1.msra.mxu0 0.0
        %2141 = vmatprep.subr.mxu0 0.0
        %2142 = vmatpush1.msra.mxu0 0.0
        %2143 = vmatprep.subr.mxu0 0.0
        %2144 = vmatpush1.msra.mxu0 0.0
        %2145 = vmatprep.subr.mxu0 0.0
        %2146 = vmatpush1.msra.mxu0 0.0
        %2147 = vmatprep.subr.mxu0 0.0
        %2148 = vmatpush1.msra.mxu0 0.0
        %2149 = vmatprep.subr.mxu0 0.0
        %2150 = vmatpush1.msra.mxu0 0.0
        %2151 = vmatprep.subr.mxu0 0.0
        %2152 = vmatpush1.msra.mxu0 0.0
        %2153 = vmatprep.subr.mxu0 0.0
        %2154 = vmatpush1.msra.mxu0 0.0
        %2155 = vmatprep.subr.mxu0 0.0
        %2156 = vmatpush1.msra.mxu0 0.0
        %2157 = vmatprep.subr.mxu0 0.0
        %2158 = vmatpush1.msra.mxu0 0.0
        %2159 = vmatprep.subr.mxu0 0.0
        %2160 = vmatpush1.msra.mxu0 0.0
        %2161 = vmatprep.subr.mxu0 0.0
        %2162 = vmatpush1.msra.mxu0 0.0
        %2163 = vmatprep.subr.mxu0 0.0
        %v2164 = vand.u32 %v2047, 4294901760
        %v2165 = vsub.f32 %v2047, %v2164
        %v2166 = vand.u32 %v2165, 4294901760
        %v2167 = vsub.f32 %v2165, %v2166
        %v2168 = vand.u32 %v2167, 4294901760
        %2169 = vmatpush1.msra.mxu0 %v2168
        %2170 = vmatprep.subr.mxu0 0.0
        %v2171 = vand.u32 %v2046, 4294901760
        %v2172 = vsub.f32 %v2046, %v2171
        %v2173 = vand.u32 %v2172, 4294901760
        %v2174 = vsub.f32 %v2172, %v2173
        %v2175 = vand.u32 %v2174, 4294901760
        %2176 = vmatpush1.msra.mxu0 %v2175
        %2177 = vmatprep.subr.mxu0 0.0
        %2178 = vmatpush2.msra.mxu0 0.0
        %2179 = vmatprep.subr.mxu0 0.0
        %2180 = vmatpush2.msra.mxu0 0.0
        %2181 = vmatprep.subr.mxu0 0.0
        %2182 = vmatpush2.msra.mxu0 0.0
        %2183 = vmatprep.subr.mxu0 0.0
        %2184 = vmatpush2.msra.mxu0 0.0
        %2185 = vmatprep.subr.mxu0 0.0
        %2186 = vmatpush2.msra.mxu0 0.0
        %2187 = vmatprep.subr.mxu0 0.0
        %2188 = vmatpush2.msra.mxu0 0.0
        %2189 = vmatprep.subr.mxu0 0.0
        %2190 = vmatpush2.msra.mxu0 0.0
        %2191 = vmatprep.subr.mxu0 0.0
        %2192 = vmatpush2.msra.mxu0 0.0
        %2193 = vmatprep.subr.mxu0 0.0
        %2194 = vmatpush2.msra.mxu0 0.0
        %2195 = vmatprep.subr.mxu0 0.0
        %2196 = vmatpush2.msra.mxu0 0.0
        %2197 = vmatprep.subr.mxu0 0.0
        %2198 = vmatpush2.msra.mxu0 0.0
        %2199 = vmatprep.subr.mxu0 0.0
        %2200 = vmatpush2.msra.mxu0 0.0
        %2201 = vmatprep.subr.mxu0 0.0
        %2202 = vmatpush2.msra.mxu0 0.0
        %2203 = vmatprep.subr.mxu0 0.0
        %2204 = vmatpush2.msra.mxu0 0.0
        %2205 = vmatprep.subr.mxu0 0.0
        %2206 = vmatpush2.msra.mxu0 0.0
        %2207 = vmatprep.subr.mxu0 0.0
        %2208 = vmatpush2.msra.mxu0 0.0
        %2209 = vmatprep.mubr.f32.mxu0 0.0
        %v2210 = vand.u32 %v1029, 4294901760
        %2211 = vmatmul.mubr.f32.gmra.mxu0 %v2210
        %v2212 = vpop.f32.mrf.mxu0
        %v2213 = vadd.f32 %v2122, %v2212
        %v2214 = vpop.f32.mrf.mxu0
        %2215 = vmatprep.mubr.f32.mxu0 0.0
        %v2216 = vand.u32 %v1032, 4294901760
        %2217 = vmatmul.mubr.f32.gmra.mxu0 %v2216
        %v2218 = vpop.f32.mrf.mxu0
        %v2219 = vadd.f32 %v2132, %v2218
        %v2220 = vpop.f32.mrf.mxu0
        %2221 = vdwg.mxu0
        %2222 = vmatprep.subr.mxu0 0.0
        %2223 = vmatpush1.msra.mxu0 0.0
        %2224 = vmatprep.subr.mxu0 0.0
        %2225 = vmatpush1.msra.mxu0 0.0
        %2226 = vmatprep.subr.mxu0 0.0
        %2227 = vmatpush1.msra.mxu0 0.0
        %2228 = vmatprep.subr.mxu0 0.0
        %2229 = vmatpush1.msra.mxu0 0.0
        %2230 = vmatprep.subr.mxu0 0.0
        %2231 = vmatpush1.msra.mxu0 0.0
        %2232 = vmatprep.subr.mxu0 0.0
        %2233 = vmatpush1.msra.mxu0 0.0
        %2234 = vmatprep.subr.mxu0 0.0
        %2235 = vmatpush1.msra.mxu0 0.0
        %2236 = vmatprep.subr.mxu0 0.0
        %2237 = vmatpush1.msra.mxu0 0.0
        %2238 = vmatprep.subr.mxu0 0.0
        %2239 = vmatpush1.msra.mxu0 0.0
        %2240 = vmatprep.subr.mxu0 0.0
        %2241 = vmatpush1.msra.mxu0 0.0
        %2242 = vmatprep.subr.mxu0 0.0
        %2243 = vmatpush1.msra.mxu0 0.0
        %2244 = vmatprep.subr.mxu0 0.0
        %2245 = vmatpush1.msra.mxu0 0.0
        %2246 = vmatprep.subr.mxu0 0.0
        %2247 = vmatpush1.msra.mxu0 0.0
        %2248 = vmatprep.subr.mxu0 0.0
        %2249 = vmatpush1.msra.mxu0 0.0
        %2250 = vmatprep.subr.mxu0 0.0
        %v2251 = vand.u32 %v2047, 4294901760
        %v2252 = vsub.f32 %v2047, %v2251
        %2253 = vmatpush1.msra.mxu0 %v2252
        %2254 = vmatprep.subr.mxu0 0.0
        %v2255 = vand.u32 %v2046, 4294901760
        %v2256 = vsub.f32 %v2046, %v2255
        %2257 = vmatpush1.msra.mxu0 %v2256
        %2258 = vmatprep.subr.mxu0 0.0
        %2259 = vmatpush2.msra.mxu0 0.0
        %2260 = vmatprep.subr.mxu0 0.0
        %2261 = vmatpush2.msra.mxu0 0.0
        %2262 = vmatprep.subr.mxu0 0.0
        %2263 = vmatpush2.msra.mxu0 0.0
        %2264 = vmatprep.subr.mxu0 0.0
        %2265 = vmatpush2.msra.mxu0 0.0
        %2266 = vmatprep.subr.mxu0 0.0
        %2267 = vmatpush2.msra.mxu0 0.0
        %2268 = vmatprep.subr.mxu0 0.0
        %2269 = vmatpush2.msra.mxu0 0.0
        %2270 = vmatprep.subr.mxu0 0.0
        %2271 = vmatpush2.msra.mxu0 0.0
        %2272 = vmatprep.subr.mxu0 0.0
        %2273 = vmatpush2.msra.mxu0 0.0
        %2274 = vmatprep.subr.mxu0 0.0
        %2275 = vmatpush2.msra.mxu0 0.0
        %2276 = vmatprep.subr.mxu0 0.0
        %2277 = vmatpush2.msra.mxu0 0.0
        %2278 = vmatprep.subr.mxu0 0.0
        %2279 = vmatpush2.msra.mxu0 0.0
        %2280 = vmatprep.subr.mxu0 0.0
        %2281 = vmatpush2.msra.mxu0 0.0
        %2282 = vmatprep.subr.mxu0 0.0
        %2283 = vmatpush2.msra.mxu0 0.0
        %2284 = vmatprep.subr.mxu0 0.0
        %2285 = vmatpush2.msra.mxu0 0.0
        %2286 = vmatprep.subr.mxu0 0.0
        %2287 = vmatpush2.msra.mxu0 0.0
        %2288 = vmatprep.subr.mxu0 0.0
        %2289 = vmatpush2.msra.mxu0 0.0
        %2290 = vmatprep.mubr.f32.mxu0 0.0
        %v2291 = vand.u32 %v1029, 4294901760
        %v2292 = vsub.f32 %v1029, %v2291
        %2293 = vmatmul.mubr.f32.gmra.mxu0 %v2292
        %v2294 = vpop.f32.mrf.mxu0
        %v2295 = vadd.f32 %v2213, %v2294
        %v2296 = vpop.f32.mrf.mxu0
        %2297 = vmatprep.mubr.f32.mxu0 0.0
        %v2298 = vand.u32 %v1032, 4294901760
        %v2299 = vsub.f32 %v1032, %v2298
        %2300 = vmatmul.mubr.f32.gmra.mxu0 %v2299
        %v2301 = vpop.f32.mrf.mxu0
        %v2302 = vadd.f32 %v2219, %v2301
        %v2303 = vpop.f32.mrf.mxu0
        %2304 = vdwg.mxu0
        %2305 = vmatprep.subr.mxu0 0.0
        %2306 = vmatpush1.msra.mxu0 0.0
        %2307 = vmatprep.subr.mxu0 0.0
        %2308 = vmatpush1.msra.mxu0 0.0
        %2309 = vmatprep.subr.mxu0 0.0
        %2310 = vmatpush1.msra.mxu0 0.0
        %2311 = vmatprep.subr.mxu0 0.0
        %2312 = vmatpush1.msra.mxu0 0.0
        %2313 = vmatprep.subr.mxu0 0.0
        %2314 = vmatpush1.msra.mxu0 0.0
        %2315 = vmatprep.subr.mxu0 0.0
        %2316 = vmatpush1.msra.mxu0 0.0
        %2317 = vmatprep.subr.mxu0 0.0
        %2318 = vmatpush1.msra.mxu0 0.0
        %2319 = vmatprep.subr.mxu0 0.0
        %2320 = vmatpush1.msra.mxu0 0.0
        %2321 = vmatprep.subr.mxu0 0.0
        %2322 = vmatpush1.msra.mxu0 0.0
        %2323 = vmatprep.subr.mxu0 0.0
        %2324 = vmatpush1.msra.mxu0 0.0
        %2325 = vmatprep.subr.mxu0 0.0
        %2326 = vmatpush1.msra.mxu0 0.0
        %2327 = vmatprep.subr.mxu0 0.0
        %2328 = vmatpush1.msra.mxu0 0.0
        %2329 = vmatprep.subr.mxu0 0.0
        %2330 = vmatpush1.msra.mxu0 0.0
        %2331 = vmatprep.subr.mxu0 0.0
        %2332 = vmatpush1.msra.mxu0 0.0
        %2333 = vmatprep.subr.mxu0 0.0
        %v2334 = vand.u32 %v2047, 4294901760
        %2335 = vmatpush1.msra.mxu0 %v2334
        %2336 = vmatprep.subr.mxu0 0.0
        %v2337 = vand.u32 %v2046, 4294901760
        %2338 = vmatpush1.msra.mxu0 %v2337
        %2339 = vmatprep.subr.mxu0 0.0
        %2340 = vmatpush2.msra.mxu0 0.0
        %2341 = vmatprep.subr.mxu0 0.0
        %2342 = vmatpush2.msra.mxu0 0.0
        %2343 = vmatprep.subr.mxu0 0.0
        %2344 = vmatpush2.msra.mxu0 0.0
        %2345 = vmatprep.subr.mxu0 0.0
        %2346 = vmatpush2.msra.mxu0 0.0
        %2347 = vmatprep.subr.mxu0 0.0
        %2348 = vmatpush2.msra.mxu0 0.0
        %2349 = vmatprep.subr.mxu0 0.0
        %2350 = vmatpush2.msra.mxu0 0.0
        %2351 = vmatprep.subr.mxu0 0.0
        %2352 = vmatpush2.msra.mxu0 0.0
        %2353 = vmatprep.subr.mxu0 0.0
        %2354 = vmatpush2.msra.mxu0 0.0
        %2355 = vmatprep.subr.mxu0 0.0
        %2356 = vmatpush2.msra.mxu0 0.0
        %2357 = vmatprep.subr.mxu0 0.0
        %2358 = vmatpush2.msra.mxu0 0.0
        %2359 = vmatprep.subr.mxu0 0.0
        %2360 = vmatpush2.msra.mxu0 0.0
        %2361 = vmatprep.subr.mxu0 0.0
        %2362 = vmatpush2.msra.mxu0 0.0
        %2363 = vmatprep.subr.mxu0 0.0
        %2364 = vmatpush2.msra.mxu0 0.0
        %2365 = vmatprep.subr.mxu0 0.0
        %2366 = vmatpush2.msra.mxu0 0.0
        %2367 = vmatprep.subr.mxu0 0.0
        %2368 = vmatpush2.msra.mxu0 0.0
        %2369 = vmatprep.subr.mxu0 0.0
        %2370 = vmatpush2.msra.mxu0 0.0
        %2371 = vmatprep.mubr.f32.mxu0 0.0
        %v2372 = vand.u32 %v1029, 4294901760
        %v2373 = vsub.f32 %v1029, %v2372
        %v2374 = vand.u32 %v2373, 4294901760
        %2375 = vmatmul.mubr.f32.gmra.mxu0 %v2374
        %v2376 = vpop.f32.mrf.mxu0
        %v2377 = vadd.f32 %v2295, %v2376
        %v2378 = vpop.f32.mrf.mxu0
        %2379 = vmatprep.mubr.f32.mxu0 0.0
        %v2380 = vand.u32 %v1032, 4294901760
        %v2381 = vsub.f32 %v1032, %v2380
        %v2382 = vand.u32 %v2381, 4294901760
        %2383 = vmatmul.mubr.f32.gmra.mxu0 %v2382
        %v2384 = vpop.f32.mrf.mxu0
        %v2385 = vadd.f32 %v2302, %v2384
        %v2386 = vpop.f32.mrf.mxu0
        %2387 = vdwg.mxu0
        %2388 = vmatprep.subr.mxu0 0.0
        %2389 = vmatpush1.msra.mxu0 0.0
        %2390 = vmatprep.subr.mxu0 0.0
        %2391 = vmatpush1.msra.mxu0 0.0
        %2392 = vmatprep.subr.mxu0 0.0
        %2393 = vmatpush1.msra.mxu0 0.0
        %2394 = vmatprep.subr.mxu0 0.0
        %2395 = vmatpush1.msra.mxu0 0.0
        %2396 = vmatprep.subr.mxu0 0.0
        %2397 = vmatpush1.msra.mxu0 0.0
        %2398 = vmatprep.subr.mxu0 0.0
        %2399 = vmatpush1.msra.mxu0 0.0
        %2400 = vmatprep.subr.mxu0 0.0
        %2401 = vmatpush1.msra.mxu0 0.0
        %2402 = vmatprep.subr.mxu0 0.0
        %2403 = vmatpush1.msra.mxu0 0.0
        %2404 = vmatprep.subr.mxu0 0.0
        %2405 = vmatpush1.msra.mxu0 0.0
        %2406 = vmatprep.subr.mxu0 0.0
        %2407 = vmatpush1.msra.mxu0 0.0
        %2408 = vmatprep.subr.mxu0 0.0
        %2409 = vmatpush1.msra.mxu0 0.0
        %2410 = vmatprep.subr.mxu0 0.0
        %2411 = vmatpush1.msra.mxu0 0.0
        %2412 = vmatprep.subr.mxu0 0.0
        %2413 = vmatpush1.msra.mxu0 0.0
        %2414 = vmatprep.subr.mxu0 0.0
        %2415 = vmatpush1.msra.mxu0 0.0
        %2416 = vmatprep.subr.mxu0 0.0
        %v2417 = vand.u32 %v2047, 4294901760
        %v2418 = vsub.f32 %v2047, %v2417
        %v2419 = vand.u32 %v2418, 4294901760
        %2420 = vmatpush1.msra.mxu0 %v2419
        %2421 = vmatprep.subr.mxu0 0.0
        %v2422 = vand.u32 %v2046, 4294901760
        %v2423 = vsub.f32 %v2046, %v2422
        %v2424 = vand.u32 %v2423, 4294901760
        %2425 = vmatpush1.msra.mxu0 %v2424
        %2426 = vmatprep.subr.mxu0 0.0
        %2427 = vmatpush2.msra.mxu0 0.0
        %2428 = vmatprep.subr.mxu0 0.0
        %2429 = vmatpush2.msra.mxu0 0.0
        %2430 = vmatprep.subr.mxu0 0.0
        %2431 = vmatpush2.msra.mxu0 0.0
        %2432 = vmatprep.subr.mxu0 0.0
        %2433 = vmatpush2.msra.mxu0 0.0
        %2434 = vmatprep.subr.mxu0 0.0
        %2435 = vmatpush2.msra.mxu0 0.0
        %2436 = vmatprep.subr.mxu0 0.0
        %2437 = vmatpush2.msra.mxu0 0.0
        %2438 = vmatprep.subr.mxu0 0.0
        %2439 = vmatpush2.msra.mxu0 0.0
        %2440 = vmatprep.subr.mxu0 0.0
        %2441 = vmatpush2.msra.mxu0 0.0
        %2442 = vmatprep.subr.mxu0 0.0
        %2443 = vmatpush2.msra.mxu0 0.0
        %2444 = vmatprep.subr.mxu0 0.0
        %2445 = vmatpush2.msra.mxu0 0.0
        %2446 = vmatprep.subr.mxu0 0.0
        %2447 = vmatpush2.msra.mxu0 0.0
        %2448 = vmatprep.subr.mxu0 0.0
        %2449 = vmatpush2.msra.mxu0 0.0
        %2450 = vmatprep.subr.mxu0 0.0
        %2451 = vmatpush2.msra.mxu0 0.0
        %2452 = vmatprep.subr.mxu0 0.0
        %2453 = vmatpush2.msra.mxu0 0.0
        %2454 = vmatprep.subr.mxu0 0.0
        %2455 = vmatpush2.msra.mxu0 0.0
        %2456 = vmatprep.subr.mxu0 0.0
        %2457 = vmatpush2.msra.mxu0 0.0
        %2458 = vmatprep.mubr.f32.mxu0 0.0
        %v2459 = vand.u32 %v1029, 4294901760
        %2460 = vmatmul.mubr.f32.gmra.mxu0 %v2459
        %v2461 = vpop.f32.mrf.mxu0
        %v2462 = vadd.f32 %v2377, %v2461
        %v2463 = vpop.f32.mrf.mxu0
        %2464 = vmatprep.mubr.f32.mxu0 0.0
        %v2465 = vand.u32 %v1032, 4294901760
        %2466 = vmatmul.mubr.f32.gmra.mxu0 %v2465
        %v2467 = vpop.f32.mrf.mxu0
        %v2468 = vadd.f32 %v2385, %v2467
        %v2469 = vpop.f32.mrf.mxu0
        %2470 = vdwg.mxu0
        %2471 = vmatprep.subr.mxu0 0.0
        %2472 = vmatpush1.msra.mxu0 0.0
        %2473 = vmatprep.subr.mxu0 0.0
        %2474 = vmatpush1.msra.mxu0 0.0
        %2475 = vmatprep.subr.mxu0 0.0
        %2476 = vmatpush1.msra.mxu0 0.0
        %2477 = vmatprep.subr.mxu0 0.0
        %2478 = vmatpush1.msra.mxu0 0.0
        %2479 = vmatprep.subr.mxu0 0.0
        %2480 = vmatpush1.msra.mxu0 0.0
        %2481 = vmatprep.subr.mxu0 0.0
        %2482 = vmatpush1.msra.mxu0 0.0
        %2483 = vmatprep.subr.mxu0 0.0
        %2484 = vmatpush1.msra.mxu0 0.0
        %2485 = vmatprep.subr.mxu0 0.0
        %2486 = vmatpush1.msra.mxu0 0.0
        %2487 = vmatprep.subr.mxu0 0.0
        %2488 = vmatpush1.msra.mxu0 0.0
        %2489 = vmatprep.subr.mxu0 0.0
        %2490 = vmatpush1.msra.mxu0 0.0
        %2491 = vmatprep.subr.mxu0 0.0
        %2492 = vmatpush1.msra.mxu0 0.0
        %2493 = vmatprep.subr.mxu0 0.0
        %2494 = vmatpush1.msra.mxu0 0.0
        %2495 = vmatprep.subr.mxu0 0.0
        %2496 = vmatpush1.msra.mxu0 0.0
        %2497 = vmatprep.subr.mxu0 0.0
        %2498 = vmatpush1.msra.mxu0 0.0
        %2499 = vmatprep.subr.mxu0 0.0
        %v2500 = vand.u32 %v2047, 4294901760
        %2501 = vmatpush1.msra.mxu0 %v2500
        %2502 = vmatprep.subr.mxu0 0.0
        %v2503 = vand.u32 %v2046, 4294901760
        %2504 = vmatpush1.msra.mxu0 %v2503
        %2505 = vmatprep.subr.mxu0 0.0
        %2506 = vmatpush2.msra.mxu0 0.0
        %2507 = vmatprep.subr.mxu0 0.0
        %2508 = vmatpush2.msra.mxu0 0.0
        %2509 = vmatprep.subr.mxu0 0.0
        %2510 = vmatpush2.msra.mxu0 0.0
        %2511 = vmatprep.subr.mxu0 0.0
        %2512 = vmatpush2.msra.mxu0 0.0
        %2513 = vmatprep.subr.mxu0 0.0
        %2514 = vmatpush2.msra.mxu0 0.0
        %2515 = vmatprep.subr.mxu0 0.0
        %2516 = vmatpush2.msra.mxu0 0.0
        %2517 = vmatprep.subr.mxu0 0.0
        %2518 = vmatpush2.msra.mxu0 0.0
        %2519 = vmatprep.subr.mxu0 0.0
        %2520 = vmatpush2.msra.mxu0 0.0
        %2521 = vmatprep.subr.mxu0 0.0
        %2522 = vmatpush2.msra.mxu0 0.0
        %2523 = vmatprep.subr.mxu0 0.0
        %2524 = vmatpush2.msra.mxu0 0.0
        %2525 = vmatprep.subr.mxu0 0.0
        %2526 = vmatpush2.msra.mxu0 0.0
        %2527 = vmatprep.subr.mxu0 0.0
        %2528 = vmatpush2.msra.mxu0 0.0
        %2529 = vmatprep.subr.mxu0 0.0
        %2530 = vmatpush2.msra.mxu0 0.0
        %2531 = vmatprep.subr.mxu0 0.0
        %2532 = vmatpush2.msra.mxu0 0.0
        %2533 = vmatprep.subr.mxu0 0.0
        %2534 = vmatpush2.msra.mxu0 0.0
        %2535 = vmatprep.subr.mxu0 0.0
        %2536 = vmatpush2.msra.mxu0 0.0
        %2537 = vmatprep.mubr.f32.mxu0 0.0
        %v2538 = vand.u32 %v1029, 4294901760
        %2539 = vmatmul.mubr.f32.gmra.mxu0 %v2538
        %v2540 = vpop.f32.mrf.mxu0
        %v2541 = vadd.f32 %v2462, %v2540
        %v2542 = vpop.f32.mrf.mxu0
        %2543 = vmatprep.mubr.f32.mxu0 0.0
        %v2544 = vand.u32 %v1032, 4294901760
        %2545 = vmatmul.mubr.f32.gmra.mxu0 %v2544
        %v2546 = vpop.f32.mrf.mxu0
        %v2547 = vadd.f32 %v2468, %v2546
        %v2548 = vpop.f32.mrf.mxu0
        %2549 = vdwg.mxu0
        %2550 = vst.msk [vmem:[%s2045] sm:$0xff] %vm233, %v2541
        %2551 = vst.msk [vmem:[%s2045 + $0x8] sm:$0xff] %vm233, %v2547
        %s2552 = scalar_lea.vmem %s218, 48 [#allocation8]
        %v2553 = vld [vmem:[%s2552] sm:$0xff]
        %v2554 = vld [vmem:[%s2552 + $0x8] sm:$0xff]
        %2555 = vmatprep.subr.mxu0 0.0
        %2556 = vmatpush1.msra.mxu0 0.0
        %2557 = vmatprep.subr.mxu0 0.0
        %2558 = vmatpush1.msra.mxu0 0.0
        %2559 = vmatprep.subr.mxu0 0.0
        %2560 = vmatpush1.msra.mxu0 0.0
        %2561 = vmatprep.subr.mxu0 0.0
        %2562 = vmatpush1.msra.mxu0 0.0
        %2563 = vmatprep.subr.mxu0 0.0
        %2564 = vmatpush1.msra.mxu0 0.0
        %2565 = vmatprep.subr.mxu0 0.0
        %2566 = vmatpush1.msra.mxu0 0.0
        %2567 = vmatprep.subr.mxu0 0.0
        %2568 = vmatpush1.msra.mxu0 0.0
        %2569 = vmatprep.subr.mxu0 0.0
        %2570 = vmatpush1.msra.mxu0 0.0
        %2571 = vmatprep.subr.mxu0 0.0
        %2572 = vmatpush1.msra.mxu0 0.0
        %2573 = vmatprep.subr.mxu0 0.0
        %2574 = vmatpush1.msra.mxu0 0.0
        %2575 = vmatprep.subr.mxu0 0.0
        %2576 = vmatpush1.msra.mxu0 0.0
        %2577 = vmatprep.subr.mxu0 0.0
        %2578 = vmatpush1.msra.mxu0 0.0
        %2579 = vmatprep.subr.mxu0 0.0
        %2580 = vmatpush1.msra.mxu0 0.0
        %2581 = vmatprep.subr.mxu0 0.0
        %2582 = vmatpush1.msra.mxu0 0.0
        %2583 = vmatprep.subr.mxu0 0.0
        %v2584 = vand.u32 %v2554, 4294901760
        %2585 = vmatpush1.msra.mxu0 %v2584
        %2586 = vmatprep.subr.mxu0 0.0
        %v2587 = vand.u32 %v2553, 4294901760
        %2588 = vmatpush1.msra.mxu0 %v2587
        %2589 = vmatprep.subr.mxu0 0.0
        %2590 = vmatpush2.msra.mxu0 0.0
        %2591 = vmatprep.subr.mxu0 0.0
        %2592 = vmatpush2.msra.mxu0 0.0
        %2593 = vmatprep.subr.mxu0 0.0
        %2594 = vmatpush2.msra.mxu0 0.0
        %2595 = vmatprep.subr.mxu0 0.0
        %2596 = vmatpush2.msra.mxu0 0.0
        %2597 = vmatprep.subr.mxu0 0.0
        %2598 = vmatpush2.msra.mxu0 0.0
        %2599 = vmatprep.subr.mxu0 0.0
        %2600 = vmatpush2.msra.mxu0 0.0
        %2601 = vmatprep.subr.mxu0 0.0
        %2602 = vmatpush2.msra.mxu0 0.0
        %2603 = vmatprep.subr.mxu0 0.0
        %2604 = vmatpush2.msra.mxu0 0.0
        %2605 = vmatprep.subr.mxu0 0.0
        %2606 = vmatpush2.msra.mxu0 0.0
        %2607 = vmatprep.subr.mxu0 0.0
        %2608 = vmatpush2.msra.mxu0 0.0
        %2609 = vmatprep.subr.mxu0 0.0
        %2610 = vmatpush2.msra.mxu0 0.0
        %2611 = vmatprep.subr.mxu0 0.0
        %2612 = vmatpush2.msra.mxu0 0.0
        %2613 = vmatprep.subr.mxu0 0.0
        %2614 = vmatpush2.msra.mxu0 0.0
        %2615 = vmatprep.subr.mxu0 0.0
        %2616 = vmatpush2.msra.mxu0 0.0
        %2617 = vmatprep.subr.mxu0 0.0
        %2618 = vmatpush2.msra.mxu0 0.0
        %2619 = vmatprep.subr.mxu0 0.0
        %2620 = vmatpush2.msra.mxu0 0.0
        %2621 = vmatprep.mubr.f32.mxu0 0.0
        %v2622 = vand.u32 %v1029, 4294901760
        %v2623 = vsub.f32 %v1029, %v2622
        %v2624 = vand.u32 %v2623, 4294901760
        %v2625 = vsub.f32 %v2623, %v2624
        %v2626 = vand.u32 %v2625, 4294901760
        %2627 = vmatmul.mubr.f32.gmra.mxu0 %v2626
        %v2628 = vpop.f32.mrf.mxu0
        %v2629 = vadd.f32 0.0, %v2628
        %v2630 = vpop.f32.mrf.mxu0
        %2631 = vmatprep.mubr.f32.mxu0 0.0
        %v2632 = vand.u32 %v1032, 4294901760
        %v2633 = vsub.f32 %v1032, %v2632
        %v2634 = vand.u32 %v2633, 4294901760
        %v2635 = vsub.f32 %v2633, %v2634
        %v2636 = vand.u32 %v2635, 4294901760
        %2637 = vmatmul.mubr.f32.gmra.mxu0 %v2636
        %v2638 = vpop.f32.mrf.mxu0
        %v2639 = vadd.f32 0.0, %v2638
        %v2640 = vpop.f32.mrf.mxu0
        %2641 = vdwg.mxu0
        %2642 = vmatprep.subr.mxu0 0.0
        %2643 = vmatpush1.msra.mxu0 0.0
        %2644 = vmatprep.subr.mxu0 0.0
        %2645 = vmatpush1.msra.mxu0 0.0
        %2646 = vmatprep.subr.mxu0 0.0
        %2647 = vmatpush1.msra.mxu0 0.0
        %2648 = vmatprep.subr.mxu0 0.0
        %2649 = vmatpush1.msra.mxu0 0.0
        %2650 = vmatprep.subr.mxu0 0.0
        %2651 = vmatpush1.msra.mxu0 0.0
        %2652 = vmatprep.subr.mxu0 0.0
        %2653 = vmatpush1.msra.mxu0 0.0
        %2654 = vmatprep.subr.mxu0 0.0
        %2655 = vmatpush1.msra.mxu0 0.0
        %2656 = vmatprep.subr.mxu0 0.0
        %2657 = vmatpush1.msra.mxu0 0.0
        %2658 = vmatprep.subr.mxu0 0.0
        %2659 = vmatpush1.msra.mxu0 0.0
        %2660 = vmatprep.subr.mxu0 0.0
        %2661 = vmatpush1.msra.mxu0 0.0
        %2662 = vmatprep.subr.mxu0 0.0
        %2663 = vmatpush1.msra.mxu0 0.0
        %2664 = vmatprep.subr.mxu0 0.0
        %2665 = vmatpush1.msra.mxu0 0.0
        %2666 = vmatprep.subr.mxu0 0.0
        %2667 = vmatpush1.msra.mxu0 0.0
        %2668 = vmatprep.subr.mxu0 0.0
        %2669 = vmatpush1.msra.mxu0 0.0
        %2670 = vmatprep.subr.mxu0 0.0
        %v2671 = vand.u32 %v2554, 4294901760
        %v2672 = vsub.f32 %v2554, %v2671
        %v2673 = vand.u32 %v2672, 4294901760
        %v2674 = vsub.f32 %v2672, %v2673
        %v2675 = vand.u32 %v2674, 4294901760
        %2676 = vmatpush1.msra.mxu0 %v2675
        %2677 = vmatprep.subr.mxu0 0.0
        %v2678 = vand.u32 %v2553, 4294901760
        %v2679 = vsub.f32 %v2553, %v2678
        %v2680 = vand.u32 %v2679, 4294901760
        %v2681 = vsub.f32 %v2679, %v2680
        %v2682 = vand.u32 %v2681, 4294901760
        %2683 = vmatpush1.msra.mxu0 %v2682
        %2684 = vmatprep.subr.mxu0 0.0
        %2685 = vmatpush2.msra.mxu0 0.0
        %2686 = vmatprep.subr.mxu0 0.0
        %2687 = vmatpush2.msra.mxu0 0.0
        %2688 = vmatprep.subr.mxu0 0.0
        %2689 = vmatpush2.msra.mxu0 0.0
        %2690 = vmatprep.subr.mxu0 0.0
        %2691 = vmatpush2.msra.mxu0 0.0
        %2692 = vmatprep.subr.mxu0 0.0
        %2693 = vmatpush2.msra.mxu0 0.0
        %2694 = vmatprep.subr.mxu0 0.0
        %2695 = vmatpush2.msra.mxu0 0.0
        %2696 = vmatprep.subr.mxu0 0.0
        %2697 = vmatpush2.msra.mxu0 0.0
        %2698 = vmatprep.subr.mxu0 0.0
        %2699 = vmatpush2.msra.mxu0 0.0
        %2700 = vmatprep.subr.mxu0 0.0
        %2701 = vmatpush2.msra.mxu0 0.0
        %2702 = vmatprep.subr.mxu0 0.0
        %2703 = vmatpush2.msra.mxu0 0.0
        %2704 = vmatprep.subr.mxu0 0.0
        %2705 = vmatpush2.msra.mxu0 0.0
        %2706 = vmatprep.subr.mxu0 0.0
        %2707 = vmatpush2.msra.mxu0 0.0
        %2708 = vmatprep.subr.mxu0 0.0
        %2709 = vmatpush2.msra.mxu0 0.0
        %2710 = vmatprep.subr.mxu0 0.0
        %2711 = vmatpush2.msra.mxu0 0.0
        %2712 = vmatprep.subr.mxu0 0.0
        %2713 = vmatpush2.msra.mxu0 0.0
        %2714 = vmatprep.subr.mxu0 0.0
        %2715 = vmatpush2.msra.mxu0 0.0
        %2716 = vmatprep.mubr.f32.mxu0 0.0
        %v2717 = vand.u32 %v1029, 4294901760
        %2718 = vmatmul.mubr.f32.gmra.mxu0 %v2717
        %v2719 = vpop.f32.mrf.mxu0
        %v2720 = vadd.f32 %v2629, %v2719
        %v2721 = vpop.f32.mrf.mxu0
        %2722 = vmatprep.mubr.f32.mxu0 0.0
        %v2723 = vand.u32 %v1032, 4294901760
        %2724 = vmatmul.mubr.f32.gmra.mxu0 %v2723
        %v2725 = vpop.f32.mrf.mxu0
        %v2726 = vadd.f32 %v2639, %v2725
        %v2727 = vpop.f32.mrf.mxu0
        %2728 = vdwg.mxu0
        %2729 = vmatprep.subr.mxu0 0.0
        %2730 = vmatpush1.msra.mxu0 0.0
        %2731 = vmatprep.subr.mxu0 0.0
        %2732 = vmatpush1.msra.mxu0 0.0
        %2733 = vmatprep.subr.mxu0 0.0
        %2734 = vmatpush1.msra.mxu0 0.0
        %2735 = vmatprep.subr.mxu0 0.0
        %2736 = vmatpush1.msra.mxu0 0.0
        %2737 = vmatprep.subr.mxu0 0.0
        %2738 = vmatpush1.msra.mxu0 0.0
        %2739 = vmatprep.subr.mxu0 0.0
        %2740 = vmatpush1.msra.mxu0 0.0
        %2741 = vmatprep.subr.mxu0 0.0
        %2742 = vmatpush1.msra.mxu0 0.0
        %2743 = vmatprep.subr.mxu0 0.0
        %2744 = vmatpush1.msra.mxu0 0.0
        %2745 = vmatprep.subr.mxu0 0.0
        %2746 = vmatpush1.msra.mxu0 0.0
        %2747 = vmatprep.subr.mxu0 0.0
        %2748 = vmatpush1.msra.mxu0 0.0
        %2749 = vmatprep.subr.mxu0 0.0
        %2750 = vmatpush1.msra.mxu0 0.0
        %2751 = vmatprep.subr.mxu0 0.0
        %2752 = vmatpush1.msra.mxu0 0.0
        %2753 = vmatprep.subr.mxu0 0.0
        %2754 = vmatpush1.msra.mxu0 0.0
        %2755 = vmatprep.subr.mxu0 0.0
        %2756 = vmatpush1.msra.mxu0 0.0
        %2757 = vmatprep.subr.mxu0 0.0
        %v2758 = vand.u32 %v2554, 4294901760
        %v2759 = vsub.f32 %v2554, %v2758
        %2760 = vmatpush1.msra.mxu0 %v2759
        %2761 = vmatprep.subr.mxu0 0.0
        %v2762 = vand.u32 %v2553, 4294901760
        %v2763 = vsub.f32 %v2553, %v2762
        %2764 = vmatpush1.msra.mxu0 %v2763
        %2765 = vmatprep.subr.mxu0 0.0
        %2766 = vmatpush2.msra.mxu0 0.0
        %2767 = vmatprep.subr.mxu0 0.0
        %2768 = vmatpush2.msra.mxu0 0.0
        %2769 = vmatprep.subr.mxu0 0.0
        %2770 = vmatpush2.msra.mxu0 0.0
        %2771 = vmatprep.subr.mxu0 0.0
        %2772 = vmatpush2.msra.mxu0 0.0
        %2773 = vmatprep.subr.mxu0 0.0
        %2774 = vmatpush2.msra.mxu0 0.0
        %2775 = vmatprep.subr.mxu0 0.0
        %2776 = vmatpush2.msra.mxu0 0.0
        %2777 = vmatprep.subr.mxu0 0.0
        %2778 = vmatpush2.msra.mxu0 0.0
        %2779 = vmatprep.subr.mxu0 0.0
        %2780 = vmatpush2.msra.mxu0 0.0
        %2781 = vmatprep.subr.mxu0 0.0
        %2782 = vmatpush2.msra.mxu0 0.0
        %2783 = vmatprep.subr.mxu0 0.0
        %2784 = vmatpush2.msra.mxu0 0.0
        %2785 = vmatprep.subr.mxu0 0.0
        %2786 = vmatpush2.msra.mxu0 0.0
        %2787 = vmatprep.subr.mxu0 0.0
        %2788 = vmatpush2.msra.mxu0 0.0
        %2789 = vmatprep.subr.mxu0 0.0
        %2790 = vmatpush2.msra.mxu0 0.0
        %2791 = vmatprep.subr.mxu0 0.0
        %2792 = vmatpush2.msra.mxu0 0.0
        %2793 = vmatprep.subr.mxu0 0.0
        %2794 = vmatpush2.msra.mxu0 0.0
        %2795 = vmatprep.subr.mxu0 0.0
        %2796 = vmatpush2.msra.mxu0 0.0
        %2797 = vmatprep.mubr.f32.mxu0 0.0
        %v2798 = vand.u32 %v1029, 4294901760
        %v2799 = vsub.f32 %v1029, %v2798
        %2800 = vmatmul.mubr.f32.gmra.mxu0 %v2799
        %v2801 = vpop.f32.mrf.mxu0
        %v2802 = vadd.f32 %v2720, %v2801
        %v2803 = vpop.f32.mrf.mxu0
        %2804 = vmatprep.mubr.f32.mxu0 0.0
        %v2805 = vand.u32 %v1032, 4294901760
        %v2806 = vsub.f32 %v1032, %v2805
        %2807 = vmatmul.mubr.f32.gmra.mxu0 %v2806
        %v2808 = vpop.f32.mrf.mxu0
        %v2809 = vadd.f32 %v2726, %v2808
        %v2810 = vpop.f32.mrf.mxu0
        %2811 = vdwg.mxu0
        %2812 = vmatprep.subr.mxu0 0.0
        %2813 = vmatpush1.msra.mxu0 0.0
        %2814 = vmatprep.subr.mxu0 0.0
        %2815 = vmatpush1.msra.mxu0 0.0
        %2816 = vmatprep.subr.mxu0 0.0
        %2817 = vmatpush1.msra.mxu0 0.0
        %2818 = vmatprep.subr.mxu0 0.0
        %2819 = vmatpush1.msra.mxu0 0.0
        %2820 = vmatprep.subr.mxu0 0.0
        %2821 = vmatpush1.msra.mxu0 0.0
        %2822 = vmatprep.subr.mxu0 0.0
        %2823 = vmatpush1.msra.mxu0 0.0
        %2824 = vmatprep.subr.mxu0 0.0
        %2825 = vmatpush1.msra.mxu0 0.0
        %2826 = vmatprep.subr.mxu0 0.0
        %2827 = vmatpush1.msra.mxu0 0.0
        %2828 = vmatprep.subr.mxu0 0.0
        %2829 = vmatpush1.msra.mxu0 0.0
        %2830 = vmatprep.subr.mxu0 0.0
        %2831 = vmatpush1.msra.mxu0 0.0
        %2832 = vmatprep.subr.mxu0 0.0
        %2833 = vmatpush1.msra.mxu0 0.0
        %2834 = vmatprep.subr.mxu0 0.0
        %2835 = vmatpush1.msra.mxu0 0.0
        %2836 = vmatprep.subr.mxu0 0.0
        %2837 = vmatpush1.msra.mxu0 0.0
        %2838 = vmatprep.subr.mxu0 0.0
        %2839 = vmatpush1.msra.mxu0 0.0
        %2840 = vmatprep.subr.mxu0 0.0
        %v2841 = vand.u32 %v2554, 4294901760
        %2842 = vmatpush1.msra.mxu0 %v2841
        %2843 = vmatprep.subr.mxu0 0.0
        %v2844 = vand.u32 %v2553, 4294901760
        %2845 = vmatpush1.msra.mxu0 %v2844
        %2846 = vmatprep.subr.mxu0 0.0
        %2847 = vmatpush2.msra.mxu0 0.0
        %2848 = vmatprep.subr.mxu0 0.0
        %2849 = vmatpush2.msra.mxu0 0.0
        %2850 = vmatprep.subr.mxu0 0.0
        %2851 = vmatpush2.msra.mxu0 0.0
        %2852 = vmatprep.subr.mxu0 0.0
        %2853 = vmatpush2.msra.mxu0 0.0
        %2854 = vmatprep.subr.mxu0 0.0
        %2855 = vmatpush2.msra.mxu0 0.0
        %2856 = vmatprep.subr.mxu0 0.0
        %2857 = vmatpush2.msra.mxu0 0.0
        %2858 = vmatprep.subr.mxu0 0.0
        %2859 = vmatpush2.msra.mxu0 0.0
        %2860 = vmatprep.subr.mxu0 0.0
        %2861 = vmatpush2.msra.mxu0 0.0
        %2862 = vmatprep.subr.mxu0 0.0
        %2863 = vmatpush2.msra.mxu0 0.0
        %2864 = vmatprep.subr.mxu0 0.0
        %2865 = vmatpush2.msra.mxu0 0.0
        %2866 = vmatprep.subr.mxu0 0.0
        %2867 = vmatpush2.msra.mxu0 0.0
        %2868 = vmatprep.subr.mxu0 0.0
        %2869 = vmatpush2.msra.mxu0 0.0
        %2870 = vmatprep.subr.mxu0 0.0
        %2871 = vmatpush2.msra.mxu0 0.0
        %2872 = vmatprep.subr.mxu0 0.0
        %2873 = vmatpush2.msra.mxu0 0.0
        %2874 = vmatprep.subr.mxu0 0.0
        %2875 = vmatpush2.msra.mxu0 0.0
        %2876 = vmatprep.subr.mxu0 0.0
        %2877 = vmatpush2.msra.mxu0 0.0
        %2878 = vmatprep.mubr.f32.mxu0 0.0
        %v2879 = vand.u32 %v1029, 4294901760
        %v2880 = vsub.f32 %v1029, %v2879
        %v2881 = vand.u32 %v2880, 4294901760
        %2882 = vmatmul.mubr.f32.gmra.mxu0 %v2881
        %v2883 = vpop.f32.mrf.mxu0
        %v2884 = vadd.f32 %v2802, %v2883
        %v2885 = vpop.f32.mrf.mxu0
        %2886 = vmatprep.mubr.f32.mxu0 0.0
        %v2887 = vand.u32 %v1032, 4294901760
        %v2888 = vsub.f32 %v1032, %v2887
        %v2889 = vand.u32 %v2888, 4294901760
        %2890 = vmatmul.mubr.f32.gmra.mxu0 %v2889
        %v2891 = vpop.f32.mrf.mxu0
        %v2892 = vadd.f32 %v2809, %v2891
        %v2893 = vpop.f32.mrf.mxu0
        %2894 = vdwg.mxu0
        %2895 = vmatprep.subr.mxu0 0.0
        %2896 = vmatpush1.msra.mxu0 0.0
        %2897 = vmatprep.subr.mxu0 0.0
        %2898 = vmatpush1.msra.mxu0 0.0
        %2899 = vmatprep.subr.mxu0 0.0
        %2900 = vmatpush1.msra.mxu0 0.0
        %2901 = vmatprep.subr.mxu0 0.0
        %2902 = vmatpush1.msra.mxu0 0.0
        %2903 = vmatprep.subr.mxu0 0.0
        %2904 = vmatpush1.msra.mxu0 0.0
        %2905 = vmatprep.subr.mxu0 0.0
        %2906 = vmatpush1.msra.mxu0 0.0
        %2907 = vmatprep.subr.mxu0 0.0
        %2908 = vmatpush1.msra.mxu0 0.0
        %2909 = vmatprep.subr.mxu0 0.0
        %2910 = vmatpush1.msra.mxu0 0.0
        %2911 = vmatprep.subr.mxu0 0.0
        %2912 = vmatpush1.msra.mxu0 0.0
        %2913 = vmatprep.subr.mxu0 0.0
        %2914 = vmatpush1.msra.mxu0 0.0
        %2915 = vmatprep.subr.mxu0 0.0
        %2916 = vmatpush1.msra.mxu0 0.0
        %2917 = vmatprep.subr.mxu0 0.0
        %2918 = vmatpush1.msra.mxu0 0.0
        %2919 = vmatprep.subr.mxu0 0.0
        %2920 = vmatpush1.msra.mxu0 0.0
        %2921 = vmatprep.subr.mxu0 0.0
        %2922 = vmatpush1.msra.mxu0 0.0
        %2923 = vmatprep.subr.mxu0 0.0
        %v2924 = vand.u32 %v2554, 4294901760
        %v2925 = vsub.f32 %v2554, %v2924
        %v2926 = vand.u32 %v2925, 4294901760
        %2927 = vmatpush1.msra.mxu0 %v2926
        %2928 = vmatprep.subr.mxu0 0.0
        %v2929 = vand.u32 %v2553, 4294901760
        %v2930 = vsub.f32 %v2553, %v2929
        %v2931 = vand.u32 %v2930, 4294901760
        %2932 = vmatpush1.msra.mxu0 %v2931
        %2933 = vmatprep.subr.mxu0 0.0
        %2934 = vmatpush2.msra.mxu0 0.0
        %2935 = vmatprep.subr.mxu0 0.0
        %2936 = vmatpush2.msra.mxu0 0.0
        %2937 = vmatprep.subr.mxu0 0.0
        %2938 = vmatpush2.msra.mxu0 0.0
        %2939 = vmatprep.subr.mxu0 0.0
        %2940 = vmatpush2.msra.mxu0 0.0
        %2941 = vmatprep.subr.mxu0 0.0
        %2942 = vmatpush2.msra.mxu0 0.0
        %2943 = vmatprep.subr.mxu0 0.0
        %2944 = vmatpush2.msra.mxu0 0.0
        %2945 = vmatprep.subr.mxu0 0.0
        %2946 = vmatpush2.msra.mxu0 0.0
        %2947 = vmatprep.subr.mxu0 0.0
        %2948 = vmatpush2.msra.mxu0 0.0
        %2949 = vmatprep.subr.mxu0 0.0
        %2950 = vmatpush2.msra.mxu0 0.0
        %2951 = vmatprep.subr.mxu0 0.0
        %2952 = vmatpush2.msra.mxu0 0.0
        %2953 = vmatprep.subr.mxu0 0.0
        %2954 = vmatpush2.msra.mxu0 0.0
        %2955 = vmatprep.subr.mxu0 0.0
        %2956 = vmatpush2.msra.mxu0 0.0
        %2957 = vmatprep.subr.mxu0 0.0
        %2958 = vmatpush2.msra.mxu0 0.0
        %2959 = vmatprep.subr.mxu0 0.0
        %2960 = vmatpush2.msra.mxu0 0.0
        %2961 = vmatprep.subr.mxu0 0.0
        %2962 = vmatpush2.msra.mxu0 0.0
        %2963 = vmatprep.subr.mxu0 0.0
        %2964 = vmatpush2.msra.mxu0 0.0
        %2965 = vmatprep.mubr.f32.mxu0 0.0
        %v2966 = vand.u32 %v1029, 4294901760
        %2967 = vmatmul.mubr.f32.gmra.mxu0 %v2966
        %v2968 = vpop.f32.mrf.mxu0
        %v2969 = vadd.f32 %v2884, %v2968
        %v2970 = vpop.f32.mrf.mxu0
        %2971 = vmatprep.mubr.f32.mxu0 0.0
        %v2972 = vand.u32 %v1032, 4294901760
        %2973 = vmatmul.mubr.f32.gmra.mxu0 %v2972
        %v2974 = vpop.f32.mrf.mxu0
        %v2975 = vadd.f32 %v2892, %v2974
        %v2976 = vpop.f32.mrf.mxu0
        %2977 = vdwg.mxu0
        %2978 = vmatprep.subr.mxu0 0.0
        %2979 = vmatpush1.msra.mxu0 0.0
        %2980 = vmatprep.subr.mxu0 0.0
        %2981 = vmatpush1.msra.mxu0 0.0
        %2982 = vmatprep.subr.mxu0 0.0
        %2983 = vmatpush1.msra.mxu0 0.0
        %2984 = vmatprep.subr.mxu0 0.0
        %2985 = vmatpush1.msra.mxu0 0.0
        %2986 = vmatprep.subr.mxu0 0.0
        %2987 = vmatpush1.msra.mxu0 0.0
        %2988 = vmatprep.subr.mxu0 0.0
        %2989 = vmatpush1.msra.mxu0 0.0
        %2990 = vmatprep.subr.mxu0 0.0
        %2991 = vmatpush1.msra.mxu0 0.0
        %2992 = vmatprep.subr.mxu0 0.0
        %2993 = vmatpush1.msra.mxu0 0.0
        %2994 = vmatprep.subr.mxu0 0.0
        %2995 = vmatpush1.msra.mxu0 0.0
        %2996 = vmatprep.subr.mxu0 0.0
        %2997 = vmatpush1.msra.mxu0 0.0
        %2998 = vmatprep.subr.mxu0 0.0
        %2999 = vmatpush1.msra.mxu0 0.0
        %3000 = vmatprep.subr.mxu0 0.0
        %3001 = vmatpush1.msra.mxu0 0.0
        %3002 = vmatprep.subr.mxu0 0.0
        %3003 = vmatpush1.msra.mxu0 0.0
        %3004 = vmatprep.subr.mxu0 0.0
        %3005 = vmatpush1.msra.mxu0 0.0
        %3006 = vmatprep.subr.mxu0 0.0
        %v3007 = vand.u32 %v2554, 4294901760
        %3008 = vmatpush1.msra.mxu0 %v3007
        %3009 = vmatprep.subr.mxu0 0.0
        %v3010 = vand.u32 %v2553, 4294901760
        %3011 = vmatpush1.msra.mxu0 %v3010
        %3012 = vmatprep.subr.mxu0 0.0
        %3013 = vmatpush2.msra.mxu0 0.0
        %3014 = vmatprep.subr.mxu0 0.0
        %3015 = vmatpush2.msra.mxu0 0.0
        %3016 = vmatprep.subr.mxu0 0.0
        %3017 = vmatpush2.msra.mxu0 0.0
        %3018 = vmatprep.subr.mxu0 0.0
        %3019 = vmatpush2.msra.mxu0 0.0
        %3020 = vmatprep.subr.mxu0 0.0
        %3021 = vmatpush2.msra.mxu0 0.0
        %3022 = vmatprep.subr.mxu0 0.0
        %3023 = vmatpush2.msra.mxu0 0.0
        %3024 = vmatprep.subr.mxu0 0.0
        %3025 = vmatpush2.msra.mxu0 0.0
        %3026 = vmatprep.subr.mxu0 0.0
        %3027 = vmatpush2.msra.mxu0 0.0
        %3028 = vmatprep.subr.mxu0 0.0
        %3029 = vmatpush2.msra.mxu0 0.0
        %3030 = vmatprep.subr.mxu0 0.0
        %3031 = vmatpush2.msra.mxu0 0.0
        %3032 = vmatprep.subr.mxu0 0.0
        %3033 = vmatpush2.msra.mxu0 0.0
        %3034 = vmatprep.subr.mxu0 0.0
        %3035 = vmatpush2.msra.mxu0 0.0
        %3036 = vmatprep.subr.mxu0 0.0
        %3037 = vmatpush2.msra.mxu0 0.0
        %3038 = vmatprep.subr.mxu0 0.0
        %3039 = vmatpush2.msra.mxu0 0.0
        %3040 = vmatprep.subr.mxu0 0.0
        %3041 = vmatpush2.msra.mxu0 0.0
        %3042 = vmatprep.subr.mxu0 0.0
        %3043 = vmatpush2.msra.mxu0 0.0
        %3044 = vmatprep.mubr.f32.mxu0 0.0
        %v3045 = vand.u32 %v1029, 4294901760
        %3046 = vmatmul.mubr.f32.gmra.mxu0 %v3045
        %v3047 = vpop.f32.mrf.mxu0
        %v3048 = vadd.f32 %v2969, %v3047
        %v3049 = vpop.f32.mrf.mxu0
        %3050 = vmatprep.mubr.f32.mxu0 0.0
        %v3051 = vand.u32 %v1032, 4294901760
        %3052 = vmatmul.mubr.f32.gmra.mxu0 %v3051
        %v3053 = vpop.f32.mrf.mxu0
        %v3054 = vadd.f32 %v2975, %v3053
        %v3055 = vpop.f32.mrf.mxu0
        %3056 = vdwg.mxu0
        %3057 = vst.msk [vmem:[%s2552] sm:$0xff] %vm233, %v3048
        %3058 = vst.msk [vmem:[%s2552 + $0x8] sm:$0xff] %vm233, %v3054
        %s3059 = sand.u32 %s97, 1
        %s3060 = scalar_lea.sflag [#allocation4], %s3059
        %s3061 = sand.u32 %s97, 1
        %s3062 = smul.addr %s3061, 64
        %s3063 = scalar_lea.vmem [#allocation8], %s3062
        // Predicated region
        $region45: #{tpu_custom_call.1} parent=31 // pred_check
          %p3064 = pneg %p107
        $region46: #{tpu_custom_call.1} parent=31 // pred_check_branch
          %3066 = sbr.rel (%p3064) target = $region48
        $region47: #{tpu_custom_call.1} parent=31 // pred_region
          %s3067 = smul.u32 4, %s21
          %s3069 = ssub.s32 1024, 1024
          %3070 = vsyncadd %s3060, %s3069
          %s3071 = smul.addr %s3067, 2
          %s3072 = smul.addr %s3071, 128
          %s3073 = scalar_lea.hbm %s3, %s3072
          %s3074 = sshll.u32 %s3063, 4
          %s3075 = int_to_ptr.vmem [resolvable:$true] %s3074
          %3080 = dma.vmem_to_hbm [thread:$0]  %s3075, 1024, %s3073, %s3060, 128, 128, 8
        $region48: #{tpu_custom_call.1} parent=31 // pred_fallthru
          _
      $region32: #{tpu_custom_call.1} parent=5 // pred_fallthru
        _
      %p3081 = scmp.le.s32.totalorder 2, %s16
      // Predicated region
      $region49: #{tpu_custom_call.1} parent=5 // pred_check
        %p3082 = pneg %p3081
      $region50: #{tpu_custom_call.1} parent=5 // pred_check_branch
        %3084 = sbr.rel (%p3082) target = $region52
      $region51: #{tpu_custom_call.1} parent=5 // pred_region
        %s3085 = ssub.s32 %s16, 2
        // Predicated region
        $region53: #{tpu_custom_call.1} parent=51 // pred_check
          %p3086 = pneg %p113
        $region54: #{tpu_custom_call.1} parent=51 // pred_check_branch
          %3088 = sbr.rel (%p3086) target = $region56
        $region55: #{tpu_custom_call.1} parent=51 // pred_region
          %s3089 = sand.u32 %s98, 1
          %s3090 = scalar_lea.sflag [#allocation4], %s3089
          %s3091 = sand.u32 %s98, 1
          %s3092 = smul.addr %s3091, 64
          %s3093 = scalar_lea.vmem [#allocation8], %s3092
          %3094 = dma.done %s3090, 1024
        $region56: #{tpu_custom_call.1} parent=51 // pred_fallthru
          _
      $region52: #{tpu_custom_call.1} parent=5 // pred_fallthru
        _
    $region6: #{tpu_custom_call.1} parent=1 // loop_footer
      %s20 = sadd.s32 1, %s16
    $region7: #{tpu_custom_call.1} parent=1 // loop_footer_branch
      %15 = sbr.rel target = $region3
    $region8: #{tpu_custom_call.1} parent=1 // loop_exit
      _
    %3095 = vsyncpa [#allocation3], 1
    %s3096 = scalar_lea.sflag [#allocation3], 1
    %3097 = vsyncpa %s3096, 1
    %3098 = vsyncpa [#allocation6], 1
    %3099 = vsyncpa [#allocation4], 1
    %s3100 = scalar_lea.sflag [#allocation4], 1
    %3101 = vsyncpa %s3100, 1

</llo_original>
